<compile_context>
chip_gen: v6e
topology: v6e:2x2x1
jax: 0.10.0
libtpu: 0.0.40
codegen_flags: <defaults>
</compile_context>

<pallas_src>
import functools

import jax
import jax.numpy as jnp
from jax.experimental import pallas as pl
from jax.experimental.pallas import tpu as pltpu


def _round_up(x, m):
    return ((x + m - 1) // m) * m


# ----------------------------------------------------------------------------
# Fused GNN forward kernel.
#   SMEM inputs : src (E,), dst (E,), batch (N,)   -- int32 index tables
#   VMEM inputs : node/edge features (bf16), 1/count per graph (f32),
#                 all weights (bf16, padded to 128 lanes), biases (f32, padded)
#   Output      : (G, OUT_P) f32 (lane-dense; sliced to out_dim outside)
#   Scratch     : row-indexable gather/scatter tables + a 2-D staging buffer.
# ----------------------------------------------------------------------------
def _gnn_fused_kernel(
    # SMEM index tables
    src_ref, dst_ref, batch_ref,
    # VMEM tensors
    x_ref, ea_ref, inv_cnt_ref,
    w_node_ref, b_node_ref, w_edge_ref, b_edge_ref,
    w_mp_ref, b_mp_ref, w_read_ref, b_read_ref, w_out_ref, b_out_ref,
    # output
    out_ref,
    # VMEM scratch
    h_tab, acc_tab, pool_tab, stage,
    *, n_nodes, n_edges, n_graphs, num_mp_layers,
):
    def linear_relu(x, w, b, relu=True):
        # bf16 MXU operands, f32 accumulation + f32 epilogue.
        y = jnp.dot(x.astype(jnp.bfloat16), w.astype(jnp.bfloat16),
                    preferred_element_type=jnp.float32) + b
        return jnp.maximum(y, 0.0) if relu else y

    # --- node / edge embeddings (dense matmuls on the MXU) -------------------
    h = linear_relu(x_ref[...], w_node_ref[...], b_node_ref[...])        # (N, Hp) f32
    e_emb = linear_relu(ea_ref[...], w_edge_ref[...], b_edge_ref[...])   # (E, Hp) f32

    # --- message-passing layers ----------------------------------------------
    for layer in range(num_mp_layers):
        # Refresh the row-indexable copy of h used by the per-edge gather.
        for n in range(n_nodes):
            h_tab[n] = h[n:n + 1, :]

        # Scatter-add of ReLU(h[src] + e_emb) into acc_tab[dst].
        acc_tab[...] = jnp.zeros_like(acc_tab)
        for eidx in range(n_edges):
            s = src_ref[eidx]
            d = dst_ref[eidx]
            msg = jnp.maximum(h_tab[s] + e_emb[eidx:eidx + 1, :], 0.0)   # (1, Hp)
            acc_tab[d] = acc_tab[d] + msg

        # Bring aggregated messages back to a 2-D lane-dense operand.
        for n in range(n_nodes):
            stage[pl.ds(n, 1), :] = acc_tab[n]

        h = linear_relu(stage[pl.ds(0, n_nodes), :],
                        w_mp_ref[layer], b_mp_ref[layer])                # (N, Hp)

    # --- jk='last' + per-graph pooling (scatter-add, then 1/count scale) -----
    pool_tab[...] = jnp.zeros_like(pool_tab)
    for n in range(n_nodes):
        g = batch_ref[n]
        pool_tab[g] = pool_tab[g] + h[n:n + 1, :]
    for gidx in range(n_graphs):
        stage[pl.ds(gidx, 1), :] = pool_tab[gidx]
    pooled = stage[pl.ds(0, n_graphs), :] * inv_cnt_ref[...]             # (G, Hp) f32

    # --- readout (num_readout_layers=1) + output head (kept fused) -----------
    r = linear_relu(pooled, w_read_ref[...], b_read_ref[...])            # (G, Hp)
    out_ref[...] = linear_relu(r, w_out_ref[...], b_out_ref[...],
                               relu=False).astype(out_ref.dtype)         # (G, OUTp)


# ----------------------------------------------------------------------------
# Wrapper: padding / index prep glue + the single pallas_call.
# ----------------------------------------------------------------------------
def gnn_only_model_forward(params, mol_input, config):
    node_feats = mol_input["node_feats"].astype(jnp.float32)   # (N, node_dim)
    edge_feats = mol_input["edge_feats"].astype(jnp.float32)   # (E, edge_dim)
    edge_index = mol_input["edge_index"].astype(jnp.int32)     # (2, E)
    batch_vec = mol_input["batch"].astype(jnp.int32)           # (N,)

    n_nodes, node_dim = node_feats.shape
    n_edges, edge_dim = edge_feats.shape
    n_graphs = int(params["num_graphs"])
    num_mp_layers = int(config["num_mp_layers"])
    hidden = params["W_node"].shape[1]
    out_dim = params["W_out"].shape[1]

    H_P = _round_up(hidden, 128)       # lane-dense hidden
    OUT_P = _round_up(out_dim, 128)    # lane-dense output (sliced afterwards)

    def pad2(w, rows, cols):
        return jnp.pad(w, ((0, rows - w.shape[0]), (0, cols - w.shape[1])))

    bf16 = jnp.bfloat16
    x_bf = node_feats.astype(bf16)
    ea_bf = edge_feats.astype(bf16)

    w_node = pad2(params["W_node"], node_dim, H_P).astype(bf16)
    b_node = pad2(params["b_node"], 1, H_P)
    w_edge = pad2(params["W_edge"], edge_dim, H_P).astype(bf16)
    b_edge = pad2(params["b_edge"], 1, H_P)
    if num_mp_layers > 0:
        w_mp = jnp.stack([pad2(params[f"W_mp_{l}"], H_P, H_P)
                          for l in range(num_mp_layers)]).astype(bf16)
        b_mp = jnp.stack([pad2(params[f"b_mp_{l}"], 1, H_P)
                          for l in range(num_mp_layers)])
    else:  # dummies (unused) so the kernel signature stays fixed
        w_mp = jnp.zeros((1, H_P, H_P), bf16)
        b_mp = jnp.zeros((1, 1, H_P), jnp.float32)
    w_read = pad2(params["W_read"], H_P, H_P).astype(bf16)
    b_read = pad2(params["b_read"], 1, H_P)
    w_out = pad2(params["W_out"], H_P, OUT_P).astype(bf16)
    b_out = pad2(params["b_out"], 1, OUT_P)

    src = edge_index[0]
    dst = edge_index[1]

    # Per-graph 1/count for mean aggregation (sum aggregation -> ones).
    if config.get("aggr", "mean") == "mean":
        counts = jnp.zeros((n_graphs,), jnp.float32).at[batch_vec].add(1.0)
        inv_cnt = (1.0 / jnp.maximum(counts, 1.0)).reshape(n_graphs, 1)
    else:
        inv_cnt = jnp.ones((n_graphs, 1), jnp.float32)

    smem_spec = pl.BlockSpec(memory_space=pltpu.MemorySpace.SMEM)
    vmem_spec = pl.BlockSpec(memory_space=pltpu.MemorySpace.VMEM)
    stage_rows = max(n_nodes, n_graphs)

    kernel = functools.partial(
        _gnn_fused_kernel,
        n_nodes=n_nodes, n_edges=n_edges, n_graphs=n_graphs,
        num_mp_layers=num_mp_layers,
    )

    out_padded = pl.pallas_call(
        kernel,
        out_shape=jax.ShapeDtypeStruct((n_graphs, OUT_P), jnp.float32),
        in_specs=[smem_spec, smem_spec, smem_spec] + [vmem_spec] * 13,
        out_specs=vmem_spec,
        scratch_shapes=[
            pltpu.VMEM((n_nodes, 1, H_P), jnp.float32),   # h_tab (gather table)
            pltpu.VMEM((n_nodes, 1, H_P), jnp.float32),   # acc_tab (scatter acc)
            pltpu.VMEM((n_graphs, 1, H_P), jnp.float32),  # pool_tab
            pltpu.VMEM((stage_rows, H_P), jnp.float32),   # 2-D staging buffer
        ],
        compiler_params=pltpu.CompilerParams(
            vmem_limit_bytes=32 * 1024 * 1024),
    )(
        src, dst, batch_vec,
        x_bf, ea_bf, inv_cnt,
        w_node, b_node, w_edge, b_edge,
        w_mp, b_mp, w_read, b_read, w_out, b_out,
    )
    return out_padded[:, :out_dim]


# ----------------------------------------------------------------------------
# Deterministic parameter init (shapes implied by the module's __init__).
# ----------------------------------------------------------------------------
def init_params(key, config, output_dim, num_graphs):
    h = config["hidden_dim_graph"]
    keys = jax.random.split(key, 16)
    p = {
        "W_node": 0.1 * jax.random.normal(keys[0], (config["node_dim"], h), jnp.float32),
        "b_node": jnp.zeros((1, h), jnp.float32),
        "W_edge": 0.1 * jax.random.normal(keys[1], (config["edge_dim"], h), jnp.float32),
        "b_edge": jnp.zeros((1, h), jnp.float32),
        "W_read": 0.1 * jax.random.normal(keys[2], (h, h), jnp.float32),
        "b_read": jnp.zeros((1, h), jnp.float32),
        "W_out": 0.1 * jax.random.normal(keys[3], (h, output_dim), jnp.float32),
        "b_out": jnp.zeros((1, output_dim), jnp.float32),
        "num_graphs": num_graphs,
    }
    for layer in range(config["num_mp_layers"]):
        p[f"W_mp_{layer}"] = 0.1 * jax.random.normal(keys[4 + layer], (h, h), jnp.float32)
        p[f"b_mp_{layer}"] = jnp.zeros((1, h), jnp.float32)
    return p


if __name__ == "__main__":
    config = {
        "node_dim": 8,
        "edge_dim": 4,
        "hidden_dim_graph": 32,
        "num_mp_layers": 2,
        "dropout": 0.0,       # inference: dropout is identity
        "aggr": "mean",
        "jk": "last",
    }
    output_dim = 1

    n_nodes, n_edges, n_graphs = 16, 32, 2

    key = jax.random.PRNGKey(0)
    k_node, k_edge, k_src, k_dst, k_param = jax.random.split(key, 5)

    node_feats = jax.random.normal(k_node, (n_nodes, config["node_dim"]), jnp.float32)
    edge_feats = jax.random.normal(k_edge, (n_edges, config["edge_dim"]), jnp.float32)
    src = jax.random.randint(k_src, (n_edges,), 0, n_nodes, jnp.int32)
    dst = jax.random.randint(k_dst, (n_edges,), 0, n_nodes, jnp.int32)
    edge_index = jnp.stack([src, dst], axis=0)
    batch_vec = jnp.concatenate(
        [jnp.zeros((n_nodes // 2,), jnp.int32), jnp.ones((n_nodes // 2,), jnp.int32)]
    )

    batch = {
        "input": {
            "molecule": {
                "node_feats": node_feats,
                "edge_feats": edge_feats,
                "edge_index": edge_index,
                "batch": batch_vec,
            }
        }
    }

    params = init_params(k_param, config, output_dim, n_graphs)

    pred = gnn_only_model_forward(params, batch["input"]["molecule"], config)
    pred = jax.block_until_ready(pred)
    assert pred.shape == (n_graphs, output_dim)
    print("KERNEL_OK")
</pallas_src>

<mosaic_0001>
module attributes {stable_mosaic.version = 11 : i64} {
  func.func @_gnn_fused_kernel(%arg0: memref<32xi32, #tpu.memory_space<smem>>, %arg1: memref<32xi32, #tpu.memory_space<smem>>, %arg2: memref<16xi32, #tpu.memory_space<smem>>, %arg3: memref<16x8xbf16, #tpu.memory_space<vmem>>, %arg4: memref<32x4xbf16, #tpu.memory_space<vmem>>, %arg5: memref<2x1xf32, #tpu.memory_space<vmem>>, %arg6: memref<8x128xbf16, #tpu.memory_space<vmem>>, %arg7: memref<1x128xf32, #tpu.memory_space<vmem>>, %arg8: memref<4x128xbf16, #tpu.memory_space<vmem>>, %arg9: memref<1x128xf32, #tpu.memory_space<vmem>>, %arg10: memref<2x128x128xbf16, #tpu.memory_space<vmem>>, %arg11: memref<2x1x128xf32, #tpu.memory_space<vmem>>, %arg12: memref<128x128xbf16, #tpu.memory_space<vmem>>, %arg13: memref<1x128xf32, #tpu.memory_space<vmem>>, %arg14: memref<128x128xbf16, #tpu.memory_space<vmem>>, %arg15: memref<1x128xf32, #tpu.memory_space<vmem>>, %arg16: memref<2x128xf32, #tpu.memory_space<vmem>>, %arg17: memref<16x1x128xf32, #tpu.memory_space<vmem>>, %arg18: memref<16x1x128xf32, #tpu.memory_space<vmem>>, %arg19: memref<2x1x128xf32, #tpu.memory_space<vmem>>, %arg20: memref<16x128xf32, #tpu.memory_space<vmem>>) attributes {dimension_semantics = [], scalar_prefetch = 0 : i64, scratch_operands = 4 : i64, tpu.core_type = #tpu.core_type<tc>} {
    %c0 = arith.constant 0 : index
    %c0_0 = arith.constant 0 : index
    %0 = vector.load %arg3[%c0, %c0_0] : memref<16x8xbf16, #tpu.memory_space<vmem>>, vector<16x8xbf16>
    %c0_1 = arith.constant 0 : index
    %c0_2 = arith.constant 0 : index
    %1 = vector.load %arg6[%c0_1, %c0_2] : memref<8x128xbf16, #tpu.memory_space<vmem>>, vector<8x128xbf16>
    %c0_3 = arith.constant 0 : index
    %c0_4 = arith.constant 0 : index
    %2 = vector.load %arg7[%c0_3, %c0_4] : memref<1x128xf32, #tpu.memory_space<vmem>>, vector<1x128xf32>
    %cst = arith.constant dense<0.000000e+00> : vector<16x128xf32>
    %3 = tpu.matmul %0, %1, %cst {dimension_numbers = #tpu.dot_dimension_numbers<[1], [0], [0], [1], [0, 0, 1, 1], [], []>} : vector<16x8xbf16>, vector<8x128xbf16>, vector<16x128xf32> -> vector<16x128xf32>
    %4 = vector.broadcast %2 : vector<1x128xf32> to vector<16x128xf32>
    %5 = arith.addf %3, %4 : vector<16x128xf32>
    %cst_5 = arith.constant 0.000000e+00 : f32
    %6 = vector.broadcast %cst_5 : f32 to vector<16x128xf32>
    %7 = arith.maximumf %5, %6 : vector<16x128xf32>
    %c0_6 = arith.constant 0 : index
    %c0_7 = arith.constant 0 : index
    %8 = vector.load %arg4[%c0_6, %c0_7] : memref<32x4xbf16, #tpu.memory_space<vmem>>, vector<32x4xbf16>
    %c0_8 = arith.constant 0 : index
    %c0_9 = arith.constant 0 : index
    %9 = vector.load %arg8[%c0_8, %c0_9] : memref<4x128xbf16, #tpu.memory_space<vmem>>, vector<4x128xbf16>
    %c0_10 = arith.constant 0 : index
    %c0_11 = arith.constant 0 : index
    %10 = vector.load %arg9[%c0_10, %c0_11] : memref<1x128xf32, #tpu.memory_space<vmem>>, vector<1x128xf32>
    %cst_12 = arith.constant dense<0.000000e+00> : vector<32x128xf32>
    %11 = tpu.matmul %8, %9, %cst_12 {dimension_numbers = #tpu.dot_dimension_numbers<[1], [0], [0], [1], [0, 0, 1, 1], [], []>} : vector<32x4xbf16>, vector<4x128xbf16>, vector<32x128xf32> -> vector<32x128xf32>
    %12 = vector.broadcast %10 : vector<1x128xf32> to vector<32x128xf32>
    %13 = arith.addf %11, %12 : vector<32x128xf32>
    %cst_13 = arith.constant 0.000000e+00 : f32
    %14 = vector.broadcast %cst_13 : f32 to vector<32x128xf32>
    %15 = arith.maximumf %13, %14 : vector<32x128xf32>
    %16 = vector.extract_strided_slice %7 {offsets = [0, 0], sizes = [1, 128], strides = [1, 1]} : vector<16x128xf32> to vector<1x128xf32>
    %c0_14 = arith.constant 0 : index
    %c0_15 = arith.constant 0 : index
    %c0_16 = arith.constant 0 : index
    %17 = vector.load %arg17[%c0_14, %c0_15, %c0_16] : memref<16x1x128xf32, #tpu.memory_space<vmem>>, vector<1x1x128xf32>
    %18 = vector.shape_cast %17 : vector<1x1x128xf32> to vector<1x128xf32>
    %19 = vector.shape_cast %16 : vector<1x128xf32> to vector<1x1x128xf32>
    tpu.vector_store %arg17[%c0_14, %c0_15, %c0_16], %19 {strides = array<i32>} : memref<16x1x128xf32, #tpu.memory_space<vmem>>, vector<1x1x128xf32>,
    %20 = vector.extract_strided_slice %7 {offsets = [1, 0], sizes = [1, 128], strides = [1, 1]} : vector<16x128xf32> to vector<1x128xf32>
    %c1 = arith.constant 1 : index
    %c0_17 = arith.constant 0 : index
    %c0_18 = arith.constant 0 : index
    %21 = vector.load %arg17[%c1, %c0_17, %c0_18] : memref<16x1x128xf32, #tpu.memory_space<vmem>>, vector<1x1x128xf32>
    %22 = vector.shape_cast %21 : vector<1x1x128xf32> to vector<1x128xf32>
    %23 = vector.shape_cast %20 : vector<1x128xf32> to vector<1x1x128xf32>
    tpu.vector_store %arg17[%c1, %c0_17, %c0_18], %23 {strides = array<i32>} : memref<16x1x128xf32, #tpu.memory_space<vmem>>, vector<1x1x128xf32>,
    %24 = vector.extract_strided_slice %7 {offsets = [2, 0], sizes = [1, 128], strides = [1, 1]} : vector<16x128xf32> to vector<1x128xf32>
    %c2 = arith.constant 2 : index
    %c0_19 = arith.constant 0 : index
    %c0_20 = arith.constant 0 : index
    %25 = vector.load %arg17[%c2, %c0_19, %c0_20] : memref<16x1x128xf32, #tpu.memory_space<vmem>>, vector<1x1x128xf32>
    %26 = vector.shape_cast %25 : vector<1x1x128xf32> to vector<1x128xf32>
    %27 = vector.shape_cast %24 : vector<1x128xf32> to vector<1x1x128xf32>
    tpu.vector_store %arg17[%c2, %c0_19, %c0_20], %27 {strides = array<i32>} : memref<16x1x128xf32, #tpu.memory_space<vmem>>, vector<1x1x128xf32>,
    %28 = vector.extract_strided_slice %7 {offsets = [3, 0], sizes = [1, 128], strides = [1, 1]} : vector<16x128xf32> to vector<1x128xf32>
    %c3 = arith.constant 3 : index
    %c0_21 = arith.constant 0 : index
    %c0_22 = arith.constant 0 : index
    %29 = vector.load %arg17[%c3, %c0_21, %c0_22] : memref<16x1x128xf32, #tpu.memory_space<vmem>>, vector<1x1x128xf32>
    %30 = vector.shape_cast %29 : vector<1x1x128xf32> to vector<1x128xf32>
    %31 = vector.shape_cast %28 : vector<1x128xf32> to vector<1x1x128xf32>
    tpu.vector_store %arg17[%c3, %c0_21, %c0_22], %31 {strides = array<i32>} : memref<16x1x128xf32, #tpu.memory_space<vmem>>, vector<1x1x128xf32>,
    %32 = vector.extract_strided_slice %7 {offsets = [4, 0], sizes = [1, 128], strides = [1, 1]} : vector<16x128xf32> to vector<1x128xf32>
    %c4 = arith.constant 4 : index
    %c0_23 = arith.constant 0 : index
    %c0_24 = arith.constant 0 : index
    %33 = vector.load %arg17[%c4, %c0_23, %c0_24] : memref<16x1x128xf32, #tpu.memory_space<vmem>>, vector<1x1x128xf32>
    %34 = vector.shape_cast %33 : vector<1x1x128xf32> to vector<1x128xf32>
    %35 = vector.shape_cast %32 : vector<1x128xf32> to vector<1x1x128xf32>
    tpu.vector_store %arg17[%c4, %c0_23, %c0_24], %35 {strides = array<i32>} : memref<16x1x128xf32, #tpu.memory_space<vmem>>, vector<1x1x128xf32>,
    %36 = vector.extract_strided_slice %7 {offsets = [5, 0], sizes = [1, 128], strides = [1, 1]} : vector<16x128xf32> to vector<1x128xf32>
    %c5 = arith.constant 5 : index
    %c0_25 = arith.constant 0 : index
    %c0_26 = arith.constant 0 : index
    %37 = vector.load %arg17[%c5, %c0_25, %c0_26] : memref<16x1x128xf32, #tpu.memory_space<vmem>>, vector<1x1x128xf32>
    %38 = vector.shape_cast %37 : vector<1x1x128xf32> to vector<1x128xf32>
    %39 = vector.shape_cast %36 : vector<1x128xf32> to vector<1x1x128xf32>
    tpu.vector_store %arg17[%c5, %c0_25, %c0_26], %39 {strides = array<i32>} : memref<16x1x128xf32, #tpu.memory_space<vmem>>, vector<1x1x128xf32>,
    %40 = vector.extract_strided_slice %7 {offsets = [6, 0], sizes = [1, 128], strides = [1, 1]} : vector<16x128xf32> to vector<1x128xf32>
    %c6 = arith.constant 6 : index
    %c0_27 = arith.constant 0 : index
    %c0_28 = arith.constant 0 : index
    %41 = vector.load %arg17[%c6, %c0_27, %c0_28] : memref<16x1x128xf32, #tpu.memory_space<vmem>>, vector<1x1x128xf32>
    %42 = vector.shape_cast %41 : vector<1x1x128xf32> to vector<1x128xf32>
    %43 = vector.shape_cast %40 : vector<1x128xf32> to vector<1x1x128xf32>
    tpu.vector_store %arg17[%c6, %c0_27, %c0_28], %43 {strides = array<i32>} : memref<16x1x128xf32, #tpu.memory_space<vmem>>, vector<1x1x128xf32>,
    %44 = vector.extract_strided_slice %7 {offsets = [7, 0], sizes = [1, 128], strides = [1, 1]} : vector<16x128xf32> to vector<1x128xf32>
    %c7 = arith.constant 7 : index
    %c0_29 = arith.constant 0 : index
    %c0_30 = arith.constant 0 : index
    %45 = vector.load %arg17[%c7, %c0_29, %c0_30] : memref<16x1x128xf32, #tpu.memory_space<vmem>>, vector<1x1x128xf32>
    %46 = vector.shape_cast %45 : vector<1x1x128xf32> to vector<1x128xf32>
    %47 = vector.shape_cast %44 : vector<1x128xf32> to vector<1x1x128xf32>
    tpu.vector_store %arg17[%c7, %c0_29, %c0_30], %47 {strides = array<i32>} : memref<16x1x128xf32, #tpu.memory_space<vmem>>, vector<1x1x128xf32>,
    %48 = vector.extract_strided_slice %7 {offsets = [8, 0], sizes = [1, 128], strides = [1, 1]} : vector<16x128xf32> to vector<1x128xf32>
    %c8 = arith.constant 8 : index
    %c0_31 = arith.constant 0 : index
    %c0_32 = arith.constant 0 : index
    %49 = vector.load %arg17[%c8, %c0_31, %c0_32] : memref<16x1x128xf32, #tpu.memory_space<vmem>>, vector<1x1x128xf32>
    %50 = vector.shape_cast %49 : vector<1x1x128xf32> to vector<1x128xf32>
    %51 = vector.shape_cast %48 : vector<1x128xf32> to vector<1x1x128xf32>
    tpu.vector_store %arg17[%c8, %c0_31, %c0_32], %51 {strides = array<i32>} : memref<16x1x128xf32, #tpu.memory_space<vmem>>, vector<1x1x128xf32>,
    %52 = vector.extract_strided_slice %7 {offsets = [9, 0], sizes = [1, 128], strides = [1, 1]} : vector<16x128xf32> to vector<1x128xf32>
    %c9 = arith.constant 9 : index
    %c0_33 = arith.constant 0 : index
    %c0_34 = arith.constant 0 : index
    %53 = vector.load %arg17[%c9, %c0_33, %c0_34] : memref<16x1x128xf32, #tpu.memory_space<vmem>>, vector<1x1x128xf32>
    %54 = vector.shape_cast %53 : vector<1x1x128xf32> to vector<1x128xf32>
    %55 = vector.shape_cast %52 : vector<1x128xf32> to vector<1x1x128xf32>
    tpu.vector_store %arg17[%c9, %c0_33, %c0_34], %55 {strides = array<i32>} : memref<16x1x128xf32, #tpu.memory_space<vmem>>, vector<1x1x128xf32>,
    %56 = vector.extract_strided_slice %7 {offsets = [10, 0], sizes = [1, 128], strides = [1, 1]} : vector<16x128xf32> to vector<1x128xf32>
    %c10 = arith.constant 10 : index
    %c0_35 = arith.constant 0 : index
    %c0_36 = arith.constant 0 : index
    %57 = vector.load %arg17[%c10, %c0_35, %c0_36] : memref<16x1x128xf32, #tpu.memory_space<vmem>>, vector<1x1x128xf32>
    %58 = vector.shape_cast %57 : vector<1x1x128xf32> to vector<1x128xf32>
    %59 = vector.shape_cast %56 : vector<1x128xf32> to vector<1x1x128xf32>
    tpu.vector_store %arg17[%c10, %c0_35, %c0_36], %59 {strides = array<i32>} : memref<16x1x128xf32, #tpu.memory_space<vmem>>, vector<1x1x128xf32>,
    %60 = vector.extract_strided_slice %7 {offsets = [11, 0], sizes = [1, 128], strides = [1, 1]} : vector<16x128xf32> to vector<1x128xf32>
    %c11 = arith.constant 11 : index
    %c0_37 = arith.constant 0 : index
    %c0_38 = arith.constant 0 : index
    %61 = vector.load %arg17[%c11, %c0_37, %c0_38] : memref<16x1x128xf32, #tpu.memory_space<vmem>>, vector<1x1x128xf32>
    %62 = vector.shape_cast %61 : vector<1x1x128xf32> to vector<1x128xf32>
    %63 = vector.shape_cast %60 : vector<1x128xf32> to vector<1x1x128xf32>
    tpu.vector_store %arg17[%c11, %c0_37, %c0_38], %63 {strides = array<i32>} : memref<16x1x128xf32, #tpu.memory_space<vmem>>, vector<1x1x128xf32>,
    %64 = vector.extract_strided_slice %7 {offsets = [12, 0], sizes = [1, 128], strides = [1, 1]} : vector<16x128xf32> to vector<1x128xf32>
    %c12 = arith.constant 12 : index
    %c0_39 = arith.constant 0 : index
    %c0_40 = arith.constant 0 : index
    %65 = vector.load %arg17[%c12, %c0_39, %c0_40] : memref<16x1x128xf32, #tpu.memory_space<vmem>>, vector<1x1x128xf32>
    %66 = vector.shape_cast %65 : vector<1x1x128xf32> to vector<1x128xf32>
    %67 = vector.shape_cast %64 : vector<1x128xf32> to vector<1x1x128xf32>
    tpu.vector_store %arg17[%c12, %c0_39, %c0_40], %67 {strides = array<i32>} : memref<16x1x128xf32, #tpu.memory_space<vmem>>, vector<1x1x128xf32>,
    %68 = vector.extract_strided_slice %7 {offsets = [13, 0], sizes = [1, 128], strides = [1, 1]} : vector<16x128xf32> to vector<1x128xf32>
    %c13 = arith.constant 13 : index
    %c0_41 = arith.constant 0 : index
    %c0_42 = arith.constant 0 : index
    %69 = vector.load %arg17[%c13, %c0_41, %c0_42] : memref<16x1x128xf32, #tpu.memory_space<vmem>>, vector<1x1x128xf32>
    %70 = vector.shape_cast %69 : vector<1x1x128xf32> to vector<1x128xf32>
    %71 = vector.shape_cast %68 : vector<1x128xf32> to vector<1x1x128xf32>
    tpu.vector_store %arg17[%c13, %c0_41, %c0_42], %71 {strides = array<i32>} : memref<16x1x128xf32, #tpu.memory_space<vmem>>, vector<1x1x128xf32>,
    %72 = vector.extract_strided_slice %7 {offsets = [14, 0], sizes = [1, 128], strides = [1, 1]} : vector<16x128xf32> to vector<1x128xf32>
    %c14 = arith.constant 14 : index
    %c0_43 = arith.constant 0 : index
    %c0_44 = arith.constant 0 : index
    %73 = vector.load %arg17[%c14, %c0_43, %c0_44] : memref<16x1x128xf32, #tpu.memory_space<vmem>>, vector<1x1x128xf32>
    %74 = vector.shape_cast %73 : vector<1x1x128xf32> to vector<1x128xf32>
    %75 = vector.shape_cast %72 : vector<1x128xf32> to vector<1x1x128xf32>
    tpu.vector_store %arg17[%c14, %c0_43, %c0_44], %75 {strides = array<i32>} : memref<16x1x128xf32, #tpu.memory_space<vmem>>, vector<1x1x128xf32>,
    %76 = vector.extract_strided_slice %7 {offsets = [15, 0], sizes = [1, 128], strides = [1, 1]} : vector<16x128xf32> to vector<1x128xf32>
    %c15 = arith.constant 15 : index
    %c0_45 = arith.constant 0 : index
    %c0_46 = arith.constant 0 : index
    %77 = vector.load %arg17[%c15, %c0_45, %c0_46] : memref<16x1x128xf32, #tpu.memory_space<vmem>>, vector<1x1x128xf32>
    %78 = vector.shape_cast %77 : vector<1x1x128xf32> to vector<1x128xf32>
    %79 = vector.shape_cast %76 : vector<1x128xf32> to vector<1x1x128xf32>
    tpu.vector_store %arg17[%c15, %c0_45, %c0_46], %79 {strides = array<i32>} : memref<16x1x128xf32, #tpu.memory_space<vmem>>, vector<1x1x128xf32>,
    %cst_47 = arith.constant 0.000000e+00 : f32
    %80 = vector.broadcast %cst_47 : f32 to vector<16x1x128xf32>
    %c0_48 = arith.constant 0 : index
    %c0_49 = arith.constant 0 : index
    %c0_50 = arith.constant 0 : index
    %81 = vector.load %arg18[%c0_48, %c0_49, %c0_50] : memref<16x1x128xf32, #tpu.memory_space<vmem>>, vector<16x1x128xf32>
    tpu.vector_store %arg18[%c0_48, %c0_49, %c0_50], %80 {strides = array<i32>} : memref<16x1x128xf32, #tpu.memory_space<vmem>>, vector<16x1x128xf32>,
    %c0_51 = arith.constant 0 : index
    %82 = memref.load %arg0[%c0_51] : memref<32xi32, #tpu.memory_space<smem>>
    %c0_52 = arith.constant 0 : index
    %83 = memref.load %arg1[%c0_52] : memref<32xi32, #tpu.memory_space<smem>>
    %84 = arith.index_cast %82 : i32 to index
    %c0_53 = arith.constant 0 : index
    %c0_54 = arith.constant 0 : index
    %85 = vector.load %arg17[%84, %c0_53, %c0_54] : memref<16x1x128xf32, #tpu.memory_space<vmem>>, vector<1x1x128xf32>
    %86 = vector.shape_cast %85 : vector<1x1x128xf32> to vector<1x128xf32>
    %87 = vector.extract_strided_slice %15 {offsets = [0, 0], sizes = [1, 128], strides = [1, 1]} : vector<32x128xf32> to vector<1x128xf32>
    %88 = arith.addf %86, %87 : vector<1x128xf32>
    %cst_55 = arith.constant 0.000000e+00 : f32
    %89 = vector.broadcast %cst_55 : f32 to vector<1x128xf32>
    %90 = arith.maximumf %88, %89 : vector<1x128xf32>
    %91 = arith.index_cast %83 : i32 to index
    %c0_56 = arith.constant 0 : index
    %c0_57 = arith.constant 0 : index
    %92 = vector.load %arg18[%91, %c0_56, %c0_57] : memref<16x1x128xf32, #tpu.memory_space<vmem>>, vector<1x1x128xf32>
    %93 = vector.shape_cast %92 : vector<1x1x128xf32> to vector<1x128xf32>
    %94 = arith.addf %93, %90 : vector<1x128xf32>
    %95 = arith.index_cast %83 : i32 to index
    %c0_58 = arith.constant 0 : index
    %c0_59 = arith.constant 0 : index
    %96 = vector.load %arg18[%95, %c0_58, %c0_59] : memref<16x1x128xf32, #tpu.memory_space<vmem>>, vector<1x1x128xf32>
    %97 = vector.shape_cast %96 : vector<1x1x128xf32> to vector<1x128xf32>
    %98 = vector.shape_cast %94 : vector<1x128xf32> to vector<1x1x128xf32>
    tpu.vector_store %arg18[%95, %c0_58, %c0_59], %98 {strides = array<i32>} : memref<16x1x128xf32, #tpu.memory_space<vmem>>, vector<1x1x128xf32>,
    %c1_60 = arith.constant 1 : index
    %99 = memref.load %arg0[%c1_60] : memref<32xi32, #tpu.memory_space<smem>>
    %c1_61 = arith.constant 1 : index
    %100 = memref.load %arg1[%c1_61] : memref<32xi32, #tpu.memory_space<smem>>
    %101 = arith.index_cast %99 : i32 to index
    %c0_62 = arith.constant 0 : index
    %c0_63 = arith.constant 0 : index
    %102 = vector.load %arg17[%101, %c0_62, %c0_63] : memref<16x1x128xf32, #tpu.memory_space<vmem>>, vector<1x1x128xf32>
    %103 = vector.shape_cast %102 : vector<1x1x128xf32> to vector<1x128xf32>
    %104 = vector.extract_strided_slice %15 {offsets = [1, 0], sizes = [1, 128], strides = [1, 1]} : vector<32x128xf32> to vector<1x128xf32>
    %105 = arith.addf %103, %104 : vector<1x128xf32>
    %cst_64 = arith.constant 0.000000e+00 : f32
    %106 = vector.broadcast %cst_64 : f32 to vector<1x128xf32>
    %107 = arith.maximumf %105, %106 : vector<1x128xf32>
    %108 = arith.index_cast %100 : i32 to index
    %c0_65 = arith.constant 0 : index
    %c0_66 = arith.constant 0 : index
    %109 = vector.load %arg18[%108, %c0_65, %c0_66] : memref<16x1x128xf32, #tpu.memory_space<vmem>>, vector<1x1x128xf32>
    %110 = vector.shape_cast %109 : vector<1x1x128xf32> to vector<1x128xf32>
    %111 = arith.addf %110, %107 : vector<1x128xf32>
    %112 = arith.index_cast %100 : i32 to index
    %c0_67 = arith.constant 0 : index
    %c0_68 = arith.constant 0 : index
    %113 = vector.load %arg18[%112, %c0_67, %c0_68] : memref<16x1x128xf32, #tpu.memory_space<vmem>>, vector<1x1x128xf32>
    %114 = vector.shape_cast %113 : vector<1x1x128xf32> to vector<1x128xf32>
    %115 = vector.shape_cast %111 : vector<1x128xf32> to vector<1x1x128xf32>
    tpu.vector_store %arg18[%112, %c0_67, %c0_68], %115 {strides = array<i32>} : memref<16x1x128xf32, #tpu.memory_space<vmem>>, vector<1x1x128xf32>,
    %c2_69 = arith.constant 2 : index
    %116 = memref.load %arg0[%c2_69] : memref<32xi32, #tpu.memory_space<smem>>
    %c2_70 = arith.constant 2 : index
    %117 = memref.load %arg1[%c2_70] : memref<32xi32, #tpu.memory_space<smem>>
    %118 = arith.index_cast %116 : i32 to index
    %c0_71 = arith.constant 0 : index
    %c0_72 = arith.constant 0 : index
    %119 = vector.load %arg17[%118, %c0_71, %c0_72] : memref<16x1x128xf32, #tpu.memory_space<vmem>>, vector<1x1x128xf32>
    %120 = vector.shape_cast %119 : vector<1x1x128xf32> to vector<1x128xf32>
    %121 = vector.extract_strided_slice %15 {offsets = [2, 0], sizes = [1, 128], strides = [1, 1]} : vector<32x128xf32> to vector<1x128xf32>
    %122 = arith.addf %120, %121 : vector<1x128xf32>
    %cst_73 = arith.constant 0.000000e+00 : f32
    %123 = vector.broadcast %cst_73 : f32 to vector<1x128xf32>
    %124 = arith.maximumf %122, %123 : vector<1x128xf32>
    %125 = arith.index_cast %117 : i32 to index
    %c0_74 = arith.constant 0 : index
    %c0_75 = arith.constant 0 : index
    %126 = vector.load %arg18[%125, %c0_74, %c0_75] : memref<16x1x128xf32, #tpu.memory_space<vmem>>, vector<1x1x128xf32>
    %127 = vector.shape_cast %126 : vector<1x1x128xf32> to vector<1x128xf32>
    %128 = arith.addf %127, %124 : vector<1x128xf32>
    %129 = arith.index_cast %117 : i32 to index
    %c0_76 = arith.constant 0 : index
    %c0_77 = arith.constant 0 : index
    %130 = vector.load %arg18[%129, %c0_76, %c0_77] : memref<16x1x128xf32, #tpu.memory_space<vmem>>, vector<1x1x128xf32>
    %131 = vector.shape_cast %130 : vector<1x1x128xf32> to vector<1x128xf32>
    %132 = vector.shape_cast %128 : vector<1x128xf32> to vector<1x1x128xf32>
    tpu.vector_store %arg18[%129, %c0_76, %c0_77], %132 {strides = array<i32>} : memref<16x1x128xf32, #tpu.memory_space<vmem>>, vector<1x1x128xf32>,
    %c3_78 = arith.constant 3 : index
    %133 = memref.load %arg0[%c3_78] : memref<32xi32, #tpu.memory_space<smem>>
    %c3_79 = arith.constant 3 : index
    %134 = memref.load %arg1[%c3_79] : memref<32xi32, #tpu.memory_space<smem>>
    %135 = arith.index_cast %133 : i32 to index
    %c0_80 = arith.constant 0 : index
    %c0_81 = arith.constant 0 : index
    %136 = vector.load %arg17[%135, %c0_80, %c0_81] : memref<16x1x128xf32, #tpu.memory_space<vmem>>, vector<1x1x128xf32>
    %137 = vector.shape_cast %136 : vector<1x1x128xf32> to vector<1x128xf32>
    %138 = vector.extract_strided_slice %15 {offsets = [3, 0], sizes = [1, 128], strides = [1, 1]} : vector<32x128xf32> to vector<1x128xf32>
    %139 = arith.addf %137, %138 : vector<1x128xf32>
    %cst_82 = arith.constant 0.000000e+00 : f32
    %140 = vector.broadcast %cst_82 : f32 to vector<1x128xf32>
    %141 = arith.maximumf %139, %140 : vector<1x128xf32>
    %142 = arith.index_cast %134 : i32 to index
    %c0_83 = arith.constant 0 : index
    %c0_84 = arith.constant 0 : index
    %143 = vector.load %arg18[%142, %c0_83, %c0_84] : memref<16x1x128xf32, #tpu.memory_space<vmem>>, vector<1x1x128xf32>
    %144 = vector.shape_cast %143 : vector<1x1x128xf32> to vector<1x128xf32>
    %145 = arith.addf %144, %141 : vector<1x128xf32>
    %146 = arith.index_cast %134 : i32 to index
    %c0_85 = arith.constant 0 : index
    %c0_86 = arith.constant 0 : index
    %147 = vector.load %arg18[%146, %c0_85, %c0_86] : memref<16x1x128xf32, #tpu.memory_space<vmem>>, vector<1x1x128xf32>
    %148 = vector.shape_cast %147 : vector<1x1x128xf32> to vector<1x128xf32>
    %149 = vector.shape_cast %145 : vector<1x128xf32> to vector<1x1x128xf32>
    tpu.vector_store %arg18[%146, %c0_85, %c0_86], %149 {strides = array<i32>} : memref<16x1x128xf32, #tpu.memory_space<vmem>>, vector<1x1x128xf32>,
    %c4_87 = arith.constant 4 : index
    %150 = memref.load %arg0[%c4_87] : memref<32xi32, #tpu.memory_space<smem>>
    %c4_88 = arith.constant 4 : index
    %151 = memref.load %arg1[%c4_88] : memref<32xi32, #tpu.memory_space<smem>>
    %152 = arith.index_cast %150 : i32 to index
    %c0_89 = arith.constant 0 : index
    %c0_90 = arith.constant 0 : index
    %153 = vector.load %arg17[%152, %c0_89, %c0_90] : memref<16x1x128xf32, #tpu.memory_space<vmem>>, vector<1x1x128xf32>
    %154 = vector.shape_cast %153 : vector<1x1x128xf32> to vector<1x128xf32>
    %155 = vector.extract_strided_slice %15 {offsets = [4, 0], sizes = [1, 128], strides = [1, 1]} : vector<32x128xf32> to vector<1x128xf32>
    %156 = arith.addf %154, %155 : vector<1x128xf32>
    %cst_91 = arith.constant 0.000000e+00 : f32
    %157 = vector.broadcast %cst_91 : f32 to vector<1x128xf32>
    %158 = arith.maximumf %156, %157 : vector<1x128xf32>
    %159 = arith.index_cast %151 : i32 to index
    %c0_92 = arith.constant 0 : index
    %c0_93 = arith.constant 0 : index
    %160 = vector.load %arg18[%159, %c0_92, %c0_93] : memref<16x1x128xf32, #tpu.memory_space<vmem>>, vector<1x1x128xf32>
    %161 = vector.shape_cast %160 : vector<1x1x128xf32> to vector<1x128xf32>
    %162 = arith.addf %161, %158 : vector<1x128xf32>
    %163 = arith.index_cast %151 : i32 to index
    %c0_94 = arith.constant 0 : index
    %c0_95 = arith.constant 0 : index
    %164 = vector.load %arg18[%163, %c0_94, %c0_95] : memref<16x1x128xf32, #tpu.memory_space<vmem>>, vector<1x1x128xf32>
    %165 = vector.shape_cast %164 : vector<1x1x128xf32> to vector<1x128xf32>
    %166 = vector.shape_cast %162 : vector<1x128xf32> to vector<1x1x128xf32>
    tpu.vector_store %arg18[%163, %c0_94, %c0_95], %166 {strides = array<i32>} : memref<16x1x128xf32, #tpu.memory_space<vmem>>, vector<1x1x128xf32>,
    %c5_96 = arith.constant 5 : index
    %167 = memref.load %arg0[%c5_96] : memref<32xi32, #tpu.memory_space<smem>>
    %c5_97 = arith.constant 5 : index
    %168 = memref.load %arg1[%c5_97] : memref<32xi32, #tpu.memory_space<smem>>
    %169 = arith.index_cast %167 : i32 to index
    %c0_98 = arith.constant 0 : index
    %c0_99 = arith.constant 0 : index
    %170 = vector.load %arg17[%169, %c0_98, %c0_99] : memref<16x1x128xf32, #tpu.memory_space<vmem>>, vector<1x1x128xf32>
    %171 = vector.shape_cast %170 : vector<1x1x128xf32> to vector<1x128xf32>
    %172 = vector.extract_strided_slice %15 {offsets = [5, 0], sizes = [1, 128], strides = [1, 1]} : vector<32x128xf32> to vector<1x128xf32>
    %173 = arith.addf %171, %172 : vector<1x128xf32>
    %cst_100 = arith.constant 0.000000e+00 : f32
    %174 = vector.broadcast %cst_100 : f32 to vector<1x128xf32>
    %175 = arith.maximumf %173, %174 : vector<1x128xf32>
    %176 = arith.index_cast %168 : i32 to index
    %c0_101 = arith.constant 0 : index
    %c0_102 = arith.constant 0 : index
    %177 = vector.load %arg18[%176, %c0_101, %c0_102] : memref<16x1x128xf32, #tpu.memory_space<vmem>>, vector<1x1x128xf32>
    %178 = vector.shape_cast %177 : vector<1x1x128xf32> to vector<1x128xf32>
    %179 = arith.addf %178, %175 : vector<1x128xf32>
    %180 = arith.index_cast %168 : i32 to index
    %c0_103 = arith.constant 0 : index
    %c0_104 = arith.constant 0 : index
    %181 = vector.load %arg18[%180, %c0_103, %c0_104] : memref<16x1x128xf32, #tpu.memory_space<vmem>>, vector<1x1x128xf32>
    %182 = vector.shape_cast %181 : vector<1x1x128xf32> to vector<1x128xf32>
    %183 = vector.shape_cast %179 : vector<1x128xf32> to vector<1x1x128xf32>
    tpu.vector_store %arg18[%180, %c0_103, %c0_104], %183 {strides = array<i32>} : memref<16x1x128xf32, #tpu.memory_space<vmem>>, vector<1x1x128xf32>,
    %c6_105 = arith.constant 6 : index
    %184 = memref.load %arg0[%c6_105] : memref<32xi32, #tpu.memory_space<smem>>
    %c6_106 = arith.constant 6 : index
    %185 = memref.load %arg1[%c6_106] : memref<32xi32, #tpu.memory_space<smem>>
    %186 = arith.index_cast %184 : i32 to index
    %c0_107 = arith.constant 0 : index
    %c0_108 = arith.constant 0 : index
    %187 = vector.load %arg17[%186, %c0_107, %c0_108] : memref<16x1x128xf32, #tpu.memory_space<vmem>>, vector<1x1x128xf32>
    %188 = vector.shape_cast %187 : vector<1x1x128xf32> to vector<1x128xf32>
    %189 = vector.extract_strided_slice %15 {offsets = [6, 0], sizes = [1, 128], strides = [1, 1]} : vector<32x128xf32> to vector<1x128xf32>
    %190 = arith.addf %188, %189 : vector<1x128xf32>
    %cst_109 = arith.constant 0.000000e+00 : f32
    %191 = vector.broadcast %cst_109 : f32 to vector<1x128xf32>
    %192 = arith.maximumf %190, %191 : vector<1x128xf32>
    %193 = arith.index_cast %185 : i32 to index
    %c0_110 = arith.constant 0 : index
    %c0_111 = arith.constant 0 : index
    %194 = vector.load %arg18[%193, %c0_110, %c0_111] : memref<16x1x128xf32, #tpu.memory_space<vmem>>, vector<1x1x128xf32>
    %195 = vector.shape_cast %194 : vector<1x1x128xf32> to vector<1x128xf32>
    %196 = arith.addf %195, %192 : vector<1x128xf32>
    %197 = arith.index_cast %185 : i32 to index
    %c0_112 = arith.constant 0 : index
    %c0_113 = arith.constant 0 : index
    %198 = vector.load %arg18[%197, %c0_112, %c0_113] : memref<16x1x128xf32, #tpu.memory_space<vmem>>, vector<1x1x128xf32>
    %199 = vector.shape_cast %198 : vector<1x1x128xf32> to vector<1x128xf32>
    %200 = vector.shape_cast %196 : vector<1x128xf32> to vector<1x1x128xf32>
    tpu.vector_store %arg18[%197, %c0_112, %c0_113], %200 {strides = array<i32>} : memref<16x1x128xf32, #tpu.memory_space<vmem>>, vector<1x1x128xf32>,
    %c7_114 = arith.constant 7 : index
    %201 = memref.load %arg0[%c7_114] : memref<32xi32, #tpu.memory_space<smem>>
    %c7_115 = arith.constant 7 : index
    %202 = memref.load %arg1[%c7_115] : memref<32xi32, #tpu.memory_space<smem>>
    %203 = arith.index_cast %201 : i32 to index
    %c0_116 = arith.constant 0 : index
    %c0_117 = arith.constant 0 : index
    %204 = vector.load %arg17[%203, %c0_116, %c0_117] : memref<16x1x128xf32, #tpu.memory_space<vmem>>, vector<1x1x128xf32>
    %205 = vector.shape_cast %204 : vector<1x1x128xf32> to vector<1x128xf32>
    %206 = vector.extract_strided_slice %15 {offsets = [7, 0], sizes = [1, 128], strides = [1, 1]} : vector<32x128xf32> to vector<1x128xf32>
    %207 = arith.addf %205, %206 : vector<1x128xf32>
    %cst_118 = arith.constant 0.000000e+00 : f32
    %208 = vector.broadcast %cst_118 : f32 to vector<1x128xf32>
    %209 = arith.maximumf %207, %208 : vector<1x128xf32>
    %210 = arith.index_cast %202 : i32 to index
    %c0_119 = arith.constant 0 : index
    %c0_120 = arith.constant 0 : index
    %211 = vector.load %arg18[%210, %c0_119, %c0_120] : memref<16x1x128xf32, #tpu.memory_space<vmem>>, vector<1x1x128xf32>
    %212 = vector.shape_cast %211 : vector<1x1x128xf32> to vector<1x128xf32>
    %213 = arith.addf %212, %209 : vector<1x128xf32>
    %214 = arith.index_cast %202 : i32 to index
    %c0_121 = arith.constant 0 : index
    %c0_122 = arith.constant 0 : index
    %215 = vector.load %arg18[%214, %c0_121, %c0_122] : memref<16x1x128xf32, #tpu.memory_space<vmem>>, vector<1x1x128xf32>
    %216 = vector.shape_cast %215 : vector<1x1x128xf32> to vector<1x128xf32>
    %217 = vector.shape_cast %213 : vector<1x128xf32> to vector<1x1x128xf32>
    tpu.vector_store %arg18[%214, %c0_121, %c0_122], %217 {strides = array<i32>} : memref<16x1x128xf32, #tpu.memory_space<vmem>>, vector<1x1x128xf32>,
    %c8_123 = arith.constant 8 : index
    %218 = memref.load %arg0[%c8_123] : memref<32xi32, #tpu.memory_space<smem>>
    %c8_124 = arith.constant 8 : index
    %219 = memref.load %arg1[%c8_124] : memref<32xi32, #tpu.memory_space<smem>>
    %220 = arith.index_cast %218 : i32 to index
    %c0_125 = arith.constant 0 : index
    %c0_126 = arith.constant 0 : index
    %221 = vector.load %arg17[%220, %c0_125, %c0_126] : memref<16x1x128xf32, #tpu.memory_space<vmem>>, vector<1x1x128xf32>
    %222 = vector.shape_cast %221 : vector<1x1x128xf32> to vector<1x128xf32>
    %223 = vector.extract_strided_slice %15 {offsets = [8, 0], sizes = [1, 128], strides = [1, 1]} : vector<32x128xf32> to vector<1x128xf32>
    %224 = arith.addf %222, %223 : vector<1x128xf32>
    %cst_127 = arith.constant 0.000000e+00 : f32
    %225 = vector.broadcast %cst_127 : f32 to vector<1x128xf32>
    %226 = arith.maximumf %224, %225 : vector<1x128xf32>
    %227 = arith.index_cast %219 : i32 to index
    %c0_128 = arith.constant 0 : index
    %c0_129 = arith.constant 0 : index
    %228 = vector.load %arg18[%227, %c0_128, %c0_129] : memref<16x1x128xf32, #tpu.memory_space<vmem>>, vector<1x1x128xf32>
    %229 = vector.shape_cast %228 : vector<1x1x128xf32> to vector<1x128xf32>
    %230 = arith.addf %229, %226 : vector<1x128xf32>
    %231 = arith.index_cast %219 : i32 to index
    %c0_130 = arith.constant 0 : index
    %c0_131 = arith.constant 0 : index
    %232 = vector.load %arg18[%231, %c0_130, %c0_131] : memref<16x1x128xf32, #tpu.memory_space<vmem>>, vector<1x1x128xf32>
    %233 = vector.shape_cast %232 : vector<1x1x128xf32> to vector<1x128xf32>
    %234 = vector.shape_cast %230 : vector<1x128xf32> to vector<1x1x128xf32>
    tpu.vector_store %arg18[%231, %c0_130, %c0_131], %234 {strides = array<i32>} : memref<16x1x128xf32, #tpu.memory_space<vmem>>, vector<1x1x128xf32>,
    %c9_132 = arith.constant 9 : index
    %235 = memref.load %arg0[%c9_132] : memref<32xi32, #tpu.memory_space<smem>>
    %c9_133 = arith.constant 9 : index
    %236 = memref.load %arg1[%c9_133] : memref<32xi32, #tpu.memory_space<smem>>
    %237 = arith.index_cast %235 : i32 to index
    %c0_134 = arith.constant 0 : index
    %c0_135 = arith.constant 0 : index
    %238 = vector.load %arg17[%237, %c0_134, %c0_135] : memref<16x1x128xf32, #tpu.memory_space<vmem>>, vector<1x1x128xf32>
    %239 = vector.shape_cast %238 : vector<1x1x128xf32> to vector<1x128xf32>
    %240 = vector.extract_strided_slice %15 {offsets = [9, 0], sizes = [1, 128], strides = [1, 1]} : vector<32x128xf32> to vector<1x128xf32>
    %241 = arith.addf %239, %240 : vector<1x128xf32>
    %cst_136 = arith.constant 0.000000e+00 : f32
    %242 = vector.broadcast %cst_136 : f32 to vector<1x128xf32>
    %243 = arith.maximumf %241, %242 : vector<1x128xf32>
    %244 = arith.index_cast %236 : i32 to index
    %c0_137 = arith.constant 0 : index
    %c0_138 = arith.constant 0 : index
    %245 = vector.load %arg18[%244, %c0_137, %c0_138] : memref<16x1x128xf32, #tpu.memory_space<vmem>>, vector<1x1x128xf32>
    %246 = vector.shape_cast %245 : vector<1x1x128xf32> to vector<1x128xf32>
    %247 = arith.addf %246, %243 : vector<1x128xf32>
    %248 = arith.index_cast %236 : i32 to index
    %c0_139 = arith.constant 0 : index
    %c0_140 = arith.constant 0 : index
    %249 = vector.load %arg18[%248, %c0_139, %c0_140] : memref<16x1x128xf32, #tpu.memory_space<vmem>>, vector<1x1x128xf32>
    %250 = vector.shape_cast %249 : vector<1x1x128xf32> to vector<1x128xf32>
    %251 = vector.shape_cast %247 : vector<1x128xf32> to vector<1x1x128xf32>
    tpu.vector_store %arg18[%248, %c0_139, %c0_140], %251 {strides = array<i32>} : memref<16x1x128xf32, #tpu.memory_space<vmem>>, vector<1x1x128xf32>,
    %c10_141 = arith.constant 10 : index
    %252 = memref.load %arg0[%c10_141] : memref<32xi32, #tpu.memory_space<smem>>
    %c10_142 = arith.constant 10 : index
    %253 = memref.load %arg1[%c10_142] : memref<32xi32, #tpu.memory_space<smem>>
    %254 = arith.index_cast %252 : i32 to index
    %c0_143 = arith.constant 0 : index
    %c0_144 = arith.constant 0 : index
    %255 = vector.load %arg17[%254, %c0_143, %c0_144] : memref<16x1x128xf32, #tpu.memory_space<vmem>>, vector<1x1x128xf32>
    %256 = vector.shape_cast %255 : vector<1x1x128xf32> to vector<1x128xf32>
    %257 = vector.extract_strided_slice %15 {offsets = [10, 0], sizes = [1, 128], strides = [1, 1]} : vector<32x128xf32> to vector<1x128xf32>
    %258 = arith.addf %256, %257 : vector<1x128xf32>
    %cst_145 = arith.constant 0.000000e+00 : f32
    %259 = vector.broadcast %cst_145 : f32 to vector<1x128xf32>
    %260 = arith.maximumf %258, %259 : vector<1x128xf32>
    %261 = arith.index_cast %253 : i32 to index
    %c0_146 = arith.constant 0 : index
    %c0_147 = arith.constant 0 : index
    %262 = vector.load %arg18[%261, %c0_146, %c0_147] : memref<16x1x128xf32, #tpu.memory_space<vmem>>, vector<1x1x128xf32>
    %263 = vector.shape_cast %262 : vector<1x1x128xf32> to vector<1x128xf32>
    %264 = arith.addf %263, %260 : vector<1x128xf32>
    %265 = arith.index_cast %253 : i32 to index
    %c0_148 = arith.constant 0 : index
    %c0_149 = arith.constant 0 : index
    %266 = vector.load %arg18[%265, %c0_148, %c0_149] : memref<16x1x128xf32, #tpu.memory_space<vmem>>, vector<1x1x128xf32>
    %267 = vector.shape_cast %266 : vector<1x1x128xf32> to vector<1x128xf32>
    %268 = vector.shape_cast %264 : vector<1x128xf32> to vector<1x1x128xf32>
    tpu.vector_store %arg18[%265, %c0_148, %c0_149], %268 {strides = array<i32>} : memref<16x1x128xf32, #tpu.memory_space<vmem>>, vector<1x1x128xf32>,
    %c11_150 = arith.constant 11 : index
    %269 = memref.load %arg0[%c11_150] : memref<32xi32, #tpu.memory_space<smem>>
    %c11_151 = arith.constant 11 : index
    %270 = memref.load %arg1[%c11_151] : memref<32xi32, #tpu.memory_space<smem>>
    %271 = arith.index_cast %269 : i32 to index
    %c0_152 = arith.constant 0 : index
    %c0_153 = arith.constant 0 : index
    %272 = vector.load %arg17[%271, %c0_152, %c0_153] : memref<16x1x128xf32, #tpu.memory_space<vmem>>, vector<1x1x128xf32>
    %273 = vector.shape_cast %272 : vector<1x1x128xf32> to vector<1x128xf32>
    %274 = vector.extract_strided_slice %15 {offsets = [11, 0], sizes = [1, 128], strides = [1, 1]} : vector<32x128xf32> to vector<1x128xf32>
    %275 = arith.addf %273, %274 : vector<1x128xf32>
    %cst_154 = arith.constant 0.000000e+00 : f32
    %276 = vector.broadcast %cst_154 : f32 to vector<1x128xf32>
    %277 = arith.maximumf %275, %276 : vector<1x128xf32>
    %278 = arith.index_cast %270 : i32 to index
    %c0_155 = arith.constant 0 : index
    %c0_156 = arith.constant 0 : index
    %279 = vector.load %arg18[%278, %c0_155, %c0_156] : memref<16x1x128xf32, #tpu.memory_space<vmem>>, vector<1x1x128xf32>
    %280 = vector.shape_cast %279 : vector<1x1x128xf32> to vector<1x128xf32>
    %281 = arith.addf %280, %277 : vector<1x128xf32>
    %282 = arith.index_cast %270 : i32 to index
    %c0_157 = arith.constant 0 : index
    %c0_158 = arith.constant 0 : index
    %283 = vector.load %arg18[%282, %c0_157, %c0_158] : memref<16x1x128xf32, #tpu.memory_space<vmem>>, vector<1x1x128xf32>
    %284 = vector.shape_cast %283 : vector<1x1x128xf32> to vector<1x128xf32>
    %285 = vector.shape_cast %281 : vector<1x128xf32> to vector<1x1x128xf32>
    tpu.vector_store %arg18[%282, %c0_157, %c0_158], %285 {strides = array<i32>} : memref<16x1x128xf32, #tpu.memory_space<vmem>>, vector<1x1x128xf32>,
    %c12_159 = arith.constant 12 : index
    %286 = memref.load %arg0[%c12_159] : memref<32xi32, #tpu.memory_space<smem>>
    %c12_160 = arith.constant 12 : index
    %287 = memref.load %arg1[%c12_160] : memref<32xi32, #tpu.memory_space<smem>>
    %288 = arith.index_cast %286 : i32 to index
    %c0_161 = arith.constant 0 : index
    %c0_162 = arith.constant 0 : index
    %289 = vector.load %arg17[%288, %c0_161, %c0_162] : memref<16x1x128xf32, #tpu.memory_space<vmem>>, vector<1x1x128xf32>
    %290 = vector.shape_cast %289 : vector<1x1x128xf32> to vector<1x128xf32>
    %291 = vector.extract_strided_slice %15 {offsets = [12, 0], sizes = [1, 128], strides = [1, 1]} : vector<32x128xf32> to vector<1x128xf32>
    %292 = arith.addf %290, %291 : vector<1x128xf32>
    %cst_163 = arith.constant 0.000000e+00 : f32
    %293 = vector.broadcast %cst_163 : f32 to vector<1x128xf32>
    %294 = arith.maximumf %292, %293 : vector<1x128xf32>
    %295 = arith.index_cast %287 : i32 to index
    %c0_164 = arith.constant 0 : index
    %c0_165 = arith.constant 0 : index
    %296 = vector.load %arg18[%295, %c0_164, %c0_165] : memref<16x1x128xf32, #tpu.memory_space<vmem>>, vector<1x1x128xf32>
    %297 = vector.shape_cast %296 : vector<1x1x128xf32> to vector<1x128xf32>
    %298 = arith.addf %297, %294 : vector<1x128xf32>
    %299 = arith.index_cast %287 : i32 to index
    %c0_166 = arith.constant 0 : index
    %c0_167 = arith.constant 0 : index
    %300 = vector.load %arg18[%299, %c0_166, %c0_167] : memref<16x1x128xf32, #tpu.memory_space<vmem>>, vector<1x1x128xf32>
    %301 = vector.shape_cast %300 : vector<1x1x128xf32> to vector<1x128xf32>
    %302 = vector.shape_cast %298 : vector<1x128xf32> to vector<1x1x128xf32>
    tpu.vector_store %arg18[%299, %c0_166, %c0_167], %302 {strides = array<i32>} : memref<16x1x128xf32, #tpu.memory_space<vmem>>, vector<1x1x128xf32>,
    %c13_168 = arith.constant 13 : index
    %303 = memref.load %arg0[%c13_168] : memref<32xi32, #tpu.memory_space<smem>>
    %c13_169 = arith.constant 13 : index
    %304 = memref.load %arg1[%c13_169] : memref<32xi32, #tpu.memory_space<smem>>
    %305 = arith.index_cast %303 : i32 to index
    %c0_170 = arith.constant 0 : index
    %c0_171 = arith.constant 0 : index
    %306 = vector.load %arg17[%305, %c0_170, %c0_171] : memref<16x1x128xf32, #tpu.memory_space<vmem>>, vector<1x1x128xf32>
    %307 = vector.shape_cast %306 : vector<1x1x128xf32> to vector<1x128xf32>
    %308 = vector.extract_strided_slice %15 {offsets = [13, 0], sizes = [1, 128], strides = [1, 1]} : vector<32x128xf32> to vector<1x128xf32>
    %309 = arith.addf %307, %308 : vector<1x128xf32>
    %cst_172 = arith.constant 0.000000e+00 : f32
    %310 = vector.broadcast %cst_172 : f32 to vector<1x128xf32>
    %311 = arith.maximumf %309, %310 : vector<1x128xf32>
    %312 = arith.index_cast %304 : i32 to index
    %c0_173 = arith.constant 0 : index
    %c0_174 = arith.constant 0 : index
    %313 = vector.load %arg18[%312, %c0_173, %c0_174] : memref<16x1x128xf32, #tpu.memory_space<vmem>>, vector<1x1x128xf32>
    %314 = vector.shape_cast %313 : vector<1x1x128xf32> to vector<1x128xf32>
    %315 = arith.addf %314, %311 : vector<1x128xf32>
    %316 = arith.index_cast %304 : i32 to index
    %c0_175 = arith.constant 0 : index
    %c0_176 = arith.constant 0 : index
    %317 = vector.load %arg18[%316, %c0_175, %c0_176] : memref<16x1x128xf32, #tpu.memory_space<vmem>>, vector<1x1x128xf32>
    %318 = vector.shape_cast %317 : vector<1x1x128xf32> to vector<1x128xf32>
    %319 = vector.shape_cast %315 : vector<1x128xf32> to vector<1x1x128xf32>
    tpu.vector_store %arg18[%316, %c0_175, %c0_176], %319 {strides = array<i32>} : memref<16x1x128xf32, #tpu.memory_space<vmem>>, vector<1x1x128xf32>,
    %c14_177 = arith.constant 14 : index
    %320 = memref.load %arg0[%c14_177] : memref<32xi32, #tpu.memory_space<smem>>
    %c14_178 = arith.constant 14 : index
    %321 = memref.load %arg1[%c14_178] : memref<32xi32, #tpu.memory_space<smem>>
    %322 = arith.index_cast %320 : i32 to index
    %c0_179 = arith.constant 0 : index
    %c0_180 = arith.constant 0 : index
    %323 = vector.load %arg17[%322, %c0_179, %c0_180] : memref<16x1x128xf32, #tpu.memory_space<vmem>>, vector<1x1x128xf32>
    %324 = vector.shape_cast %323 : vector<1x1x128xf32> to vector<1x128xf32>
    %325 = vector.extract_strided_slice %15 {offsets = [14, 0], sizes = [1, 128], strides = [1, 1]} : vector<32x128xf32> to vector<1x128xf32>
    %326 = arith.addf %324, %325 : vector<1x128xf32>
    %cst_181 = arith.constant 0.000000e+00 : f32
    %327 = vector.broadcast %cst_181 : f32 to vector<1x128xf32>
    %328 = arith.maximumf %326, %327 : vector<1x128xf32>
    %329 = arith.index_cast %321 : i32 to index
    %c0_182 = arith.constant 0 : index
    %c0_183 = arith.constant 0 : index
    %330 = vector.load %arg18[%329, %c0_182, %c0_183] : memref<16x1x128xf32, #tpu.memory_space<vmem>>, vector<1x1x128xf32>
    %331 = vector.shape_cast %330 : vector<1x1x128xf32> to vector<1x128xf32>
    %332 = arith.addf %331, %328 : vector<1x128xf32>
    %333 = arith.index_cast %321 : i32 to index
    %c0_184 = arith.constant 0 : index
    %c0_185 = arith.constant 0 : index
    %334 = vector.load %arg18[%333, %c0_184, %c0_185] : memref<16x1x128xf32, #tpu.memory_space<vmem>>, vector<1x1x128xf32>
    %335 = vector.shape_cast %334 : vector<1x1x128xf32> to vector<1x128xf32>
    %336 = vector.shape_cast %332 : vector<1x128xf32> to vector<1x1x128xf32>
    tpu.vector_store %arg18[%333, %c0_184, %c0_185], %336 {strides = array<i32>} : memref<16x1x128xf32, #tpu.memory_space<vmem>>, vector<1x1x128xf32>,
    %c15_186 = arith.constant 15 : index
    %337 = memref.load %arg0[%c15_186] : memref<32xi32, #tpu.memory_space<smem>>
    %c15_187 = arith.constant 15 : index
    %338 = memref.load %arg1[%c15_187] : memref<32xi32, #tpu.memory_space<smem>>
    %339 = arith.index_cast %337 : i32 to index
    %c0_188 = arith.constant 0 : index
    %c0_189 = arith.constant 0 : index
    %340 = vector.load %arg17[%339, %c0_188, %c0_189] : memref<16x1x128xf32, #tpu.memory_space<vmem>>, vector<1x1x128xf32>
    %341 = vector.shape_cast %340 : vector<1x1x128xf32> to vector<1x128xf32>
    %342 = vector.extract_strided_slice %15 {offsets = [15, 0], sizes = [1, 128], strides = [1, 1]} : vector<32x128xf32> to vector<1x128xf32>
    %343 = arith.addf %341, %342 : vector<1x128xf32>
    %cst_190 = arith.constant 0.000000e+00 : f32
    %344 = vector.broadcast %cst_190 : f32 to vector<1x128xf32>
    %345 = arith.maximumf %343, %344 : vector<1x128xf32>
    %346 = arith.index_cast %338 : i32 to index
    %c0_191 = arith.constant 0 : index
    %c0_192 = arith.constant 0 : index
    %347 = vector.load %arg18[%346, %c0_191, %c0_192] : memref<16x1x128xf32, #tpu.memory_space<vmem>>, vector<1x1x128xf32>
    %348 = vector.shape_cast %347 : vector<1x1x128xf32> to vector<1x128xf32>
    %349 = arith.addf %348, %345 : vector<1x128xf32>
    %350 = arith.index_cast %338 : i32 to index
    %c0_193 = arith.constant 0 : index
    %c0_194 = arith.constant 0 : index
    %351 = vector.load %arg18[%350, %c0_193, %c0_194] : memref<16x1x128xf32, #tpu.memory_space<vmem>>, vector<1x1x128xf32>
    %352 = vector.shape_cast %351 : vector<1x1x128xf32> to vector<1x128xf32>
    %353 = vector.shape_cast %349 : vector<1x128xf32> to vector<1x1x128xf32>
    tpu.vector_store %arg18[%350, %c0_193, %c0_194], %353 {strides = array<i32>} : memref<16x1x128xf32, #tpu.memory_space<vmem>>, vector<1x1x128xf32>,
    %c16 = arith.constant 16 : index
    %354 = memref.load %arg0[%c16] : memref<32xi32, #tpu.memory_space<smem>>
    %c16_195 = arith.constant 16 : index
    %355 = memref.load %arg1[%c16_195] : memref<32xi32, #tpu.memory_space<smem>>
    %356 = arith.index_cast %354 : i32 to index
    %c0_196 = arith.constant 0 : index
    %c0_197 = arith.constant 0 : index
    %357 = vector.load %arg17[%356, %c0_196, %c0_197] : memref<16x1x128xf32, #tpu.memory_space<vmem>>, vector<1x1x128xf32>
    %358 = vector.shape_cast %357 : vector<1x1x128xf32> to vector<1x128xf32>
    %359 = vector.extract_strided_slice %15 {offsets = [16, 0], sizes = [1, 128], strides = [1, 1]} : vector<32x128xf32> to vector<1x128xf32>
    %360 = arith.addf %358, %359 : vector<1x128xf32>
    %cst_198 = arith.constant 0.000000e+00 : f32
    %361 = vector.broadcast %cst_198 : f32 to vector<1x128xf32>
    %362 = arith.maximumf %360, %361 : vector<1x128xf32>
    %363 = arith.index_cast %355 : i32 to index
    %c0_199 = arith.constant 0 : index
    %c0_200 = arith.constant 0 : index
    %364 = vector.load %arg18[%363, %c0_199, %c0_200] : memref<16x1x128xf32, #tpu.memory_space<vmem>>, vector<1x1x128xf32>
    %365 = vector.shape_cast %364 : vector<1x1x128xf32> to vector<1x128xf32>
    %366 = arith.addf %365, %362 : vector<1x128xf32>
    %367 = arith.index_cast %355 : i32 to index
    %c0_201 = arith.constant 0 : index
    %c0_202 = arith.constant 0 : index
    %368 = vector.load %arg18[%367, %c0_201, %c0_202] : memref<16x1x128xf32, #tpu.memory_space<vmem>>, vector<1x1x128xf32>
    %369 = vector.shape_cast %368 : vector<1x1x128xf32> to vector<1x128xf32>
    %370 = vector.shape_cast %366 : vector<1x128xf32> to vector<1x1x128xf32>
    tpu.vector_store %arg18[%367, %c0_201, %c0_202], %370 {strides = array<i32>} : memref<16x1x128xf32, #tpu.memory_space<vmem>>, vector<1x1x128xf32>,
    %c17 = arith.constant 17 : index
    %371 = memref.load %arg0[%c17] : memref<32xi32, #tpu.memory_space<smem>>
    %c17_203 = arith.constant 17 : index
    %372 = memref.load %arg1[%c17_203] : memref<32xi32, #tpu.memory_space<smem>>
    %373 = arith.index_cast %371 : i32 to index
    %c0_204 = arith.constant 0 : index
    %c0_205 = arith.constant 0 : index
    %374 = vector.load %arg17[%373, %c0_204, %c0_205] : memref<16x1x128xf32, #tpu.memory_space<vmem>>, vector<1x1x128xf32>
    %375 = vector.shape_cast %374 : vector<1x1x128xf32> to vector<1x128xf32>
    %376 = vector.extract_strided_slice %15 {offsets = [17, 0], sizes = [1, 128], strides = [1, 1]} : vector<32x128xf32> to vector<1x128xf32>
    %377 = arith.addf %375, %376 : vector<1x128xf32>
    %cst_206 = arith.constant 0.000000e+00 : f32
    %378 = vector.broadcast %cst_206 : f32 to vector<1x128xf32>
    %379 = arith.maximumf %377, %378 : vector<1x128xf32>
    %380 = arith.index_cast %372 : i32 to index
    %c0_207 = arith.constant 0 : index
    %c0_208 = arith.constant 0 : index
    %381 = vector.load %arg18[%380, %c0_207, %c0_208] : memref<16x1x128xf32, #tpu.memory_space<vmem>>, vector<1x1x128xf32>
    %382 = vector.shape_cast %381 : vector<1x1x128xf32> to vector<1x128xf32>
    %383 = arith.addf %382, %379 : vector<1x128xf32>
    %384 = arith.index_cast %372 : i32 to index
    %c0_209 = arith.constant 0 : index
    %c0_210 = arith.constant 0 : index
    %385 = vector.load %arg18[%384, %c0_209, %c0_210] : memref<16x1x128xf32, #tpu.memory_space<vmem>>, vector<1x1x128xf32>
    %386 = vector.shape_cast %385 : vector<1x1x128xf32> to vector<1x128xf32>
    %387 = vector.shape_cast %383 : vector<1x128xf32> to vector<1x1x128xf32>
    tpu.vector_store %arg18[%384, %c0_209, %c0_210], %387 {strides = array<i32>} : memref<16x1x128xf32, #tpu.memory_space<vmem>>, vector<1x1x128xf32>,
    %c18 = arith.constant 18 : index
    %388 = memref.load %arg0[%c18] : memref<32xi32, #tpu.memory_space<smem>>
    %c18_211 = arith.constant 18 : index
    %389 = memref.load %arg1[%c18_211] : memref<32xi32, #tpu.memory_space<smem>>
    %390 = arith.index_cast %388 : i32 to index
    %c0_212 = arith.constant 0 : index
    %c0_213 = arith.constant 0 : index
    %391 = vector.load %arg17[%390, %c0_212, %c0_213] : memref<16x1x128xf32, #tpu.memory_space<vmem>>, vector<1x1x128xf32>
    %392 = vector.shape_cast %391 : vector<1x1x128xf32> to vector<1x128xf32>
    %393 = vector.extract_strided_slice %15 {offsets = [18, 0], sizes = [1, 128], strides = [1, 1]} : vector<32x128xf32> to vector<1x128xf32>
    %394 = arith.addf %392, %393 : vector<1x128xf32>
    %cst_214 = arith.constant 0.000000e+00 : f32
    %395 = vector.broadcast %cst_214 : f32 to vector<1x128xf32>
    %396 = arith.maximumf %394, %395 : vector<1x128xf32>
    %397 = arith.index_cast %389 : i32 to index
    %c0_215 = arith.constant 0 : index
    %c0_216 = arith.constant 0 : index
    %398 = vector.load %arg18[%397, %c0_215, %c0_216] : memref<16x1x128xf32, #tpu.memory_space<vmem>>, vector<1x1x128xf32>
    %399 = vector.shape_cast %398 : vector<1x1x128xf32> to vector<1x128xf32>
    %400 = arith.addf %399, %396 : vector<1x128xf32>
    %401 = arith.index_cast %389 : i32 to index
    %c0_217 = arith.constant 0 : index
    %c0_218 = arith.constant 0 : index
    %402 = vector.load %arg18[%401, %c0_217, %c0_218] : memref<16x1x128xf32, #tpu.memory_space<vmem>>, vector<1x1x128xf32>
    %403 = vector.shape_cast %402 : vector<1x1x128xf32> to vector<1x128xf32>
    %404 = vector.shape_cast %400 : vector<1x128xf32> to vector<1x1x128xf32>
    tpu.vector_store %arg18[%401, %c0_217, %c0_218], %404 {strides = array<i32>} : memref<16x1x128xf32, #tpu.memory_space<vmem>>, vector<1x1x128xf32>,
    %c19 = arith.constant 19 : index
    %405 = memref.load %arg0[%c19] : memref<32xi32, #tpu.memory_space<smem>>
    %c19_219 = arith.constant 19 : index
    %406 = memref.load %arg1[%c19_219] : memref<32xi32, #tpu.memory_space<smem>>
    %407 = arith.index_cast %405 : i32 to index
    %c0_220 = arith.constant 0 : index
    %c0_221 = arith.constant 0 : index
    %408 = vector.load %arg17[%407, %c0_220, %c0_221] : memref<16x1x128xf32, #tpu.memory_space<vmem>>, vector<1x1x128xf32>
    %409 = vector.shape_cast %408 : vector<1x1x128xf32> to vector<1x128xf32>
    %410 = vector.extract_strided_slice %15 {offsets = [19, 0], sizes = [1, 128], strides = [1, 1]} : vector<32x128xf32> to vector<1x128xf32>
    %411 = arith.addf %409, %410 : vector<1x128xf32>
    %cst_222 = arith.constant 0.000000e+00 : f32
    %412 = vector.broadcast %cst_222 : f32 to vector<1x128xf32>
    %413 = arith.maximumf %411, %412 : vector<1x128xf32>
    %414 = arith.index_cast %406 : i32 to index
    %c0_223 = arith.constant 0 : index
    %c0_224 = arith.constant 0 : index
    %415 = vector.load %arg18[%414, %c0_223, %c0_224] : memref<16x1x128xf32, #tpu.memory_space<vmem>>, vector<1x1x128xf32>
    %416 = vector.shape_cast %415 : vector<1x1x128xf32> to vector<1x128xf32>
    %417 = arith.addf %416, %413 : vector<1x128xf32>
    %418 = arith.index_cast %406 : i32 to index
    %c0_225 = arith.constant 0 : index
    %c0_226 = arith.constant 0 : index
    %419 = vector.load %arg18[%418, %c0_225, %c0_226] : memref<16x1x128xf32, #tpu.memory_space<vmem>>, vector<1x1x128xf32>
    %420 = vector.shape_cast %419 : vector<1x1x128xf32> to vector<1x128xf32>
    %421 = vector.shape_cast %417 : vector<1x128xf32> to vector<1x1x128xf32>
    tpu.vector_store %arg18[%418, %c0_225, %c0_226], %421 {strides = array<i32>} : memref<16x1x128xf32, #tpu.memory_space<vmem>>, vector<1x1x128xf32>,
    %c20 = arith.constant 20 : index
    %422 = memref.load %arg0[%c20] : memref<32xi32, #tpu.memory_space<smem>>
    %c20_227 = arith.constant 20 : index
    %423 = memref.load %arg1[%c20_227] : memref<32xi32, #tpu.memory_space<smem>>
    %424 = arith.index_cast %422 : i32 to index
    %c0_228 = arith.constant 0 : index
    %c0_229 = arith.constant 0 : index
    %425 = vector.load %arg17[%424, %c0_228, %c0_229] : memref<16x1x128xf32, #tpu.memory_space<vmem>>, vector<1x1x128xf32>
    %426 = vector.shape_cast %425 : vector<1x1x128xf32> to vector<1x128xf32>
    %427 = vector.extract_strided_slice %15 {offsets = [20, 0], sizes = [1, 128], strides = [1, 1]} : vector<32x128xf32> to vector<1x128xf32>
    %428 = arith.addf %426, %427 : vector<1x128xf32>
    %cst_230 = arith.constant 0.000000e+00 : f32
    %429 = vector.broadcast %cst_230 : f32 to vector<1x128xf32>
    %430 = arith.maximumf %428, %429 : vector<1x128xf32>
    %431 = arith.index_cast %423 : i32 to index
    %c0_231 = arith.constant 0 : index
    %c0_232 = arith.constant 0 : index
    %432 = vector.load %arg18[%431, %c0_231, %c0_232] : memref<16x1x128xf32, #tpu.memory_space<vmem>>, vector<1x1x128xf32>
    %433 = vector.shape_cast %432 : vector<1x1x128xf32> to vector<1x128xf32>
    %434 = arith.addf %433, %430 : vector<1x128xf32>
    %435 = arith.index_cast %423 : i32 to index
    %c0_233 = arith.constant 0 : index
    %c0_234 = arith.constant 0 : index
    %436 = vector.load %arg18[%435, %c0_233, %c0_234] : memref<16x1x128xf32, #tpu.memory_space<vmem>>, vector<1x1x128xf32>
    %437 = vector.shape_cast %436 : vector<1x1x128xf32> to vector<1x128xf32>
    %438 = vector.shape_cast %434 : vector<1x128xf32> to vector<1x1x128xf32>
    tpu.vector_store %arg18[%435, %c0_233, %c0_234], %438 {strides = array<i32>} : memref<16x1x128xf32, #tpu.memory_space<vmem>>, vector<1x1x128xf32>,
    %c21 = arith.constant 21 : index
    %439 = memref.load %arg0[%c21] : memref<32xi32, #tpu.memory_space<smem>>
    %c21_235 = arith.constant 21 : index
    %440 = memref.load %arg1[%c21_235] : memref<32xi32, #tpu.memory_space<smem>>
    %441 = arith.index_cast %439 : i32 to index
    %c0_236 = arith.constant 0 : index
    %c0_237 = arith.constant 0 : index
    %442 = vector.load %arg17[%441, %c0_236, %c0_237] : memref<16x1x128xf32, #tpu.memory_space<vmem>>, vector<1x1x128xf32>
    %443 = vector.shape_cast %442 : vector<1x1x128xf32> to vector<1x128xf32>
    %444 = vector.extract_strided_slice %15 {offsets = [21, 0], sizes = [1, 128], strides = [1, 1]} : vector<32x128xf32> to vector<1x128xf32>
    %445 = arith.addf %443, %444 : vector<1x128xf32>
    %cst_238 = arith.constant 0.000000e+00 : f32
    %446 = vector.broadcast %cst_238 : f32 to vector<1x128xf32>
    %447 = arith.maximumf %445, %446 : vector<1x128xf32>
    %448 = arith.index_cast %440 : i32 to index
    %c0_239 = arith.constant 0 : index
    %c0_240 = arith.constant 0 : index
    %449 = vector.load %arg18[%448, %c0_239, %c0_240] : memref<16x1x128xf32, #tpu.memory_space<vmem>>, vector<1x1x128xf32>
    %450 = vector.shape_cast %449 : vector<1x1x128xf32> to vector<1x128xf32>
    %451 = arith.addf %450, %447 : vector<1x128xf32>
    %452 = arith.index_cast %440 : i32 to index
    %c0_241 = arith.constant 0 : index
    %c0_242 = arith.constant 0 : index
    %453 = vector.load %arg18[%452, %c0_241, %c0_242] : memref<16x1x128xf32, #tpu.memory_space<vmem>>, vector<1x1x128xf32>
    %454 = vector.shape_cast %453 : vector<1x1x128xf32> to vector<1x128xf32>
    %455 = vector.shape_cast %451 : vector<1x128xf32> to vector<1x1x128xf32>
    tpu.vector_store %arg18[%452, %c0_241, %c0_242], %455 {strides = array<i32>} : memref<16x1x128xf32, #tpu.memory_space<vmem>>, vector<1x1x128xf32>,
    %c22 = arith.constant 22 : index
    %456 = memref.load %arg0[%c22] : memref<32xi32, #tpu.memory_space<smem>>
    %c22_243 = arith.constant 22 : index
    %457 = memref.load %arg1[%c22_243] : memref<32xi32, #tpu.memory_space<smem>>
    %458 = arith.index_cast %456 : i32 to index
    %c0_244 = arith.constant 0 : index
    %c0_245 = arith.constant 0 : index
    %459 = vector.load %arg17[%458, %c0_244, %c0_245] : memref<16x1x128xf32, #tpu.memory_space<vmem>>, vector<1x1x128xf32>
    %460 = vector.shape_cast %459 : vector<1x1x128xf32> to vector<1x128xf32>
    %461 = vector.extract_strided_slice %15 {offsets = [22, 0], sizes = [1, 128], strides = [1, 1]} : vector<32x128xf32> to vector<1x128xf32>
    %462 = arith.addf %460, %461 : vector<1x128xf32>
    %cst_246 = arith.constant 0.000000e+00 : f32
    %463 = vector.broadcast %cst_246 : f32 to vector<1x128xf32>
    %464 = arith.maximumf %462, %463 : vector<1x128xf32>
    %465 = arith.index_cast %457 : i32 to index
    %c0_247 = arith.constant 0 : index
    %c0_248 = arith.constant 0 : index
    %466 = vector.load %arg18[%465, %c0_247, %c0_248] : memref<16x1x128xf32, #tpu.memory_space<vmem>>, vector<1x1x128xf32>
    %467 = vector.shape_cast %466 : vector<1x1x128xf32> to vector<1x128xf32>
    %468 = arith.addf %467, %464 : vector<1x128xf32>
    %469 = arith.index_cast %457 : i32 to index
    %c0_249 = arith.constant 0 : index
    %c0_250 = arith.constant 0 : index
    %470 = vector.load %arg18[%469, %c0_249, %c0_250] : memref<16x1x128xf32, #tpu.memory_space<vmem>>, vector<1x1x128xf32>
    %471 = vector.shape_cast %470 : vector<1x1x128xf32> to vector<1x128xf32>
    %472 = vector.shape_cast %468 : vector<1x128xf32> to vector<1x1x128xf32>
    tpu.vector_store %arg18[%469, %c0_249, %c0_250], %472 {strides = array<i32>} : memref<16x1x128xf32, #tpu.memory_space<vmem>>, vector<1x1x128xf32>,
    %c23 = arith.constant 23 : index
    %473 = memref.load %arg0[%c23] : memref<32xi32, #tpu.memory_space<smem>>
    %c23_251 = arith.constant 23 : index
    %474 = memref.load %arg1[%c23_251] : memref<32xi32, #tpu.memory_space<smem>>
    %475 = arith.index_cast %473 : i32 to index
    %c0_252 = arith.constant 0 : index
    %c0_253 = arith.constant 0 : index
    %476 = vector.load %arg17[%475, %c0_252, %c0_253] : memref<16x1x128xf32, #tpu.memory_space<vmem>>, vector<1x1x128xf32>
    %477 = vector.shape_cast %476 : vector<1x1x128xf32> to vector<1x128xf32>
    %478 = vector.extract_strided_slice %15 {offsets = [23, 0], sizes = [1, 128], strides = [1, 1]} : vector<32x128xf32> to vector<1x128xf32>
    %479 = arith.addf %477, %478 : vector<1x128xf32>
    %cst_254 = arith.constant 0.000000e+00 : f32
    %480 = vector.broadcast %cst_254 : f32 to vector<1x128xf32>
    %481 = arith.maximumf %479, %480 : vector<1x128xf32>
    %482 = arith.index_cast %474 : i32 to index
    %c0_255 = arith.constant 0 : index
    %c0_256 = arith.constant 0 : index
    %483 = vector.load %arg18[%482, %c0_255, %c0_256] : memref<16x1x128xf32, #tpu.memory_space<vmem>>, vector<1x1x128xf32>
    %484 = vector.shape_cast %483 : vector<1x1x128xf32> to vector<1x128xf32>
    %485 = arith.addf %484, %481 : vector<1x128xf32>
    %486 = arith.index_cast %474 : i32 to index
    %c0_257 = arith.constant 0 : index
    %c0_258 = arith.constant 0 : index
    %487 = vector.load %arg18[%486, %c0_257, %c0_258] : memref<16x1x128xf32, #tpu.memory_space<vmem>>, vector<1x1x128xf32>
    %488 = vector.shape_cast %487 : vector<1x1x128xf32> to vector<1x128xf32>
    %489 = vector.shape_cast %485 : vector<1x128xf32> to vector<1x1x128xf32>
    tpu.vector_store %arg18[%486, %c0_257, %c0_258], %489 {strides = array<i32>} : memref<16x1x128xf32, #tpu.memory_space<vmem>>, vector<1x1x128xf32>,
    %c24 = arith.constant 24 : index
    %490 = memref.load %arg0[%c24] : memref<32xi32, #tpu.memory_space<smem>>
    %c24_259 = arith.constant 24 : index
    %491 = memref.load %arg1[%c24_259] : memref<32xi32, #tpu.memory_space<smem>>
    %492 = arith.index_cast %490 : i32 to index
    %c0_260 = arith.constant 0 : index
    %c0_261 = arith.constant 0 : index
    %493 = vector.load %arg17[%492, %c0_260, %c0_261] : memref<16x1x128xf32, #tpu.memory_space<vmem>>, vector<1x1x128xf32>
    %494 = vector.shape_cast %493 : vector<1x1x128xf32> to vector<1x128xf32>
    %495 = vector.extract_strided_slice %15 {offsets = [24, 0], sizes = [1, 128], strides = [1, 1]} : vector<32x128xf32> to vector<1x128xf32>
    %496 = arith.addf %494, %495 : vector<1x128xf32>
    %cst_262 = arith.constant 0.000000e+00 : f32
    %497 = vector.broadcast %cst_262 : f32 to vector<1x128xf32>
    %498 = arith.maximumf %496, %497 : vector<1x128xf32>
    %499 = arith.index_cast %491 : i32 to index
    %c0_263 = arith.constant 0 : index
    %c0_264 = arith.constant 0 : index
    %500 = vector.load %arg18[%499, %c0_263, %c0_264] : memref<16x1x128xf32, #tpu.memory_space<vmem>>, vector<1x1x128xf32>
    %501 = vector.shape_cast %500 : vector<1x1x128xf32> to vector<1x128xf32>
    %502 = arith.addf %501, %498 : vector<1x128xf32>
    %503 = arith.index_cast %491 : i32 to index
    %c0_265 = arith.constant 0 : index
    %c0_266 = arith.constant 0 : index
    %504 = vector.load %arg18[%503, %c0_265, %c0_266] : memref<16x1x128xf32, #tpu.memory_space<vmem>>, vector<1x1x128xf32>
    %505 = vector.shape_cast %504 : vector<1x1x128xf32> to vector<1x128xf32>
    %506 = vector.shape_cast %502 : vector<1x128xf32> to vector<1x1x128xf32>
    tpu.vector_store %arg18[%503, %c0_265, %c0_266], %506 {strides = array<i32>} : memref<16x1x128xf32, #tpu.memory_space<vmem>>, vector<1x1x128xf32>,
    %c25 = arith.constant 25 : index
    %507 = memref.load %arg0[%c25] : memref<32xi32, #tpu.memory_space<smem>>
    %c25_267 = arith.constant 25 : index
    %508 = memref.load %arg1[%c25_267] : memref<32xi32, #tpu.memory_space<smem>>
    %509 = arith.index_cast %507 : i32 to index
    %c0_268 = arith.constant 0 : index
    %c0_269 = arith.constant 0 : index
    %510 = vector.load %arg17[%509, %c0_268, %c0_269] : memref<16x1x128xf32, #tpu.memory_space<vmem>>, vector<1x1x128xf32>
    %511 = vector.shape_cast %510 : vector<1x1x128xf32> to vector<1x128xf32>
    %512 = vector.extract_strided_slice %15 {offsets = [25, 0], sizes = [1, 128], strides = [1, 1]} : vector<32x128xf32> to vector<1x128xf32>
    %513 = arith.addf %511, %512 : vector<1x128xf32>
    %cst_270 = arith.constant 0.000000e+00 : f32
    %514 = vector.broadcast %cst_270 : f32 to vector<1x128xf32>
    %515 = arith.maximumf %513, %514 : vector<1x128xf32>
    %516 = arith.index_cast %508 : i32 to index
    %c0_271 = arith.constant 0 : index
    %c0_272 = arith.constant 0 : index
    %517 = vector.load %arg18[%516, %c0_271, %c0_272] : memref<16x1x128xf32, #tpu.memory_space<vmem>>, vector<1x1x128xf32>
    %518 = vector.shape_cast %517 : vector<1x1x128xf32> to vector<1x128xf32>
    %519 = arith.addf %518, %515 : vector<1x128xf32>
    %520 = arith.index_cast %508 : i32 to index
    %c0_273 = arith.constant 0 : index
    %c0_274 = arith.constant 0 : index
    %521 = vector.load %arg18[%520, %c0_273, %c0_274] : memref<16x1x128xf32, #tpu.memory_space<vmem>>, vector<1x1x128xf32>
    %522 = vector.shape_cast %521 : vector<1x1x128xf32> to vector<1x128xf32>
    %523 = vector.shape_cast %519 : vector<1x128xf32> to vector<1x1x128xf32>
    tpu.vector_store %arg18[%520, %c0_273, %c0_274], %523 {strides = array<i32>} : memref<16x1x128xf32, #tpu.memory_space<vmem>>, vector<1x1x128xf32>,
    %c26 = arith.constant 26 : index
    %524 = memref.load %arg0[%c26] : memref<32xi32, #tpu.memory_space<smem>>
    %c26_275 = arith.constant 26 : index
    %525 = memref.load %arg1[%c26_275] : memref<32xi32, #tpu.memory_space<smem>>
    %526 = arith.index_cast %524 : i32 to index
    %c0_276 = arith.constant 0 : index
    %c0_277 = arith.constant 0 : index
    %527 = vector.load %arg17[%526, %c0_276, %c0_277] : memref<16x1x128xf32, #tpu.memory_space<vmem>>, vector<1x1x128xf32>
    %528 = vector.shape_cast %527 : vector<1x1x128xf32> to vector<1x128xf32>
    %529 = vector.extract_strided_slice %15 {offsets = [26, 0], sizes = [1, 128], strides = [1, 1]} : vector<32x128xf32> to vector<1x128xf32>
    %530 = arith.addf %528, %529 : vector<1x128xf32>
    %cst_278 = arith.constant 0.000000e+00 : f32
    %531 = vector.broadcast %cst_278 : f32 to vector<1x128xf32>
    %532 = arith.maximumf %530, %531 : vector<1x128xf32>
    %533 = arith.index_cast %525 : i32 to index
    %c0_279 = arith.constant 0 : index
    %c0_280 = arith.constant 0 : index
    %534 = vector.load %arg18[%533, %c0_279, %c0_280] : memref<16x1x128xf32, #tpu.memory_space<vmem>>, vector<1x1x128xf32>
    %535 = vector.shape_cast %534 : vector<1x1x128xf32> to vector<1x128xf32>
    %536 = arith.addf %535, %532 : vector<1x128xf32>
    %537 = arith.index_cast %525 : i32 to index
    %c0_281 = arith.constant 0 : index
    %c0_282 = arith.constant 0 : index
    %538 = vector.load %arg18[%537, %c0_281, %c0_282] : memref<16x1x128xf32, #tpu.memory_space<vmem>>, vector<1x1x128xf32>
    %539 = vector.shape_cast %538 : vector<1x1x128xf32> to vector<1x128xf32>
    %540 = vector.shape_cast %536 : vector<1x128xf32> to vector<1x1x128xf32>
    tpu.vector_store %arg18[%537, %c0_281, %c0_282], %540 {strides = array<i32>} : memref<16x1x128xf32, #tpu.memory_space<vmem>>, vector<1x1x128xf32>,
    %c27 = arith.constant 27 : index
    %541 = memref.load %arg0[%c27] : memref<32xi32, #tpu.memory_space<smem>>
    %c27_283 = arith.constant 27 : index
    %542 = memref.load %arg1[%c27_283] : memref<32xi32, #tpu.memory_space<smem>>
    %543 = arith.index_cast %541 : i32 to index
    %c0_284 = arith.constant 0 : index
    %c0_285 = arith.constant 0 : index
    %544 = vector.load %arg17[%543, %c0_284, %c0_285] : memref<16x1x128xf32, #tpu.memory_space<vmem>>, vector<1x1x128xf32>
    %545 = vector.shape_cast %544 : vector<1x1x128xf32> to vector<1x128xf32>
    %546 = vector.extract_strided_slice %15 {offsets = [27, 0], sizes = [1, 128], strides = [1, 1]} : vector<32x128xf32> to vector<1x128xf32>
    %547 = arith.addf %545, %546 : vector<1x128xf32>
    %cst_286 = arith.constant 0.000000e+00 : f32
    %548 = vector.broadcast %cst_286 : f32 to vector<1x128xf32>
    %549 = arith.maximumf %547, %548 : vector<1x128xf32>
    %550 = arith.index_cast %542 : i32 to index
    %c0_287 = arith.constant 0 : index
    %c0_288 = arith.constant 0 : index
    %551 = vector.load %arg18[%550, %c0_287, %c0_288] : memref<16x1x128xf32, #tpu.memory_space<vmem>>, vector<1x1x128xf32>
    %552 = vector.shape_cast %551 : vector<1x1x128xf32> to vector<1x128xf32>
    %553 = arith.addf %552, %549 : vector<1x128xf32>
    %554 = arith.index_cast %542 : i32 to index
    %c0_289 = arith.constant 0 : index
    %c0_290 = arith.constant 0 : index
    %555 = vector.load %arg18[%554, %c0_289, %c0_290] : memref<16x1x128xf32, #tpu.memory_space<vmem>>, vector<1x1x128xf32>
    %556 = vector.shape_cast %555 : vector<1x1x128xf32> to vector<1x128xf32>
    %557 = vector.shape_cast %553 : vector<1x128xf32> to vector<1x1x128xf32>
    tpu.vector_store %arg18[%554, %c0_289, %c0_290], %557 {strides = array<i32>} : memref<16x1x128xf32, #tpu.memory_space<vmem>>, vector<1x1x128xf32>,
    %c28 = arith.constant 28 : index
    %558 = memref.load %arg0[%c28] : memref<32xi32, #tpu.memory_space<smem>>
    %c28_291 = arith.constant 28 : index
    %559 = memref.load %arg1[%c28_291] : memref<32xi32, #tpu.memory_space<smem>>
    %560 = arith.index_cast %558 : i32 to index
    %c0_292 = arith.constant 0 : index
    %c0_293 = arith.constant 0 : index
    %561 = vector.load %arg17[%560, %c0_292, %c0_293] : memref<16x1x128xf32, #tpu.memory_space<vmem>>, vector<1x1x128xf32>
    %562 = vector.shape_cast %561 : vector<1x1x128xf32> to vector<1x128xf32>
    %563 = vector.extract_strided_slice %15 {offsets = [28, 0], sizes = [1, 128], strides = [1, 1]} : vector<32x128xf32> to vector<1x128xf32>
    %564 = arith.addf %562, %563 : vector<1x128xf32>
    %cst_294 = arith.constant 0.000000e+00 : f32
    %565 = vector.broadcast %cst_294 : f32 to vector<1x128xf32>
    %566 = arith.maximumf %564, %565 : vector<1x128xf32>
    %567 = arith.index_cast %559 : i32 to index
    %c0_295 = arith.constant 0 : index
    %c0_296 = arith.constant 0 : index
    %568 = vector.load %arg18[%567, %c0_295, %c0_296] : memref<16x1x128xf32, #tpu.memory_space<vmem>>, vector<1x1x128xf32>
    %569 = vector.shape_cast %568 : vector<1x1x128xf32> to vector<1x128xf32>
    %570 = arith.addf %569, %566 : vector<1x128xf32>
    %571 = arith.index_cast %559 : i32 to index
    %c0_297 = arith.constant 0 : index
    %c0_298 = arith.constant 0 : index
    %572 = vector.load %arg18[%571, %c0_297, %c0_298] : memref<16x1x128xf32, #tpu.memory_space<vmem>>, vector<1x1x128xf32>
    %573 = vector.shape_cast %572 : vector<1x1x128xf32> to vector<1x128xf32>
    %574 = vector.shape_cast %570 : vector<1x128xf32> to vector<1x1x128xf32>
    tpu.vector_store %arg18[%571, %c0_297, %c0_298], %574 {strides = array<i32>} : memref<16x1x128xf32, #tpu.memory_space<vmem>>, vector<1x1x128xf32>,
    %c29 = arith.constant 29 : index
    %575 = memref.load %arg0[%c29] : memref<32xi32, #tpu.memory_space<smem>>
    %c29_299 = arith.constant 29 : index
    %576 = memref.load %arg1[%c29_299] : memref<32xi32, #tpu.memory_space<smem>>
    %577 = arith.index_cast %575 : i32 to index
    %c0_300 = arith.constant 0 : index
    %c0_301 = arith.constant 0 : index
    %578 = vector.load %arg17[%577, %c0_300, %c0_301] : memref<16x1x128xf32, #tpu.memory_space<vmem>>, vector<1x1x128xf32>
    %579 = vector.shape_cast %578 : vector<1x1x128xf32> to vector<1x128xf32>
    %580 = vector.extract_strided_slice %15 {offsets = [29, 0], sizes = [1, 128], strides = [1, 1]} : vector<32x128xf32> to vector<1x128xf32>
    %581 = arith.addf %579, %580 : vector<1x128xf32>
    %cst_302 = arith.constant 0.000000e+00 : f32
    %582 = vector.broadcast %cst_302 : f32 to vector<1x128xf32>
    %583 = arith.maximumf %581, %582 : vector<1x128xf32>
    %584 = arith.index_cast %576 : i32 to index
    %c0_303 = arith.constant 0 : index
    %c0_304 = arith.constant 0 : index
    %585 = vector.load %arg18[%584, %c0_303, %c0_304] : memref<16x1x128xf32, #tpu.memory_space<vmem>>, vector<1x1x128xf32>
    %586 = vector.shape_cast %585 : vector<1x1x128xf32> to vector<1x128xf32>
    %587 = arith.addf %586, %583 : vector<1x128xf32>
    %588 = arith.index_cast %576 : i32 to index
    %c0_305 = arith.constant 0 : index
    %c0_306 = arith.constant 0 : index
    %589 = vector.load %arg18[%588, %c0_305, %c0_306] : memref<16x1x128xf32, #tpu.memory_space<vmem>>, vector<1x1x128xf32>
    %590 = vector.shape_cast %589 : vector<1x1x128xf32> to vector<1x128xf32>
    %591 = vector.shape_cast %587 : vector<1x128xf32> to vector<1x1x128xf32>
    tpu.vector_store %arg18[%588, %c0_305, %c0_306], %591 {strides = array<i32>} : memref<16x1x128xf32, #tpu.memory_space<vmem>>, vector<1x1x128xf32>,
    %c30 = arith.constant 30 : index
    %592 = memref.load %arg0[%c30] : memref<32xi32, #tpu.memory_space<smem>>
    %c30_307 = arith.constant 30 : index
    %593 = memref.load %arg1[%c30_307] : memref<32xi32, #tpu.memory_space<smem>>
    %594 = arith.index_cast %592 : i32 to index
    %c0_308 = arith.constant 0 : index
    %c0_309 = arith.constant 0 : index
    %595 = vector.load %arg17[%594, %c0_308, %c0_309] : memref<16x1x128xf32, #tpu.memory_space<vmem>>, vector<1x1x128xf32>
    %596 = vector.shape_cast %595 : vector<1x1x128xf32> to vector<1x128xf32>
    %597 = vector.extract_strided_slice %15 {offsets = [30, 0], sizes = [1, 128], strides = [1, 1]} : vector<32x128xf32> to vector<1x128xf32>
    %598 = arith.addf %596, %597 : vector<1x128xf32>
    %cst_310 = arith.constant 0.000000e+00 : f32
    %599 = vector.broadcast %cst_310 : f32 to vector<1x128xf32>
    %600 = arith.maximumf %598, %599 : vector<1x128xf32>
    %601 = arith.index_cast %593 : i32 to index
    %c0_311 = arith.constant 0 : index
    %c0_312 = arith.constant 0 : index
    %602 = vector.load %arg18[%601, %c0_311, %c0_312] : memref<16x1x128xf32, #tpu.memory_space<vmem>>, vector<1x1x128xf32>
    %603 = vector.shape_cast %602 : vector<1x1x128xf32> to vector<1x128xf32>
    %604 = arith.addf %603, %600 : vector<1x128xf32>
    %605 = arith.index_cast %593 : i32 to index
    %c0_313 = arith.constant 0 : index
    %c0_314 = arith.constant 0 : index
    %606 = vector.load %arg18[%605, %c0_313, %c0_314] : memref<16x1x128xf32, #tpu.memory_space<vmem>>, vector<1x1x128xf32>
    %607 = vector.shape_cast %606 : vector<1x1x128xf32> to vector<1x128xf32>
    %608 = vector.shape_cast %604 : vector<1x128xf32> to vector<1x1x128xf32>
    tpu.vector_store %arg18[%605, %c0_313, %c0_314], %608 {strides = array<i32>} : memref<16x1x128xf32, #tpu.memory_space<vmem>>, vector<1x1x128xf32>,
    %c31 = arith.constant 31 : index
    %609 = memref.load %arg0[%c31] : memref<32xi32, #tpu.memory_space<smem>>
    %c31_315 = arith.constant 31 : index
    %610 = memref.load %arg1[%c31_315] : memref<32xi32, #tpu.memory_space<smem>>
    %611 = arith.index_cast %609 : i32 to index
    %c0_316 = arith.constant 0 : index
    %c0_317 = arith.constant 0 : index
    %612 = vector.load %arg17[%611, %c0_316, %c0_317] : memref<16x1x128xf32, #tpu.memory_space<vmem>>, vector<1x1x128xf32>
    %613 = vector.shape_cast %612 : vector<1x1x128xf32> to vector<1x128xf32>
    %614 = vector.extract_strided_slice %15 {offsets = [31, 0], sizes = [1, 128], strides = [1, 1]} : vector<32x128xf32> to vector<1x128xf32>
    %615 = arith.addf %613, %614 : vector<1x128xf32>
    %cst_318 = arith.constant 0.000000e+00 : f32
    %616 = vector.broadcast %cst_318 : f32 to vector<1x128xf32>
    %617 = arith.maximumf %615, %616 : vector<1x128xf32>
    %618 = arith.index_cast %610 : i32 to index
    %c0_319 = arith.constant 0 : index
    %c0_320 = arith.constant 0 : index
    %619 = vector.load %arg18[%618, %c0_319, %c0_320] : memref<16x1x128xf32, #tpu.memory_space<vmem>>, vector<1x1x128xf32>
    %620 = vector.shape_cast %619 : vector<1x1x128xf32> to vector<1x128xf32>
    %621 = arith.addf %620, %617 : vector<1x128xf32>
    %622 = arith.index_cast %610 : i32 to index
    %c0_321 = arith.constant 0 : index
    %c0_322 = arith.constant 0 : index
    %623 = vector.load %arg18[%622, %c0_321, %c0_322] : memref<16x1x128xf32, #tpu.memory_space<vmem>>, vector<1x1x128xf32>
    %624 = vector.shape_cast %623 : vector<1x1x128xf32> to vector<1x128xf32>
    %625 = vector.shape_cast %621 : vector<1x128xf32> to vector<1x1x128xf32>
    tpu.vector_store %arg18[%622, %c0_321, %c0_322], %625 {strides = array<i32>} : memref<16x1x128xf32, #tpu.memory_space<vmem>>, vector<1x1x128xf32>,
    %c0_323 = arith.constant 0 : index
    %c0_324 = arith.constant 0 : index
    %c0_325 = arith.constant 0 : index
    %626 = vector.load %arg18[%c0_323, %c0_324, %c0_325] : memref<16x1x128xf32, #tpu.memory_space<vmem>>, vector<1x1x128xf32>
    %627 = vector.shape_cast %626 : vector<1x1x128xf32> to vector<1x128xf32>
    %c0_326 = arith.constant 0 : index
    %c0_327 = arith.constant 0 : index
    %628 = vector.load %arg20[%c0_326, %c0_327] : memref<16x128xf32, #tpu.memory_space<vmem>>, vector<1x128xf32>
    tpu.vector_store %arg20[%c0_326, %c0_327], %627 {strides = array<i32>} : memref<16x128xf32, #tpu.memory_space<vmem>>, vector<1x128xf32>,
    %c1_328 = arith.constant 1 : index
    %c0_329 = arith.constant 0 : index
    %c0_330 = arith.constant 0 : index
    %629 = vector.load %arg18[%c1_328, %c0_329, %c0_330] : memref<16x1x128xf32, #tpu.memory_space<vmem>>, vector<1x1x128xf32>
    %630 = vector.shape_cast %629 : vector<1x1x128xf32> to vector<1x128xf32>
    %c1_331 = arith.constant 1 : index
    %c0_332 = arith.constant 0 : index
    %631 = vector.load %arg20[%c1_331, %c0_332] : memref<16x128xf32, #tpu.memory_space<vmem>>, vector<1x128xf32>
    tpu.vector_store %arg20[%c1_331, %c0_332], %630 {strides = array<i32>} : memref<16x128xf32, #tpu.memory_space<vmem>>, vector<1x128xf32>,
    %c2_333 = arith.constant 2 : index
    %c0_334 = arith.constant 0 : index
    %c0_335 = arith.constant 0 : index
    %632 = vector.load %arg18[%c2_333, %c0_334, %c0_335] : memref<16x1x128xf32, #tpu.memory_space<vmem>>, vector<1x1x128xf32>
    %633 = vector.shape_cast %632 : vector<1x1x128xf32> to vector<1x128xf32>
    %c2_336 = arith.constant 2 : index
    %c0_337 = arith.constant 0 : index
    %634 = vector.load %arg20[%c2_336, %c0_337] : memref<16x128xf32, #tpu.memory_space<vmem>>, vector<1x128xf32>
    tpu.vector_store %arg20[%c2_336, %c0_337], %633 {strides = array<i32>} : memref<16x128xf32, #tpu.memory_space<vmem>>, vector<1x128xf32>,
    %c3_338 = arith.constant 3 : index
    %c0_339 = arith.constant 0 : index
    %c0_340 = arith.constant 0 : index
    %635 = vector.load %arg18[%c3_338, %c0_339, %c0_340] : memref<16x1x128xf32, #tpu.memory_space<vmem>>, vector<1x1x128xf32>
    %636 = vector.shape_cast %635 : vector<1x1x128xf32> to vector<1x128xf32>
    %c3_341 = arith.constant 3 : index
    %c0_342 = arith.constant 0 : index
    %637 = vector.load %arg20[%c3_341, %c0_342] : memref<16x128xf32, #tpu.memory_space<vmem>>, vector<1x128xf32>
    tpu.vector_store %arg20[%c3_341, %c0_342], %636 {strides = array<i32>} : memref<16x128xf32, #tpu.memory_space<vmem>>, vector<1x128xf32>,
    %c4_343 = arith.constant 4 : index
    %c0_344 = arith.constant 0 : index
    %c0_345 = arith.constant 0 : index
    %638 = vector.load %arg18[%c4_343, %c0_344, %c0_345] : memref<16x1x128xf32, #tpu.memory_space<vmem>>, vector<1x1x128xf32>
    %639 = vector.shape_cast %638 : vector<1x1x128xf32> to vector<1x128xf32>
    %c4_346 = arith.constant 4 : index
    %c0_347 = arith.constant 0 : index
    %640 = vector.load %arg20[%c4_346, %c0_347] : memref<16x128xf32, #tpu.memory_space<vmem>>, vector<1x128xf32>
    tpu.vector_store %arg20[%c4_346, %c0_347], %639 {strides = array<i32>} : memref<16x128xf32, #tpu.memory_space<vmem>>, vector<1x128xf32>,
    %c5_348 = arith.constant 5 : index
    %c0_349 = arith.constant 0 : index
    %c0_350 = arith.constant 0 : index
    %641 = vector.load %arg18[%c5_348, %c0_349, %c0_350] : memref<16x1x128xf32, #tpu.memory_space<vmem>>, vector<1x1x128xf32>
    %642 = vector.shape_cast %641 : vector<1x1x128xf32> to vector<1x128xf32>
    %c5_351 = arith.constant 5 : index
    %c0_352 = arith.constant 0 : index
    %643 = vector.load %arg20[%c5_351, %c0_352] : memref<16x128xf32, #tpu.memory_space<vmem>>, vector<1x128xf32>
    tpu.vector_store %arg20[%c5_351, %c0_352], %642 {strides = array<i32>} : memref<16x128xf32, #tpu.memory_space<vmem>>, vector<1x128xf32>,
    %c6_353 = arith.constant 6 : index
    %c0_354 = arith.constant 0 : index
    %c0_355 = arith.constant 0 : index
    %644 = vector.load %arg18[%c6_353, %c0_354, %c0_355] : memref<16x1x128xf32, #tpu.memory_space<vmem>>, vector<1x1x128xf32>
    %645 = vector.shape_cast %644 : vector<1x1x128xf32> to vector<1x128xf32>
    %c6_356 = arith.constant 6 : index
    %c0_357 = arith.constant 0 : index
    %646 = vector.load %arg20[%c6_356, %c0_357] : memref<16x128xf32, #tpu.memory_space<vmem>>, vector<1x128xf32>
    tpu.vector_store %arg20[%c6_356, %c0_357], %645 {strides = array<i32>} : memref<16x128xf32, #tpu.memory_space<vmem>>, vector<1x128xf32>,
    %c7_358 = arith.constant 7 : index
    %c0_359 = arith.constant 0 : index
    %c0_360 = arith.constant 0 : index
    %647 = vector.load %arg18[%c7_358, %c0_359, %c0_360] : memref<16x1x128xf32, #tpu.memory_space<vmem>>, vector<1x1x128xf32>
    %648 = vector.shape_cast %647 : vector<1x1x128xf32> to vector<1x128xf32>
    %c7_361 = arith.constant 7 : index
    %c0_362 = arith.constant 0 : index
    %649 = vector.load %arg20[%c7_361, %c0_362] : memref<16x128xf32, #tpu.memory_space<vmem>>, vector<1x128xf32>
    tpu.vector_store %arg20[%c7_361, %c0_362], %648 {strides = array<i32>} : memref<16x128xf32, #tpu.memory_space<vmem>>, vector<1x128xf32>,
    %c8_363 = arith.constant 8 : index
    %c0_364 = arith.constant 0 : index
    %c0_365 = arith.constant 0 : index
    %650 = vector.load %arg18[%c8_363, %c0_364, %c0_365] : memref<16x1x128xf32, #tpu.memory_space<vmem>>, vector<1x1x128xf32>
    %651 = vector.shape_cast %650 : vector<1x1x128xf32> to vector<1x128xf32>
    %c8_366 = arith.constant 8 : index
    %c0_367 = arith.constant 0 : index
    %652 = vector.load %arg20[%c8_366, %c0_367] : memref<16x128xf32, #tpu.memory_space<vmem>>, vector<1x128xf32>
    tpu.vector_store %arg20[%c8_366, %c0_367], %651 {strides = array<i32>} : memref<16x128xf32, #tpu.memory_space<vmem>>, vector<1x128xf32>,
    %c9_368 = arith.constant 9 : index
    %c0_369 = arith.constant 0 : index
    %c0_370 = arith.constant 0 : index
    %653 = vector.load %arg18[%c9_368, %c0_369, %c0_370] : memref<16x1x128xf32, #tpu.memory_space<vmem>>, vector<1x1x128xf32>
    %654 = vector.shape_cast %653 : vector<1x1x128xf32> to vector<1x128xf32>
    %c9_371 = arith.constant 9 : index
    %c0_372 = arith.constant 0 : index
    %655 = vector.load %arg20[%c9_371, %c0_372] : memref<16x128xf32, #tpu.memory_space<vmem>>, vector<1x128xf32>
    tpu.vector_store %arg20[%c9_371, %c0_372], %654 {strides = array<i32>} : memref<16x128xf32, #tpu.memory_space<vmem>>, vector<1x128xf32>,
    %c10_373 = arith.constant 10 : index
    %c0_374 = arith.constant 0 : index
    %c0_375 = arith.constant 0 : index
    %656 = vector.load %arg18[%c10_373, %c0_374, %c0_375] : memref<16x1x128xf32, #tpu.memory_space<vmem>>, vector<1x1x128xf32>
    %657 = vector.shape_cast %656 : vector<1x1x128xf32> to vector<1x128xf32>
    %c10_376 = arith.constant 10 : index
    %c0_377 = arith.constant 0 : index
    %658 = vector.load %arg20[%c10_376, %c0_377] : memref<16x128xf32, #tpu.memory_space<vmem>>, vector<1x128xf32>
    tpu.vector_store %arg20[%c10_376, %c0_377], %657 {strides = array<i32>} : memref<16x128xf32, #tpu.memory_space<vmem>>, vector<1x128xf32>,
    %c11_378 = arith.constant 11 : index
    %c0_379 = arith.constant 0 : index
    %c0_380 = arith.constant 0 : index
    %659 = vector.load %arg18[%c11_378, %c0_379, %c0_380] : memref<16x1x128xf32, #tpu.memory_space<vmem>>, vector<1x1x128xf32>
    %660 = vector.shape_cast %659 : vector<1x1x128xf32> to vector<1x128xf32>
    %c11_381 = arith.constant 11 : index
    %c0_382 = arith.constant 0 : index
    %661 = vector.load %arg20[%c11_381, %c0_382] : memref<16x128xf32, #tpu.memory_space<vmem>>, vector<1x128xf32>
    tpu.vector_store %arg20[%c11_381, %c0_382], %660 {strides = array<i32>} : memref<16x128xf32, #tpu.memory_space<vmem>>, vector<1x128xf32>,
    %c12_383 = arith.constant 12 : index
    %c0_384 = arith.constant 0 : index
    %c0_385 = arith.constant 0 : index
    %662 = vector.load %arg18[%c12_383, %c0_384, %c0_385] : memref<16x1x128xf32, #tpu.memory_space<vmem>>, vector<1x1x128xf32>
    %663 = vector.shape_cast %662 : vector<1x1x128xf32> to vector<1x128xf32>
    %c12_386 = arith.constant 12 : index
    %c0_387 = arith.constant 0 : index
    %664 = vector.load %arg20[%c12_386, %c0_387] : memref<16x128xf32, #tpu.memory_space<vmem>>, vector<1x128xf32>
    tpu.vector_store %arg20[%c12_386, %c0_387], %663 {strides = array<i32>} : memref<16x128xf32, #tpu.memory_space<vmem>>, vector<1x128xf32>,
    %c13_388 = arith.constant 13 : index
    %c0_389 = arith.constant 0 : index
    %c0_390 = arith.constant 0 : index
    %665 = vector.load %arg18[%c13_388, %c0_389, %c0_390] : memref<16x1x128xf32, #tpu.memory_space<vmem>>, vector<1x1x128xf32>
    %666 = vector.shape_cast %665 : vector<1x1x128xf32> to vector<1x128xf32>
    %c13_391 = arith.constant 13 : index
    %c0_392 = arith.constant 0 : index
    %667 = vector.load %arg20[%c13_391, %c0_392] : memref<16x128xf32, #tpu.memory_space<vmem>>, vector<1x128xf32>
    tpu.vector_store %arg20[%c13_391, %c0_392], %666 {strides = array<i32>} : memref<16x128xf32, #tpu.memory_space<vmem>>, vector<1x128xf32>,
    %c14_393 = arith.constant 14 : index
    %c0_394 = arith.constant 0 : index
    %c0_395 = arith.constant 0 : index
    %668 = vector.load %arg18[%c14_393, %c0_394, %c0_395] : memref<16x1x128xf32, #tpu.memory_space<vmem>>, vector<1x1x128xf32>
    %669 = vector.shape_cast %668 : vector<1x1x128xf32> to vector<1x128xf32>
    %c14_396 = arith.constant 14 : index
    %c0_397 = arith.constant 0 : index
    %670 = vector.load %arg20[%c14_396, %c0_397] : memref<16x128xf32, #tpu.memory_space<vmem>>, vector<1x128xf32>
    tpu.vector_store %arg20[%c14_396, %c0_397], %669 {strides = array<i32>} : memref<16x128xf32, #tpu.memory_space<vmem>>, vector<1x128xf32>,
    %c15_398 = arith.constant 15 : index
    %c0_399 = arith.constant 0 : index
    %c0_400 = arith.constant 0 : index
    %671 = vector.load %arg18[%c15_398, %c0_399, %c0_400] : memref<16x1x128xf32, #tpu.memory_space<vmem>>, vector<1x1x128xf32>
    %672 = vector.shape_cast %671 : vector<1x1x128xf32> to vector<1x128xf32>
    %c15_401 = arith.constant 15 : index
    %c0_402 = arith.constant 0 : index
    %673 = vector.load %arg20[%c15_401, %c0_402] : memref<16x128xf32, #tpu.memory_space<vmem>>, vector<1x128xf32>
    tpu.vector_store %arg20[%c15_401, %c0_402], %672 {strides = array<i32>} : memref<16x128xf32, #tpu.memory_space<vmem>>, vector<1x128xf32>,
    %c0_403 = arith.constant 0 : index
    %c0_404 = arith.constant 0 : index
    %674 = vector.load %arg20[%c0_403, %c0_404] : memref<16x128xf32, #tpu.memory_space<vmem>>, vector<16x128xf32>
    %c0_405 = arith.constant 0 : index
    %c0_406 = arith.constant 0 : index
    %c0_407 = arith.constant 0 : index
    %675 = vector.load %arg10[%c0_405, %c0_406, %c0_407] : memref<2x128x128xbf16, #tpu.memory_space<vmem>>, vector<1x128x128xbf16>
    %676 = vector.shape_cast %675 : vector<1x128x128xbf16> to vector<128x128xbf16>
    %c0_408 = arith.constant 0 : index
    %c0_409 = arith.constant 0 : index
    %c0_410 = arith.constant 0 : index
    %677 = vector.load %arg11[%c0_408, %c0_409, %c0_410] : memref<2x1x128xf32, #tpu.memory_space<vmem>>, vector<1x1x128xf32>
    %678 = vector.shape_cast %677 : vector<1x1x128xf32> to vector<1x128xf32>
    %679 = arith.truncf %674 : vector<16x128xf32> to vector<16x128xbf16>
    %cst_411 = arith.constant dense<0.000000e+00> : vector<16x128xf32>
    %680 = tpu.matmul %679, %676, %cst_411 {dimension_numbers = #tpu.dot_dimension_numbers<[1], [0], [0], [1], [0, 0, 1, 1], [], []>} : vector<16x128xbf16>, vector<128x128xbf16>, vector<16x128xf32> -> vector<16x128xf32>
    %681 = vector.broadcast %678 : vector<1x128xf32> to vector<16x128xf32>
    %682 = arith.addf %680, %681 : vector<16x128xf32>
    %cst_412 = arith.constant 0.000000e+00 : f32
    %683 = vector.broadcast %cst_412 : f32 to vector<16x128xf32>
    %684 = arith.maximumf %682, %683 : vector<16x128xf32>
    %685 = vector.extract_strided_slice %684 {offsets = [0, 0], sizes = [1, 128], strides = [1, 1]} : vector<16x128xf32> to vector<1x128xf32>
    %c0_413 = arith.constant 0 : index
    %c0_414 = arith.constant 0 : index
    %c0_415 = arith.constant 0 : index
    %686 = vector.load %arg17[%c0_413, %c0_414, %c0_415] : memref<16x1x128xf32, #tpu.memory_space<vmem>>, vector<1x1x128xf32>
    %687 = vector.shape_cast %686 : vector<1x1x128xf32> to vector<1x128xf32>
    %688 = vector.shape_cast %685 : vector<1x128xf32> to vector<1x1x128xf32>
    tpu.vector_store %arg17[%c0_413, %c0_414, %c0_415], %688 {strides = array<i32>} : memref<16x1x128xf32, #tpu.memory_space<vmem>>, vector<1x1x128xf32>,
    %689 = vector.extract_strided_slice %684 {offsets = [1, 0], sizes = [1, 128], strides = [1, 1]} : vector<16x128xf32> to vector<1x128xf32>
    %c1_416 = arith.constant 1 : index
    %c0_417 = arith.constant 0 : index
    %c0_418 = arith.constant 0 : index
    %690 = vector.load %arg17[%c1_416, %c0_417, %c0_418] : memref<16x1x128xf32, #tpu.memory_space<vmem>>, vector<1x1x128xf32>
    %691 = vector.shape_cast %690 : vector<1x1x128xf32> to vector<1x128xf32>
    %692 = vector.shape_cast %689 : vector<1x128xf32> to vector<1x1x128xf32>
    tpu.vector_store %arg17[%c1_416, %c0_417, %c0_418], %692 {strides = array<i32>} : memref<16x1x128xf32, #tpu.memory_space<vmem>>, vector<1x1x128xf32>,
    %693 = vector.extract_strided_slice %684 {offsets = [2, 0], sizes = [1, 128], strides = [1, 1]} : vector<16x128xf32> to vector<1x128xf32>
    %c2_419 = arith.constant 2 : index
    %c0_420 = arith.constant 0 : index
    %c0_421 = arith.constant 0 : index
    %694 = vector.load %arg17[%c2_419, %c0_420, %c0_421] : memref<16x1x128xf32, #tpu.memory_space<vmem>>, vector<1x1x128xf32>
    %695 = vector.shape_cast %694 : vector<1x1x128xf32> to vector<1x128xf32>
    %696 = vector.shape_cast %693 : vector<1x128xf32> to vector<1x1x128xf32>
    tpu.vector_store %arg17[%c2_419, %c0_420, %c0_421], %696 {strides = array<i32>} : memref<16x1x128xf32, #tpu.memory_space<vmem>>, vector<1x1x128xf32>,
    %697 = vector.extract_strided_slice %684 {offsets = [3, 0], sizes = [1, 128], strides = [1, 1]} : vector<16x128xf32> to vector<1x128xf32>
    %c3_422 = arith.constant 3 : index
    %c0_423 = arith.constant 0 : index
    %c0_424 = arith.constant 0 : index
    %698 = vector.load %arg17[%c3_422, %c0_423, %c0_424] : memref<16x1x128xf32, #tpu.memory_space<vmem>>, vector<1x1x128xf32>
    %699 = vector.shape_cast %698 : vector<1x1x128xf32> to vector<1x128xf32>
    %700 = vector.shape_cast %697 : vector<1x128xf32> to vector<1x1x128xf32>
    tpu.vector_store %arg17[%c3_422, %c0_423, %c0_424], %700 {strides = array<i32>} : memref<16x1x128xf32, #tpu.memory_space<vmem>>, vector<1x1x128xf32>,
    %701 = vector.extract_strided_slice %684 {offsets = [4, 0], sizes = [1, 128], strides = [1, 1]} : vector<16x128xf32> to vector<1x128xf32>
    %c4_425 = arith.constant 4 : index
    %c0_426 = arith.constant 0 : index
    %c0_427 = arith.constant 0 : index
    %702 = vector.load %arg17[%c4_425, %c0_426, %c0_427] : memref<16x1x128xf32, #tpu.memory_space<vmem>>, vector<1x1x128xf32>
    %703 = vector.shape_cast %702 : vector<1x1x128xf32> to vector<1x128xf32>
    %704 = vector.shape_cast %701 : vector<1x128xf32> to vector<1x1x128xf32>
    tpu.vector_store %arg17[%c4_425, %c0_426, %c0_427], %704 {strides = array<i32>} : memref<16x1x128xf32, #tpu.memory_space<vmem>>, vector<1x1x128xf32>,
    %705 = vector.extract_strided_slice %684 {offsets = [5, 0], sizes = [1, 128], strides = [1, 1]} : vector<16x128xf32> to vector<1x128xf32>
    %c5_428 = arith.constant 5 : index
    %c0_429 = arith.constant 0 : index
    %c0_430 = arith.constant 0 : index
    %706 = vector.load %arg17[%c5_428, %c0_429, %c0_430] : memref<16x1x128xf32, #tpu.memory_space<vmem>>, vector<1x1x128xf32>
    %707 = vector.shape_cast %706 : vector<1x1x128xf32> to vector<1x128xf32>
    %708 = vector.shape_cast %705 : vector<1x128xf32> to vector<1x1x128xf32>
    tpu.vector_store %arg17[%c5_428, %c0_429, %c0_430], %708 {strides = array<i32>} : memref<16x1x128xf32, #tpu.memory_space<vmem>>, vector<1x1x128xf32>,
    %709 = vector.extract_strided_slice %684 {offsets = [6, 0], sizes = [1, 128], strides = [1, 1]} : vector<16x128xf32> to vector<1x128xf32>
    %c6_431 = arith.constant 6 : index
    %c0_432 = arith.constant 0 : index
    %c0_433 = arith.constant 0 : index
    %710 = vector.load %arg17[%c6_431, %c0_432, %c0_433] : memref<16x1x128xf32, #tpu.memory_space<vmem>>, vector<1x1x128xf32>
    %711 = vector.shape_cast %710 : vector<1x1x128xf32> to vector<1x128xf32>
    %712 = vector.shape_cast %709 : vector<1x128xf32> to vector<1x1x128xf32>
    tpu.vector_store %arg17[%c6_431, %c0_432, %c0_433], %712 {strides = array<i32>} : memref<16x1x128xf32, #tpu.memory_space<vmem>>, vector<1x1x128xf32>,
    %713 = vector.extract_strided_slice %684 {offsets = [7, 0], sizes = [1, 128], strides = [1, 1]} : vector<16x128xf32> to vector<1x128xf32>
    %c7_434 = arith.constant 7 : index
    %c0_435 = arith.constant 0 : index
    %c0_436 = arith.constant 0 : index
    %714 = vector.load %arg17[%c7_434, %c0_435, %c0_436] : memref<16x1x128xf32, #tpu.memory_space<vmem>>, vector<1x1x128xf32>
    %715 = vector.shape_cast %714 : vector<1x1x128xf32> to vector<1x128xf32>
    %716 = vector.shape_cast %713 : vector<1x128xf32> to vector<1x1x128xf32>
    tpu.vector_store %arg17[%c7_434, %c0_435, %c0_436], %716 {strides = array<i32>} : memref<16x1x128xf32, #tpu.memory_space<vmem>>, vector<1x1x128xf32>,
    %717 = vector.extract_strided_slice %684 {offsets = [8, 0], sizes = [1, 128], strides = [1, 1]} : vector<16x128xf32> to vector<1x128xf32>
    %c8_437 = arith.constant 8 : index
    %c0_438 = arith.constant 0 : index
    %c0_439 = arith.constant 0 : index
    %718 = vector.load %arg17[%c8_437, %c0_438, %c0_439] : memref<16x1x128xf32, #tpu.memory_space<vmem>>, vector<1x1x128xf32>
    %719 = vector.shape_cast %718 : vector<1x1x128xf32> to vector<1x128xf32>
    %720 = vector.shape_cast %717 : vector<1x128xf32> to vector<1x1x128xf32>
    tpu.vector_store %arg17[%c8_437, %c0_438, %c0_439], %720 {strides = array<i32>} : memref<16x1x128xf32, #tpu.memory_space<vmem>>, vector<1x1x128xf32>,
    %721 = vector.extract_strided_slice %684 {offsets = [9, 0], sizes = [1, 128], strides = [1, 1]} : vector<16x128xf32> to vector<1x128xf32>
    %c9_440 = arith.constant 9 : index
    %c0_441 = arith.constant 0 : index
    %c0_442 = arith.constant 0 : index
    %722 = vector.load %arg17[%c9_440, %c0_441, %c0_442] : memref<16x1x128xf32, #tpu.memory_space<vmem>>, vector<1x1x128xf32>
    %723 = vector.shape_cast %722 : vector<1x1x128xf32> to vector<1x128xf32>
    %724 = vector.shape_cast %721 : vector<1x128xf32> to vector<1x1x128xf32>
    tpu.vector_store %arg17[%c9_440, %c0_441, %c0_442], %724 {strides = array<i32>} : memref<16x1x128xf32, #tpu.memory_space<vmem>>, vector<1x1x128xf32>,
    %725 = vector.extract_strided_slice %684 {offsets = [10, 0], sizes = [1, 128], strides = [1, 1]} : vector<16x128xf32> to vector<1x128xf32>
    %c10_443 = arith.constant 10 : index
    %c0_444 = arith.constant 0 : index
    %c0_445 = arith.constant 0 : index
    %726 = vector.load %arg17[%c10_443, %c0_444, %c0_445] : memref<16x1x128xf32, #tpu.memory_space<vmem>>, vector<1x1x128xf32>
    %727 = vector.shape_cast %726 : vector<1x1x128xf32> to vector<1x128xf32>
    %728 = vector.shape_cast %725 : vector<1x128xf32> to vector<1x1x128xf32>
    tpu.vector_store %arg17[%c10_443, %c0_444, %c0_445], %728 {strides = array<i32>} : memref<16x1x128xf32, #tpu.memory_space<vmem>>, vector<1x1x128xf32>,
    %729 = vector.extract_strided_slice %684 {offsets = [11, 0], sizes = [1, 128], strides = [1, 1]} : vector<16x128xf32> to vector<1x128xf32>
    %c11_446 = arith.constant 11 : index
    %c0_447 = arith.constant 0 : index
    %c0_448 = arith.constant 0 : index
    %730 = vector.load %arg17[%c11_446, %c0_447, %c0_448] : memref<16x1x128xf32, #tpu.memory_space<vmem>>, vector<1x1x128xf32>
    %731 = vector.shape_cast %730 : vector<1x1x128xf32> to vector<1x128xf32>
    %732 = vector.shape_cast %729 : vector<1x128xf32> to vector<1x1x128xf32>
    tpu.vector_store %arg17[%c11_446, %c0_447, %c0_448], %732 {strides = array<i32>} : memref<16x1x128xf32, #tpu.memory_space<vmem>>, vector<1x1x128xf32>,
    %733 = vector.extract_strided_slice %684 {offsets = [12, 0], sizes = [1, 128], strides = [1, 1]} : vector<16x128xf32> to vector<1x128xf32>
    %c12_449 = arith.constant 12 : index
    %c0_450 = arith.constant 0 : index
    %c0_451 = arith.constant 0 : index
    %734 = vector.load %arg17[%c12_449, %c0_450, %c0_451] : memref<16x1x128xf32, #tpu.memory_space<vmem>>, vector<1x1x128xf32>
    %735 = vector.shape_cast %734 : vector<1x1x128xf32> to vector<1x128xf32>
    %736 = vector.shape_cast %733 : vector<1x128xf32> to vector<1x1x128xf32>
    tpu.vector_store %arg17[%c12_449, %c0_450, %c0_451], %736 {strides = array<i32>} : memref<16x1x128xf32, #tpu.memory_space<vmem>>, vector<1x1x128xf32>,
    %737 = vector.extract_strided_slice %684 {offsets = [13, 0], sizes = [1, 128], strides = [1, 1]} : vector<16x128xf32> to vector<1x128xf32>
    %c13_452 = arith.constant 13 : index
    %c0_453 = arith.constant 0 : index
    %c0_454 = arith.constant 0 : index
    %738 = vector.load %arg17[%c13_452, %c0_453, %c0_454] : memref<16x1x128xf32, #tpu.memory_space<vmem>>, vector<1x1x128xf32>
    %739 = vector.shape_cast %738 : vector<1x1x128xf32> to vector<1x128xf32>
    %740 = vector.shape_cast %737 : vector<1x128xf32> to vector<1x1x128xf32>
    tpu.vector_store %arg17[%c13_452, %c0_453, %c0_454], %740 {strides = array<i32>} : memref<16x1x128xf32, #tpu.memory_space<vmem>>, vector<1x1x128xf32>,
    %741 = vector.extract_strided_slice %684 {offsets = [14, 0], sizes = [1, 128], strides = [1, 1]} : vector<16x128xf32> to vector<1x128xf32>
    %c14_455 = arith.constant 14 : index
    %c0_456 = arith.constant 0 : index
    %c0_457 = arith.constant 0 : index
    %742 = vector.load %arg17[%c14_455, %c0_456, %c0_457] : memref<16x1x128xf32, #tpu.memory_space<vmem>>, vector<1x1x128xf32>
    %743 = vector.shape_cast %742 : vector<1x1x128xf32> to vector<1x128xf32>
    %744 = vector.shape_cast %741 : vector<1x128xf32> to vector<1x1x128xf32>
    tpu.vector_store %arg17[%c14_455, %c0_456, %c0_457], %744 {strides = array<i32>} : memref<16x1x128xf32, #tpu.memory_space<vmem>>, vector<1x1x128xf32>,
    %745 = vector.extract_strided_slice %684 {offsets = [15, 0], sizes = [1, 128], strides = [1, 1]} : vector<16x128xf32> to vector<1x128xf32>
    %c15_458 = arith.constant 15 : index
    %c0_459 = arith.constant 0 : index
    %c0_460 = arith.constant 0 : index
    %746 = vector.load %arg17[%c15_458, %c0_459, %c0_460] : memref<16x1x128xf32, #tpu.memory_space<vmem>>, vector<1x1x128xf32>
    %747 = vector.shape_cast %746 : vector<1x1x128xf32> to vector<1x128xf32>
    %748 = vector.shape_cast %745 : vector<1x128xf32> to vector<1x1x128xf32>
    tpu.vector_store %arg17[%c15_458, %c0_459, %c0_460], %748 {strides = array<i32>} : memref<16x1x128xf32, #tpu.memory_space<vmem>>, vector<1x1x128xf32>,
    %cst_461 = arith.constant 0.000000e+00 : f32
    %749 = vector.broadcast %cst_461 : f32 to vector<16x1x128xf32>
    %c0_462 = arith.constant 0 : index
    %c0_463 = arith.constant 0 : index
    %c0_464 = arith.constant 0 : index
    %750 = vector.load %arg18[%c0_462, %c0_463, %c0_464] : memref<16x1x128xf32, #tpu.memory_space<vmem>>, vector<16x1x128xf32>
    tpu.vector_store %arg18[%c0_462, %c0_463, %c0_464], %749 {strides = array<i32>} : memref<16x1x128xf32, #tpu.memory_space<vmem>>, vector<16x1x128xf32>,
    %c0_465 = arith.constant 0 : index
    %751 = memref.load %arg0[%c0_465] : memref<32xi32, #tpu.memory_space<smem>>
    %c0_466 = arith.constant 0 : index
    %752 = memref.load %arg1[%c0_466] : memref<32xi32, #tpu.memory_space<smem>>
    %753 = arith.index_cast %751 : i32 to index
    %c0_467 = arith.constant 0 : index
    %c0_468 = arith.constant 0 : index
    %754 = vector.load %arg17[%753, %c0_467, %c0_468] : memref<16x1x128xf32, #tpu.memory_space<vmem>>, vector<1x1x128xf32>
    %755 = vector.shape_cast %754 : vector<1x1x128xf32> to vector<1x128xf32>
    %756 = vector.extract_strided_slice %15 {offsets = [0, 0], sizes = [1, 128], strides = [1, 1]} : vector<32x128xf32> to vector<1x128xf32>
    %757 = arith.addf %755, %756 : vector<1x128xf32>
    %cst_469 = arith.constant 0.000000e+00 : f32
    %758 = vector.broadcast %cst_469 : f32 to vector<1x128xf32>
    %759 = arith.maximumf %757, %758 : vector<1x128xf32>
    %760 = arith.index_cast %752 : i32 to index
    %c0_470 = arith.constant 0 : index
    %c0_471 = arith.constant 0 : index
    %761 = vector.load %arg18[%760, %c0_470, %c0_471] : memref<16x1x128xf32, #tpu.memory_space<vmem>>, vector<1x1x128xf32>
    %762 = vector.shape_cast %761 : vector<1x1x128xf32> to vector<1x128xf32>
    %763 = arith.addf %762, %759 : vector<1x128xf32>
    %764 = arith.index_cast %752 : i32 to index
    %c0_472 = arith.constant 0 : index
    %c0_473 = arith.constant 0 : index
    %765 = vector.load %arg18[%764, %c0_472, %c0_473] : memref<16x1x128xf32, #tpu.memory_space<vmem>>, vector<1x1x128xf32>
    %766 = vector.shape_cast %765 : vector<1x1x128xf32> to vector<1x128xf32>
    %767 = vector.shape_cast %763 : vector<1x128xf32> to vector<1x1x128xf32>
    tpu.vector_store %arg18[%764, %c0_472, %c0_473], %767 {strides = array<i32>} : memref<16x1x128xf32, #tpu.memory_space<vmem>>, vector<1x1x128xf32>,
    %c1_474 = arith.constant 1 : index
    %768 = memref.load %arg0[%c1_474] : memref<32xi32, #tpu.memory_space<smem>>
    %c1_475 = arith.constant 1 : index
    %769 = memref.load %arg1[%c1_475] : memref<32xi32, #tpu.memory_space<smem>>
    %770 = arith.index_cast %768 : i32 to index
    %c0_476 = arith.constant 0 : index
    %c0_477 = arith.constant 0 : index
    %771 = vector.load %arg17[%770, %c0_476, %c0_477] : memref<16x1x128xf32, #tpu.memory_space<vmem>>, vector<1x1x128xf32>
    %772 = vector.shape_cast %771 : vector<1x1x128xf32> to vector<1x128xf32>
    %773 = vector.extract_strided_slice %15 {offsets = [1, 0], sizes = [1, 128], strides = [1, 1]} : vector<32x128xf32> to vector<1x128xf32>
    %774 = arith.addf %772, %773 : vector<1x128xf32>
    %cst_478 = arith.constant 0.000000e+00 : f32
    %775 = vector.broadcast %cst_478 : f32 to vector<1x128xf32>
    %776 = arith.maximumf %774, %775 : vector<1x128xf32>
    %777 = arith.index_cast %769 : i32 to index
    %c0_479 = arith.constant 0 : index
    %c0_480 = arith.constant 0 : index
    %778 = vector.load %arg18[%777, %c0_479, %c0_480] : memref<16x1x128xf32, #tpu.memory_space<vmem>>, vector<1x1x128xf32>
    %779 = vector.shape_cast %778 : vector<1x1x128xf32> to vector<1x128xf32>
    %780 = arith.addf %779, %776 : vector<1x128xf32>
    %781 = arith.index_cast %769 : i32 to index
    %c0_481 = arith.constant 0 : index
    %c0_482 = arith.constant 0 : index
    %782 = vector.load %arg18[%781, %c0_481, %c0_482] : memref<16x1x128xf32, #tpu.memory_space<vmem>>, vector<1x1x128xf32>
    %783 = vector.shape_cast %782 : vector<1x1x128xf32> to vector<1x128xf32>
    %784 = vector.shape_cast %780 : vector<1x128xf32> to vector<1x1x128xf32>
    tpu.vector_store %arg18[%781, %c0_481, %c0_482], %784 {strides = array<i32>} : memref<16x1x128xf32, #tpu.memory_space<vmem>>, vector<1x1x128xf32>,
    %c2_483 = arith.constant 2 : index
    %785 = memref.load %arg0[%c2_483] : memref<32xi32, #tpu.memory_space<smem>>
    %c2_484 = arith.constant 2 : index
    %786 = memref.load %arg1[%c2_484] : memref<32xi32, #tpu.memory_space<smem>>
    %787 = arith.index_cast %785 : i32 to index
    %c0_485 = arith.constant 0 : index
    %c0_486 = arith.constant 0 : index
    %788 = vector.load %arg17[%787, %c0_485, %c0_486] : memref<16x1x128xf32, #tpu.memory_space<vmem>>, vector<1x1x128xf32>
    %789 = vector.shape_cast %788 : vector<1x1x128xf32> to vector<1x128xf32>
    %790 = vector.extract_strided_slice %15 {offsets = [2, 0], sizes = [1, 128], strides = [1, 1]} : vector<32x128xf32> to vector<1x128xf32>
    %791 = arith.addf %789, %790 : vector<1x128xf32>
    %cst_487 = arith.constant 0.000000e+00 : f32
    %792 = vector.broadcast %cst_487 : f32 to vector<1x128xf32>
    %793 = arith.maximumf %791, %792 : vector<1x128xf32>
    %794 = arith.index_cast %786 : i32 to index
    %c0_488 = arith.constant 0 : index
    %c0_489 = arith.constant 0 : index
    %795 = vector.load %arg18[%794, %c0_488, %c0_489] : memref<16x1x128xf32, #tpu.memory_space<vmem>>, vector<1x1x128xf32>
    %796 = vector.shape_cast %795 : vector<1x1x128xf32> to vector<1x128xf32>
    %797 = arith.addf %796, %793 : vector<1x128xf32>
    %798 = arith.index_cast %786 : i32 to index
    %c0_490 = arith.constant 0 : index
    %c0_491 = arith.constant 0 : index
    %799 = vector.load %arg18[%798, %c0_490, %c0_491] : memref<16x1x128xf32, #tpu.memory_space<vmem>>, vector<1x1x128xf32>
    %800 = vector.shape_cast %799 : vector<1x1x128xf32> to vector<1x128xf32>
    %801 = vector.shape_cast %797 : vector<1x128xf32> to vector<1x1x128xf32>
    tpu.vector_store %arg18[%798, %c0_490, %c0_491], %801 {strides = array<i32>} : memref<16x1x128xf32, #tpu.memory_space<vmem>>, vector<1x1x128xf32>,
    %c3_492 = arith.constant 3 : index
    %802 = memref.load %arg0[%c3_492] : memref<32xi32, #tpu.memory_space<smem>>
    %c3_493 = arith.constant 3 : index
    %803 = memref.load %arg1[%c3_493] : memref<32xi32, #tpu.memory_space<smem>>
    %804 = arith.index_cast %802 : i32 to index
    %c0_494 = arith.constant 0 : index
    %c0_495 = arith.constant 0 : index
    %805 = vector.load %arg17[%804, %c0_494, %c0_495] : memref<16x1x128xf32, #tpu.memory_space<vmem>>, vector<1x1x128xf32>
    %806 = vector.shape_cast %805 : vector<1x1x128xf32> to vector<1x128xf32>
    %807 = vector.extract_strided_slice %15 {offsets = [3, 0], sizes = [1, 128], strides = [1, 1]} : vector<32x128xf32> to vector<1x128xf32>
    %808 = arith.addf %806, %807 : vector<1x128xf32>
    %cst_496 = arith.constant 0.000000e+00 : f32
    %809 = vector.broadcast %cst_496 : f32 to vector<1x128xf32>
    %810 = arith.maximumf %808, %809 : vector<1x128xf32>
    %811 = arith.index_cast %803 : i32 to index
    %c0_497 = arith.constant 0 : index
    %c0_498 = arith.constant 0 : index
    %812 = vector.load %arg18[%811, %c0_497, %c0_498] : memref<16x1x128xf32, #tpu.memory_space<vmem>>, vector<1x1x128xf32>
    %813 = vector.shape_cast %812 : vector<1x1x128xf32> to vector<1x128xf32>
    %814 = arith.addf %813, %810 : vector<1x128xf32>
    %815 = arith.index_cast %803 : i32 to index
    %c0_499 = arith.constant 0 : index
    %c0_500 = arith.constant 0 : index
    %816 = vector.load %arg18[%815, %c0_499, %c0_500] : memref<16x1x128xf32, #tpu.memory_space<vmem>>, vector<1x1x128xf32>
    %817 = vector.shape_cast %816 : vector<1x1x128xf32> to vector<1x128xf32>
    %818 = vector.shape_cast %814 : vector<1x128xf32> to vector<1x1x128xf32>
    tpu.vector_store %arg18[%815, %c0_499, %c0_500], %818 {strides = array<i32>} : memref<16x1x128xf32, #tpu.memory_space<vmem>>, vector<1x1x128xf32>,
    %c4_501 = arith.constant 4 : index
    %819 = memref.load %arg0[%c4_501] : memref<32xi32, #tpu.memory_space<smem>>
    %c4_502 = arith.constant 4 : index
    %820 = memref.load %arg1[%c4_502] : memref<32xi32, #tpu.memory_space<smem>>
    %821 = arith.index_cast %819 : i32 to index
    %c0_503 = arith.constant 0 : index
    %c0_504 = arith.constant 0 : index
    %822 = vector.load %arg17[%821, %c0_503, %c0_504] : memref<16x1x128xf32, #tpu.memory_space<vmem>>, vector<1x1x128xf32>
    %823 = vector.shape_cast %822 : vector<1x1x128xf32> to vector<1x128xf32>
    %824 = vector.extract_strided_slice %15 {offsets = [4, 0], sizes = [1, 128], strides = [1, 1]} : vector<32x128xf32> to vector<1x128xf32>
    %825 = arith.addf %823, %824 : vector<1x128xf32>
    %cst_505 = arith.constant 0.000000e+00 : f32
    %826 = vector.broadcast %cst_505 : f32 to vector<1x128xf32>
    %827 = arith.maximumf %825, %826 : vector<1x128xf32>
    %828 = arith.index_cast %820 : i32 to index
    %c0_506 = arith.constant 0 : index
    %c0_507 = arith.constant 0 : index
    %829 = vector.load %arg18[%828, %c0_506, %c0_507] : memref<16x1x128xf32, #tpu.memory_space<vmem>>, vector<1x1x128xf32>
    %830 = vector.shape_cast %829 : vector<1x1x128xf32> to vector<1x128xf32>
    %831 = arith.addf %830, %827 : vector<1x128xf32>
    %832 = arith.index_cast %820 : i32 to index
    %c0_508 = arith.constant 0 : index
    %c0_509 = arith.constant 0 : index
    %833 = vector.load %arg18[%832, %c0_508, %c0_509] : memref<16x1x128xf32, #tpu.memory_space<vmem>>, vector<1x1x128xf32>
    %834 = vector.shape_cast %833 : vector<1x1x128xf32> to vector<1x128xf32>
    %835 = vector.shape_cast %831 : vector<1x128xf32> to vector<1x1x128xf32>
    tpu.vector_store %arg18[%832, %c0_508, %c0_509], %835 {strides = array<i32>} : memref<16x1x128xf32, #tpu.memory_space<vmem>>, vector<1x1x128xf32>,
    %c5_510 = arith.constant 5 : index
    %836 = memref.load %arg0[%c5_510] : memref<32xi32, #tpu.memory_space<smem>>
    %c5_511 = arith.constant 5 : index
    %837 = memref.load %arg1[%c5_511] : memref<32xi32, #tpu.memory_space<smem>>
    %838 = arith.index_cast %836 : i32 to index
    %c0_512 = arith.constant 0 : index
    %c0_513 = arith.constant 0 : index
    %839 = vector.load %arg17[%838, %c0_512, %c0_513] : memref<16x1x128xf32, #tpu.memory_space<vmem>>, vector<1x1x128xf32>
    %840 = vector.shape_cast %839 : vector<1x1x128xf32> to vector<1x128xf32>
    %841 = vector.extract_strided_slice %15 {offsets = [5, 0], sizes = [1, 128], strides = [1, 1]} : vector<32x128xf32> to vector<1x128xf32>
    %842 = arith.addf %840, %841 : vector<1x128xf32>
    %cst_514 = arith.constant 0.000000e+00 : f32
    %843 = vector.broadcast %cst_514 : f32 to vector<1x128xf32>
    %844 = arith.maximumf %842, %843 : vector<1x128xf32>
    %845 = arith.index_cast %837 : i32 to index
    %c0_515 = arith.constant 0 : index
    %c0_516 = arith.constant 0 : index
    %846 = vector.load %arg18[%845, %c0_515, %c0_516] : memref<16x1x128xf32, #tpu.memory_space<vmem>>, vector<1x1x128xf32>
    %847 = vector.shape_cast %846 : vector<1x1x128xf32> to vector<1x128xf32>
    %848 = arith.addf %847, %844 : vector<1x128xf32>
    %849 = arith.index_cast %837 : i32 to index
    %c0_517 = arith.constant 0 : index
    %c0_518 = arith.constant 0 : index
    %850 = vector.load %arg18[%849, %c0_517, %c0_518] : memref<16x1x128xf32, #tpu.memory_space<vmem>>, vector<1x1x128xf32>
    %851 = vector.shape_cast %850 : vector<1x1x128xf32> to vector<1x128xf32>
    %852 = vector.shape_cast %848 : vector<1x128xf32> to vector<1x1x128xf32>
    tpu.vector_store %arg18[%849, %c0_517, %c0_518], %852 {strides = array<i32>} : memref<16x1x128xf32, #tpu.memory_space<vmem>>, vector<1x1x128xf32>,
    %c6_519 = arith.constant 6 : index
    %853 = memref.load %arg0[%c6_519] : memref<32xi32, #tpu.memory_space<smem>>
    %c6_520 = arith.constant 6 : index
    %854 = memref.load %arg1[%c6_520] : memref<32xi32, #tpu.memory_space<smem>>
    %855 = arith.index_cast %853 : i32 to index
    %c0_521 = arith.constant 0 : index
    %c0_522 = arith.constant 0 : index
    %856 = vector.load %arg17[%855, %c0_521, %c0_522] : memref<16x1x128xf32, #tpu.memory_space<vmem>>, vector<1x1x128xf32>
    %857 = vector.shape_cast %856 : vector<1x1x128xf32> to vector<1x128xf32>
    %858 = vector.extract_strided_slice %15 {offsets = [6, 0], sizes = [1, 128], strides = [1, 1]} : vector<32x128xf32> to vector<1x128xf32>
    %859 = arith.addf %857, %858 : vector<1x128xf32>
    %cst_523 = arith.constant 0.000000e+00 : f32
    %860 = vector.broadcast %cst_523 : f32 to vector<1x128xf32>
    %861 = arith.maximumf %859, %860 : vector<1x128xf32>
    %862 = arith.index_cast %854 : i32 to index
    %c0_524 = arith.constant 0 : index
    %c0_525 = arith.constant 0 : index
    %863 = vector.load %arg18[%862, %c0_524, %c0_525] : memref<16x1x128xf32, #tpu.memory_space<vmem>>, vector<1x1x128xf32>
    %864 = vector.shape_cast %863 : vector<1x1x128xf32> to vector<1x128xf32>
    %865 = arith.addf %864, %861 : vector<1x128xf32>
    %866 = arith.index_cast %854 : i32 to index
    %c0_526 = arith.constant 0 : index
    %c0_527 = arith.constant 0 : index
    %867 = vector.load %arg18[%866, %c0_526, %c0_527] : memref<16x1x128xf32, #tpu.memory_space<vmem>>, vector<1x1x128xf32>
    %868 = vector.shape_cast %867 : vector<1x1x128xf32> to vector<1x128xf32>
    %869 = vector.shape_cast %865 : vector<1x128xf32> to vector<1x1x128xf32>
    tpu.vector_store %arg18[%866, %c0_526, %c0_527], %869 {strides = array<i32>} : memref<16x1x128xf32, #tpu.memory_space<vmem>>, vector<1x1x128xf32>,
    %c7_528 = arith.constant 7 : index
    %870 = memref.load %arg0[%c7_528] : memref<32xi32, #tpu.memory_space<smem>>
    %c7_529 = arith.constant 7 : index
    %871 = memref.load %arg1[%c7_529] : memref<32xi32, #tpu.memory_space<smem>>
    %872 = arith.index_cast %870 : i32 to index
    %c0_530 = arith.constant 0 : index
    %c0_531 = arith.constant 0 : index
    %873 = vector.load %arg17[%872, %c0_530, %c0_531] : memref<16x1x128xf32, #tpu.memory_space<vmem>>, vector<1x1x128xf32>
    %874 = vector.shape_cast %873 : vector<1x1x128xf32> to vector<1x128xf32>
    %875 = vector.extract_strided_slice %15 {offsets = [7, 0], sizes = [1, 128], strides = [1, 1]} : vector<32x128xf32> to vector<1x128xf32>
    %876 = arith.addf %874, %875 : vector<1x128xf32>
    %cst_532 = arith.constant 0.000000e+00 : f32
    %877 = vector.broadcast %cst_532 : f32 to vector<1x128xf32>
    %878 = arith.maximumf %876, %877 : vector<1x128xf32>
    %879 = arith.index_cast %871 : i32 to index
    %c0_533 = arith.constant 0 : index
    %c0_534 = arith.constant 0 : index
    %880 = vector.load %arg18[%879, %c0_533, %c0_534] : memref<16x1x128xf32, #tpu.memory_space<vmem>>, vector<1x1x128xf32>
    %881 = vector.shape_cast %880 : vector<1x1x128xf32> to vector<1x128xf32>
    %882 = arith.addf %881, %878 : vector<1x128xf32>
    %883 = arith.index_cast %871 : i32 to index
    %c0_535 = arith.constant 0 : index
    %c0_536 = arith.constant 0 : index
    %884 = vector.load %arg18[%883, %c0_535, %c0_536] : memref<16x1x128xf32, #tpu.memory_space<vmem>>, vector<1x1x128xf32>
    %885 = vector.shape_cast %884 : vector<1x1x128xf32> to vector<1x128xf32>
    %886 = vector.shape_cast %882 : vector<1x128xf32> to vector<1x1x128xf32>
    tpu.vector_store %arg18[%883, %c0_535, %c0_536], %886 {strides = array<i32>} : memref<16x1x128xf32, #tpu.memory_space<vmem>>, vector<1x1x128xf32>,
    %c8_537 = arith.constant 8 : index
    %887 = memref.load %arg0[%c8_537] : memref<32xi32, #tpu.memory_space<smem>>
    %c8_538 = arith.constant 8 : index
    %888 = memref.load %arg1[%c8_538] : memref<32xi32, #tpu.memory_space<smem>>
    %889 = arith.index_cast %887 : i32 to index
    %c0_539 = arith.constant 0 : index
    %c0_540 = arith.constant 0 : index
    %890 = vector.load %arg17[%889, %c0_539, %c0_540] : memref<16x1x128xf32, #tpu.memory_space<vmem>>, vector<1x1x128xf32>
    %891 = vector.shape_cast %890 : vector<1x1x128xf32> to vector<1x128xf32>
    %892 = vector.extract_strided_slice %15 {offsets = [8, 0], sizes = [1, 128], strides = [1, 1]} : vector<32x128xf32> to vector<1x128xf32>
    %893 = arith.addf %891, %892 : vector<1x128xf32>
    %cst_541 = arith.constant 0.000000e+00 : f32
    %894 = vector.broadcast %cst_541 : f32 to vector<1x128xf32>
    %895 = arith.maximumf %893, %894 : vector<1x128xf32>
    %896 = arith.index_cast %888 : i32 to index
    %c0_542 = arith.constant 0 : index
    %c0_543 = arith.constant 0 : index
    %897 = vector.load %arg18[%896, %c0_542, %c0_543] : memref<16x1x128xf32, #tpu.memory_space<vmem>>, vector<1x1x128xf32>
    %898 = vector.shape_cast %897 : vector<1x1x128xf32> to vector<1x128xf32>
    %899 = arith.addf %898, %895 : vector<1x128xf32>
    %900 = arith.index_cast %888 : i32 to index
    %c0_544 = arith.constant 0 : index
    %c0_545 = arith.constant 0 : index
    %901 = vector.load %arg18[%900, %c0_544, %c0_545] : memref<16x1x128xf32, #tpu.memory_space<vmem>>, vector<1x1x128xf32>
    %902 = vector.shape_cast %901 : vector<1x1x128xf32> to vector<1x128xf32>
    %903 = vector.shape_cast %899 : vector<1x128xf32> to vector<1x1x128xf32>
    tpu.vector_store %arg18[%900, %c0_544, %c0_545], %903 {strides = array<i32>} : memref<16x1x128xf32, #tpu.memory_space<vmem>>, vector<1x1x128xf32>,
    %c9_546 = arith.constant 9 : index
    %904 = memref.load %arg0[%c9_546] : memref<32xi32, #tpu.memory_space<smem>>
    %c9_547 = arith.constant 9 : index
    %905 = memref.load %arg1[%c9_547] : memref<32xi32, #tpu.memory_space<smem>>
    %906 = arith.index_cast %904 : i32 to index
    %c0_548 = arith.constant 0 : index
    %c0_549 = arith.constant 0 : index
    %907 = vector.load %arg17[%906, %c0_548, %c0_549] : memref<16x1x128xf32, #tpu.memory_space<vmem>>, vector<1x1x128xf32>
    %908 = vector.shape_cast %907 : vector<1x1x128xf32> to vector<1x128xf32>
    %909 = vector.extract_strided_slice %15 {offsets = [9, 0], sizes = [1, 128], strides = [1, 1]} : vector<32x128xf32> to vector<1x128xf32>
    %910 = arith.addf %908, %909 : vector<1x128xf32>
    %cst_550 = arith.constant 0.000000e+00 : f32
    %911 = vector.broadcast %cst_550 : f32 to vector<1x128xf32>
    %912 = arith.maximumf %910, %911 : vector<1x128xf32>
    %913 = arith.index_cast %905 : i32 to index
    %c0_551 = arith.constant 0 : index
    %c0_552 = arith.constant 0 : index
    %914 = vector.load %arg18[%913, %c0_551, %c0_552] : memref<16x1x128xf32, #tpu.memory_space<vmem>>, vector<1x1x128xf32>
    %915 = vector.shape_cast %914 : vector<1x1x128xf32> to vector<1x128xf32>
    %916 = arith.addf %915, %912 : vector<1x128xf32>
    %917 = arith.index_cast %905 : i32 to index
    %c0_553 = arith.constant 0 : index
    %c0_554 = arith.constant 0 : index
    %918 = vector.load %arg18[%917, %c0_553, %c0_554] : memref<16x1x128xf32, #tpu.memory_space<vmem>>, vector<1x1x128xf32>
    %919 = vector.shape_cast %918 : vector<1x1x128xf32> to vector<1x128xf32>
    %920 = vector.shape_cast %916 : vector<1x128xf32> to vector<1x1x128xf32>
    tpu.vector_store %arg18[%917, %c0_553, %c0_554], %920 {strides = array<i32>} : memref<16x1x128xf32, #tpu.memory_space<vmem>>, vector<1x1x128xf32>,
    %c10_555 = arith.constant 10 : index
    %921 = memref.load %arg0[%c10_555] : memref<32xi32, #tpu.memory_space<smem>>
    %c10_556 = arith.constant 10 : index
    %922 = memref.load %arg1[%c10_556] : memref<32xi32, #tpu.memory_space<smem>>
    %923 = arith.index_cast %921 : i32 to index
    %c0_557 = arith.constant 0 : index
    %c0_558 = arith.constant 0 : index
    %924 = vector.load %arg17[%923, %c0_557, %c0_558] : memref<16x1x128xf32, #tpu.memory_space<vmem>>, vector<1x1x128xf32>
    %925 = vector.shape_cast %924 : vector<1x1x128xf32> to vector<1x128xf32>
    %926 = vector.extract_strided_slice %15 {offsets = [10, 0], sizes = [1, 128], strides = [1, 1]} : vector<32x128xf32> to vector<1x128xf32>
    %927 = arith.addf %925, %926 : vector<1x128xf32>
    %cst_559 = arith.constant 0.000000e+00 : f32
    %928 = vector.broadcast %cst_559 : f32 to vector<1x128xf32>
    %929 = arith.maximumf %927, %928 : vector<1x128xf32>
    %930 = arith.index_cast %922 : i32 to index
    %c0_560 = arith.constant 0 : index
    %c0_561 = arith.constant 0 : index
    %931 = vector.load %arg18[%930, %c0_560, %c0_561] : memref<16x1x128xf32, #tpu.memory_space<vmem>>, vector<1x1x128xf32>
    %932 = vector.shape_cast %931 : vector<1x1x128xf32> to vector<1x128xf32>
    %933 = arith.addf %932, %929 : vector<1x128xf32>
    %934 = arith.index_cast %922 : i32 to index
    %c0_562 = arith.constant 0 : index
    %c0_563 = arith.constant 0 : index
    %935 = vector.load %arg18[%934, %c0_562, %c0_563] : memref<16x1x128xf32, #tpu.memory_space<vmem>>, vector<1x1x128xf32>
    %936 = vector.shape_cast %935 : vector<1x1x128xf32> to vector<1x128xf32>
    %937 = vector.shape_cast %933 : vector<1x128xf32> to vector<1x1x128xf32>
    tpu.vector_store %arg18[%934, %c0_562, %c0_563], %937 {strides = array<i32>} : memref<16x1x128xf32, #tpu.memory_space<vmem>>, vector<1x1x128xf32>,
    %c11_564 = arith.constant 11 : index
    %938 = memref.load %arg0[%c11_564] : memref<32xi32, #tpu.memory_space<smem>>
    %c11_565 = arith.constant 11 : index
    %939 = memref.load %arg1[%c11_565] : memref<32xi32, #tpu.memory_space<smem>>
    %940 = arith.index_cast %938 : i32 to index
    %c0_566 = arith.constant 0 : index
    %c0_567 = arith.constant 0 : index
    %941 = vector.load %arg17[%940, %c0_566, %c0_567] : memref<16x1x128xf32, #tpu.memory_space<vmem>>, vector<1x1x128xf32>
    %942 = vector.shape_cast %941 : vector<1x1x128xf32> to vector<1x128xf32>
    %943 = vector.extract_strided_slice %15 {offsets = [11, 0], sizes = [1, 128], strides = [1, 1]} : vector<32x128xf32> to vector<1x128xf32>
    %944 = arith.addf %942, %943 : vector<1x128xf32>
    %cst_568 = arith.constant 0.000000e+00 : f32
    %945 = vector.broadcast %cst_568 : f32 to vector<1x128xf32>
    %946 = arith.maximumf %944, %945 : vector<1x128xf32>
    %947 = arith.index_cast %939 : i32 to index
    %c0_569 = arith.constant 0 : index
    %c0_570 = arith.constant 0 : index
    %948 = vector.load %arg18[%947, %c0_569, %c0_570] : memref<16x1x128xf32, #tpu.memory_space<vmem>>, vector<1x1x128xf32>
    %949 = vector.shape_cast %948 : vector<1x1x128xf32> to vector<1x128xf32>
    %950 = arith.addf %949, %946 : vector<1x128xf32>
    %951 = arith.index_cast %939 : i32 to index
    %c0_571 = arith.constant 0 : index
    %c0_572 = arith.constant 0 : index
    %952 = vector.load %arg18[%951, %c0_571, %c0_572] : memref<16x1x128xf32, #tpu.memory_space<vmem>>, vector<1x1x128xf32>
    %953 = vector.shape_cast %952 : vector<1x1x128xf32> to vector<1x128xf32>
    %954 = vector.shape_cast %950 : vector<1x128xf32> to vector<1x1x128xf32>
    tpu.vector_store %arg18[%951, %c0_571, %c0_572], %954 {strides = array<i32>} : memref<16x1x128xf32, #tpu.memory_space<vmem>>, vector<1x1x128xf32>,
    %c12_573 = arith.constant 12 : index
    %955 = memref.load %arg0[%c12_573] : memref<32xi32, #tpu.memory_space<smem>>
    %c12_574 = arith.constant 12 : index
    %956 = memref.load %arg1[%c12_574] : memref<32xi32, #tpu.memory_space<smem>>
    %957 = arith.index_cast %955 : i32 to index
    %c0_575 = arith.constant 0 : index
    %c0_576 = arith.constant 0 : index
    %958 = vector.load %arg17[%957, %c0_575, %c0_576] : memref<16x1x128xf32, #tpu.memory_space<vmem>>, vector<1x1x128xf32>
    %959 = vector.shape_cast %958 : vector<1x1x128xf32> to vector<1x128xf32>
    %960 = vector.extract_strided_slice %15 {offsets = [12, 0], sizes = [1, 128], strides = [1, 1]} : vector<32x128xf32> to vector<1x128xf32>
    %961 = arith.addf %959, %960 : vector<1x128xf32>
    %cst_577 = arith.constant 0.000000e+00 : f32
    %962 = vector.broadcast %cst_577 : f32 to vector<1x128xf32>
    %963 = arith.maximumf %961, %962 : vector<1x128xf32>
    %964 = arith.index_cast %956 : i32 to index
    %c0_578 = arith.constant 0 : index
    %c0_579 = arith.constant 0 : index
    %965 = vector.load %arg18[%964, %c0_578, %c0_579] : memref<16x1x128xf32, #tpu.memory_space<vmem>>, vector<1x1x128xf32>
    %966 = vector.shape_cast %965 : vector<1x1x128xf32> to vector<1x128xf32>
    %967 = arith.addf %966, %963 : vector<1x128xf32>
    %968 = arith.index_cast %956 : i32 to index
    %c0_580 = arith.constant 0 : index
    %c0_581 = arith.constant 0 : index
    %969 = vector.load %arg18[%968, %c0_580, %c0_581] : memref<16x1x128xf32, #tpu.memory_space<vmem>>, vector<1x1x128xf32>
    %970 = vector.shape_cast %969 : vector<1x1x128xf32> to vector<1x128xf32>
    %971 = vector.shape_cast %967 : vector<1x128xf32> to vector<1x1x128xf32>
    tpu.vector_store %arg18[%968, %c0_580, %c0_581], %971 {strides = array<i32>} : memref<16x1x128xf32, #tpu.memory_space<vmem>>, vector<1x1x128xf32>,
    %c13_582 = arith.constant 13 : index
    %972 = memref.load %arg0[%c13_582] : memref<32xi32, #tpu.memory_space<smem>>
    %c13_583 = arith.constant 13 : index
    %973 = memref.load %arg1[%c13_583] : memref<32xi32, #tpu.memory_space<smem>>
    %974 = arith.index_cast %972 : i32 to index
    %c0_584 = arith.constant 0 : index
    %c0_585 = arith.constant 0 : index
    %975 = vector.load %arg17[%974, %c0_584, %c0_585] : memref<16x1x128xf32, #tpu.memory_space<vmem>>, vector<1x1x128xf32>
    %976 = vector.shape_cast %975 : vector<1x1x128xf32> to vector<1x128xf32>
    %977 = vector.extract_strided_slice %15 {offsets = [13, 0], sizes = [1, 128], strides = [1, 1]} : vector<32x128xf32> to vector<1x128xf32>
    %978 = arith.addf %976, %977 : vector<1x128xf32>
    %cst_586 = arith.constant 0.000000e+00 : f32
    %979 = vector.broadcast %cst_586 : f32 to vector<1x128xf32>
    %980 = arith.maximumf %978, %979 : vector<1x128xf32>
    %981 = arith.index_cast %973 : i32 to index
    %c0_587 = arith.constant 0 : index
    %c0_588 = arith.constant 0 : index
    %982 = vector.load %arg18[%981, %c0_587, %c0_588] : memref<16x1x128xf32, #tpu.memory_space<vmem>>, vector<1x1x128xf32>
    %983 = vector.shape_cast %982 : vector<1x1x128xf32> to vector<1x128xf32>
    %984 = arith.addf %983, %980 : vector<1x128xf32>
    %985 = arith.index_cast %973 : i32 to index
    %c0_589 = arith.constant 0 : index
    %c0_590 = arith.constant 0 : index
    %986 = vector.load %arg18[%985, %c0_589, %c0_590] : memref<16x1x128xf32, #tpu.memory_space<vmem>>, vector<1x1x128xf32>
    %987 = vector.shape_cast %986 : vector<1x1x128xf32> to vector<1x128xf32>
    %988 = vector.shape_cast %984 : vector<1x128xf32> to vector<1x1x128xf32>
    tpu.vector_store %arg18[%985, %c0_589, %c0_590], %988 {strides = array<i32>} : memref<16x1x128xf32, #tpu.memory_space<vmem>>, vector<1x1x128xf32>,
    %c14_591 = arith.constant 14 : index
    %989 = memref.load %arg0[%c14_591] : memref<32xi32, #tpu.memory_space<smem>>
    %c14_592 = arith.constant 14 : index
    %990 = memref.load %arg1[%c14_592] : memref<32xi32, #tpu.memory_space<smem>>
    %991 = arith.index_cast %989 : i32 to index
    %c0_593 = arith.constant 0 : index
    %c0_594 = arith.constant 0 : index
    %992 = vector.load %arg17[%991, %c0_593, %c0_594] : memref<16x1x128xf32, #tpu.memory_space<vmem>>, vector<1x1x128xf32>
    %993 = vector.shape_cast %992 : vector<1x1x128xf32> to vector<1x128xf32>
    %994 = vector.extract_strided_slice %15 {offsets = [14, 0], sizes = [1, 128], strides = [1, 1]} : vector<32x128xf32> to vector<1x128xf32>
    %995 = arith.addf %993, %994 : vector<1x128xf32>
    %cst_595 = arith.constant 0.000000e+00 : f32
    %996 = vector.broadcast %cst_595 : f32 to vector<1x128xf32>
    %997 = arith.maximumf %995, %996 : vector<1x128xf32>
    %998 = arith.index_cast %990 : i32 to index
    %c0_596 = arith.constant 0 : index
    %c0_597 = arith.constant 0 : index
    %999 = vector.load %arg18[%998, %c0_596, %c0_597] : memref<16x1x128xf32, #tpu.memory_space<vmem>>, vector<1x1x128xf32>
    %1000 = vector.shape_cast %999 : vector<1x1x128xf32> to vector<1x128xf32>
    %1001 = arith.addf %1000, %997 : vector<1x128xf32>
    %1002 = arith.index_cast %990 : i32 to index
    %c0_598 = arith.constant 0 : index
    %c0_599 = arith.constant 0 : index
    %1003 = vector.load %arg18[%1002, %c0_598, %c0_599] : memref<16x1x128xf32, #tpu.memory_space<vmem>>, vector<1x1x128xf32>
    %1004 = vector.shape_cast %1003 : vector<1x1x128xf32> to vector<1x128xf32>
    %1005 = vector.shape_cast %1001 : vector<1x128xf32> to vector<1x1x128xf32>
    tpu.vector_store %arg18[%1002, %c0_598, %c0_599], %1005 {strides = array<i32>} : memref<16x1x128xf32, #tpu.memory_space<vmem>>, vector<1x1x128xf32>,
    %c15_600 = arith.constant 15 : index
    %1006 = memref.load %arg0[%c15_600] : memref<32xi32, #tpu.memory_space<smem>>
    %c15_601 = arith.constant 15 : index
    %1007 = memref.load %arg1[%c15_601] : memref<32xi32, #tpu.memory_space<smem>>
    %1008 = arith.index_cast %1006 : i32 to index
    %c0_602 = arith.constant 0 : index
    %c0_603 = arith.constant 0 : index
    %1009 = vector.load %arg17[%1008, %c0_602, %c0_603] : memref<16x1x128xf32, #tpu.memory_space<vmem>>, vector<1x1x128xf32>
    %1010 = vector.shape_cast %1009 : vector<1x1x128xf32> to vector<1x128xf32>
    %1011 = vector.extract_strided_slice %15 {offsets = [15, 0], sizes = [1, 128], strides = [1, 1]} : vector<32x128xf32> to vector<1x128xf32>
    %1012 = arith.addf %1010, %1011 : vector<1x128xf32>
    %cst_604 = arith.constant 0.000000e+00 : f32
    %1013 = vector.broadcast %cst_604 : f32 to vector<1x128xf32>
    %1014 = arith.maximumf %1012, %1013 : vector<1x128xf32>
    %1015 = arith.index_cast %1007 : i32 to index
    %c0_605 = arith.constant 0 : index
    %c0_606 = arith.constant 0 : index
    %1016 = vector.load %arg18[%1015, %c0_605, %c0_606] : memref<16x1x128xf32, #tpu.memory_space<vmem>>, vector<1x1x128xf32>
    %1017 = vector.shape_cast %1016 : vector<1x1x128xf32> to vector<1x128xf32>
    %1018 = arith.addf %1017, %1014 : vector<1x128xf32>
    %1019 = arith.index_cast %1007 : i32 to index
    %c0_607 = arith.constant 0 : index
    %c0_608 = arith.constant 0 : index
    %1020 = vector.load %arg18[%1019, %c0_607, %c0_608] : memref<16x1x128xf32, #tpu.memory_space<vmem>>, vector<1x1x128xf32>
    %1021 = vector.shape_cast %1020 : vector<1x1x128xf32> to vector<1x128xf32>
    %1022 = vector.shape_cast %1018 : vector<1x128xf32> to vector<1x1x128xf32>
    tpu.vector_store %arg18[%1019, %c0_607, %c0_608], %1022 {strides = array<i32>} : memref<16x1x128xf32, #tpu.memory_space<vmem>>, vector<1x1x128xf32>,
    %c16_609 = arith.constant 16 : index
    %1023 = memref.load %arg0[%c16_609] : memref<32xi32, #tpu.memory_space<smem>>
    %c16_610 = arith.constant 16 : index
    %1024 = memref.load %arg1[%c16_610] : memref<32xi32, #tpu.memory_space<smem>>
    %1025 = arith.index_cast %1023 : i32 to index
    %c0_611 = arith.constant 0 : index
    %c0_612 = arith.constant 0 : index
    %1026 = vector.load %arg17[%1025, %c0_611, %c0_612] : memref<16x1x128xf32, #tpu.memory_space<vmem>>, vector<1x1x128xf32>
    %1027 = vector.shape_cast %1026 : vector<1x1x128xf32> to vector<1x128xf32>
    %1028 = vector.extract_strided_slice %15 {offsets = [16, 0], sizes = [1, 128], strides = [1, 1]} : vector<32x128xf32> to vector<1x128xf32>
    %1029 = arith.addf %1027, %1028 : vector<1x128xf32>
    %cst_613 = arith.constant 0.000000e+00 : f32
    %1030 = vector.broadcast %cst_613 : f32 to vector<1x128xf32>
    %1031 = arith.maximumf %1029, %1030 : vector<1x128xf32>
    %1032 = arith.index_cast %1024 : i32 to index
    %c0_614 = arith.constant 0 : index
    %c0_615 = arith.constant 0 : index
    %1033 = vector.load %arg18[%1032, %c0_614, %c0_615] : memref<16x1x128xf32, #tpu.memory_space<vmem>>, vector<1x1x128xf32>
    %1034 = vector.shape_cast %1033 : vector<1x1x128xf32> to vector<1x128xf32>
    %1035 = arith.addf %1034, %1031 : vector<1x128xf32>
    %1036 = arith.index_cast %1024 : i32 to index
    %c0_616 = arith.constant 0 : index
    %c0_617 = arith.constant 0 : index
    %1037 = vector.load %arg18[%1036, %c0_616, %c0_617] : memref<16x1x128xf32, #tpu.memory_space<vmem>>, vector<1x1x128xf32>
    %1038 = vector.shape_cast %1037 : vector<1x1x128xf32> to vector<1x128xf32>
    %1039 = vector.shape_cast %1035 : vector<1x128xf32> to vector<1x1x128xf32>
    tpu.vector_store %arg18[%1036, %c0_616, %c0_617], %1039 {strides = array<i32>} : memref<16x1x128xf32, #tpu.memory_space<vmem>>, vector<1x1x128xf32>,
    %c17_618 = arith.constant 17 : index
    %1040 = memref.load %arg0[%c17_618] : memref<32xi32, #tpu.memory_space<smem>>
    %c17_619 = arith.constant 17 : index
    %1041 = memref.load %arg1[%c17_619] : memref<32xi32, #tpu.memory_space<smem>>
    %1042 = arith.index_cast %1040 : i32 to index
    %c0_620 = arith.constant 0 : index
    %c0_621 = arith.constant 0 : index
    %1043 = vector.load %arg17[%1042, %c0_620, %c0_621] : memref<16x1x128xf32, #tpu.memory_space<vmem>>, vector<1x1x128xf32>
    %1044 = vector.shape_cast %1043 : vector<1x1x128xf32> to vector<1x128xf32>
    %1045 = vector.extract_strided_slice %15 {offsets = [17, 0], sizes = [1, 128], strides = [1, 1]} : vector<32x128xf32> to vector<1x128xf32>
    %1046 = arith.addf %1044, %1045 : vector<1x128xf32>
    %cst_622 = arith.constant 0.000000e+00 : f32
    %1047 = vector.broadcast %cst_622 : f32 to vector<1x128xf32>
    %1048 = arith.maximumf %1046, %1047 : vector<1x128xf32>
    %1049 = arith.index_cast %1041 : i32 to index
    %c0_623 = arith.constant 0 : index
    %c0_624 = arith.constant 0 : index
    %1050 = vector.load %arg18[%1049, %c0_623, %c0_624] : memref<16x1x128xf32, #tpu.memory_space<vmem>>, vector<1x1x128xf32>
    %1051 = vector.shape_cast %1050 : vector<1x1x128xf32> to vector<1x128xf32>
    %1052 = arith.addf %1051, %1048 : vector<1x128xf32>
    %1053 = arith.index_cast %1041 : i32 to index
    %c0_625 = arith.constant 0 : index
    %c0_626 = arith.constant 0 : index
    %1054 = vector.load %arg18[%1053, %c0_625, %c0_626] : memref<16x1x128xf32, #tpu.memory_space<vmem>>, vector<1x1x128xf32>
    %1055 = vector.shape_cast %1054 : vector<1x1x128xf32> to vector<1x128xf32>
    %1056 = vector.shape_cast %1052 : vector<1x128xf32> to vector<1x1x128xf32>
    tpu.vector_store %arg18[%1053, %c0_625, %c0_626], %1056 {strides = array<i32>} : memref<16x1x128xf32, #tpu.memory_space<vmem>>, vector<1x1x128xf32>,
    %c18_627 = arith.constant 18 : index
    %1057 = memref.load %arg0[%c18_627] : memref<32xi32, #tpu.memory_space<smem>>
    %c18_628 = arith.constant 18 : index
    %1058 = memref.load %arg1[%c18_628] : memref<32xi32, #tpu.memory_space<smem>>
    %1059 = arith.index_cast %1057 : i32 to index
    %c0_629 = arith.constant 0 : index
    %c0_630 = arith.constant 0 : index
    %1060 = vector.load %arg17[%1059, %c0_629, %c0_630] : memref<16x1x128xf32, #tpu.memory_space<vmem>>, vector<1x1x128xf32>
    %1061 = vector.shape_cast %1060 : vector<1x1x128xf32> to vector<1x128xf32>
    %1062 = vector.extract_strided_slice %15 {offsets = [18, 0], sizes = [1, 128], strides = [1, 1]} : vector<32x128xf32> to vector<1x128xf32>
    %1063 = arith.addf %1061, %1062 : vector<1x128xf32>
    %cst_631 = arith.constant 0.000000e+00 : f32
    %1064 = vector.broadcast %cst_631 : f32 to vector<1x128xf32>
    %1065 = arith.maximumf %1063, %1064 : vector<1x128xf32>
    %1066 = arith.index_cast %1058 : i32 to index
    %c0_632 = arith.constant 0 : index
    %c0_633 = arith.constant 0 : index
    %1067 = vector.load %arg18[%1066, %c0_632, %c0_633] : memref<16x1x128xf32, #tpu.memory_space<vmem>>, vector<1x1x128xf32>
    %1068 = vector.shape_cast %1067 : vector<1x1x128xf32> to vector<1x128xf32>
    %1069 = arith.addf %1068, %1065 : vector<1x128xf32>
    %1070 = arith.index_cast %1058 : i32 to index
    %c0_634 = arith.constant 0 : index
    %c0_635 = arith.constant 0 : index
    %1071 = vector.load %arg18[%1070, %c0_634, %c0_635] : memref<16x1x128xf32, #tpu.memory_space<vmem>>, vector<1x1x128xf32>
    %1072 = vector.shape_cast %1071 : vector<1x1x128xf32> to vector<1x128xf32>
    %1073 = vector.shape_cast %1069 : vector<1x128xf32> to vector<1x1x128xf32>
    tpu.vector_store %arg18[%1070, %c0_634, %c0_635], %1073 {strides = array<i32>} : memref<16x1x128xf32, #tpu.memory_space<vmem>>, vector<1x1x128xf32>,
    %c19_636 = arith.constant 19 : index
    %1074 = memref.load %arg0[%c19_636] : memref<32xi32, #tpu.memory_space<smem>>
    %c19_637 = arith.constant 19 : index
    %1075 = memref.load %arg1[%c19_637] : memref<32xi32, #tpu.memory_space<smem>>
    %1076 = arith.index_cast %1074 : i32 to index
    %c0_638 = arith.constant 0 : index
    %c0_639 = arith.constant 0 : index
    %1077 = vector.load %arg17[%1076, %c0_638, %c0_639] : memref<16x1x128xf32, #tpu.memory_space<vmem>>, vector<1x1x128xf32>
    %1078 = vector.shape_cast %1077 : vector<1x1x128xf32> to vector<1x128xf32>
    %1079 = vector.extract_strided_slice %15 {offsets = [19, 0], sizes = [1, 128], strides = [1, 1]} : vector<32x128xf32> to vector<1x128xf32>
    %1080 = arith.addf %1078, %1079 : vector<1x128xf32>
    %cst_640 = arith.constant 0.000000e+00 : f32
    %1081 = vector.broadcast %cst_640 : f32 to vector<1x128xf32>
    %1082 = arith.maximumf %1080, %1081 : vector<1x128xf32>
    %1083 = arith.index_cast %1075 : i32 to index
    %c0_641 = arith.constant 0 : index
    %c0_642 = arith.constant 0 : index
    %1084 = vector.load %arg18[%1083, %c0_641, %c0_642] : memref<16x1x128xf32, #tpu.memory_space<vmem>>, vector<1x1x128xf32>
    %1085 = vector.shape_cast %1084 : vector<1x1x128xf32> to vector<1x128xf32>
    %1086 = arith.addf %1085, %1082 : vector<1x128xf32>
    %1087 = arith.index_cast %1075 : i32 to index
    %c0_643 = arith.constant 0 : index
    %c0_644 = arith.constant 0 : index
    %1088 = vector.load %arg18[%1087, %c0_643, %c0_644] : memref<16x1x128xf32, #tpu.memory_space<vmem>>, vector<1x1x128xf32>
    %1089 = vector.shape_cast %1088 : vector<1x1x128xf32> to vector<1x128xf32>
    %1090 = vector.shape_cast %1086 : vector<1x128xf32> to vector<1x1x128xf32>
    tpu.vector_store %arg18[%1087, %c0_643, %c0_644], %1090 {strides = array<i32>} : memref<16x1x128xf32, #tpu.memory_space<vmem>>, vector<1x1x128xf32>,
    %c20_645 = arith.constant 20 : index
    %1091 = memref.load %arg0[%c20_645] : memref<32xi32, #tpu.memory_space<smem>>
    %c20_646 = arith.constant 20 : index
    %1092 = memref.load %arg1[%c20_646] : memref<32xi32, #tpu.memory_space<smem>>
    %1093 = arith.index_cast %1091 : i32 to index
    %c0_647 = arith.constant 0 : index
    %c0_648 = arith.constant 0 : index
    %1094 = vector.load %arg17[%1093, %c0_647, %c0_648] : memref<16x1x128xf32, #tpu.memory_space<vmem>>, vector<1x1x128xf32>
    %1095 = vector.shape_cast %1094 : vector<1x1x128xf32> to vector<1x128xf32>
    %1096 = vector.extract_strided_slice %15 {offsets = [20, 0], sizes = [1, 128], strides = [1, 1]} : vector<32x128xf32> to vector<1x128xf32>
    %1097 = arith.addf %1095, %1096 : vector<1x128xf32>
    %cst_649 = arith.constant 0.000000e+00 : f32
    %1098 = vector.broadcast %cst_649 : f32 to vector<1x128xf32>
    %1099 = arith.maximumf %1097, %1098 : vector<1x128xf32>
    %1100 = arith.index_cast %1092 : i32 to index
    %c0_650 = arith.constant 0 : index
    %c0_651 = arith.constant 0 : index
    %1101 = vector.load %arg18[%1100, %c0_650, %c0_651] : memref<16x1x128xf32, #tpu.memory_space<vmem>>, vector<1x1x128xf32>
    %1102 = vector.shape_cast %1101 : vector<1x1x128xf32> to vector<1x128xf32>
    %1103 = arith.addf %1102, %1099 : vector<1x128xf32>
    %1104 = arith.index_cast %1092 : i32 to index
    %c0_652 = arith.constant 0 : index
    %c0_653 = arith.constant 0 : index
    %1105 = vector.load %arg18[%1104, %c0_652, %c0_653] : memref<16x1x128xf32, #tpu.memory_space<vmem>>, vector<1x1x128xf32>
    %1106 = vector.shape_cast %1105 : vector<1x1x128xf32> to vector<1x128xf32>
    %1107 = vector.shape_cast %1103 : vector<1x128xf32> to vector<1x1x128xf32>
    tpu.vector_store %arg18[%1104, %c0_652, %c0_653], %1107 {strides = array<i32>} : memref<16x1x128xf32, #tpu.memory_space<vmem>>, vector<1x1x128xf32>,
    %c21_654 = arith.constant 21 : index
    %1108 = memref.load %arg0[%c21_654] : memref<32xi32, #tpu.memory_space<smem>>
    %c21_655 = arith.constant 21 : index
    %1109 = memref.load %arg1[%c21_655] : memref<32xi32, #tpu.memory_space<smem>>
    %1110 = arith.index_cast %1108 : i32 to index
    %c0_656 = arith.constant 0 : index
    %c0_657 = arith.constant 0 : index
    %1111 = vector.load %arg17[%1110, %c0_656, %c0_657] : memref<16x1x128xf32, #tpu.memory_space<vmem>>, vector<1x1x128xf32>
    %1112 = vector.shape_cast %1111 : vector<1x1x128xf32> to vector<1x128xf32>
    %1113 = vector.extract_strided_slice %15 {offsets = [21, 0], sizes = [1, 128], strides = [1, 1]} : vector<32x128xf32> to vector<1x128xf32>
    %1114 = arith.addf %1112, %1113 : vector<1x128xf32>
    %cst_658 = arith.constant 0.000000e+00 : f32
    %1115 = vector.broadcast %cst_658 : f32 to vector<1x128xf32>
    %1116 = arith.maximumf %1114, %1115 : vector<1x128xf32>
    %1117 = arith.index_cast %1109 : i32 to index
    %c0_659 = arith.constant 0 : index
    %c0_660 = arith.constant 0 : index
    %1118 = vector.load %arg18[%1117, %c0_659, %c0_660] : memref<16x1x128xf32, #tpu.memory_space<vmem>>, vector<1x1x128xf32>
    %1119 = vector.shape_cast %1118 : vector<1x1x128xf32> to vector<1x128xf32>
    %1120 = arith.addf %1119, %1116 : vector<1x128xf32>
    %1121 = arith.index_cast %1109 : i32 to index
    %c0_661 = arith.constant 0 : index
    %c0_662 = arith.constant 0 : index
    %1122 = vector.load %arg18[%1121, %c0_661, %c0_662] : memref<16x1x128xf32, #tpu.memory_space<vmem>>, vector<1x1x128xf32>
    %1123 = vector.shape_cast %1122 : vector<1x1x128xf32> to vector<1x128xf32>
    %1124 = vector.shape_cast %1120 : vector<1x128xf32> to vector<1x1x128xf32>
    tpu.vector_store %arg18[%1121, %c0_661, %c0_662], %1124 {strides = array<i32>} : memref<16x1x128xf32, #tpu.memory_space<vmem>>, vector<1x1x128xf32>,
    %c22_663 = arith.constant 22 : index
    %1125 = memref.load %arg0[%c22_663] : memref<32xi32, #tpu.memory_space<smem>>
    %c22_664 = arith.constant 22 : index
    %1126 = memref.load %arg1[%c22_664] : memref<32xi32, #tpu.memory_space<smem>>
    %1127 = arith.index_cast %1125 : i32 to index
    %c0_665 = arith.constant 0 : index
    %c0_666 = arith.constant 0 : index
    %1128 = vector.load %arg17[%1127, %c0_665, %c0_666] : memref<16x1x128xf32, #tpu.memory_space<vmem>>, vector<1x1x128xf32>
    %1129 = vector.shape_cast %1128 : vector<1x1x128xf32> to vector<1x128xf32>
    %1130 = vector.extract_strided_slice %15 {offsets = [22, 0], sizes = [1, 128], strides = [1, 1]} : vector<32x128xf32> to vector<1x128xf32>
    %1131 = arith.addf %1129, %1130 : vector<1x128xf32>
    %cst_667 = arith.constant 0.000000e+00 : f32
    %1132 = vector.broadcast %cst_667 : f32 to vector<1x128xf32>
    %1133 = arith.maximumf %1131, %1132 : vector<1x128xf32>
    %1134 = arith.index_cast %1126 : i32 to index
    %c0_668 = arith.constant 0 : index
    %c0_669 = arith.constant 0 : index
    %1135 = vector.load %arg18[%1134, %c0_668, %c0_669] : memref<16x1x128xf32, #tpu.memory_space<vmem>>, vector<1x1x128xf32>
    %1136 = vector.shape_cast %1135 : vector<1x1x128xf32> to vector<1x128xf32>
    %1137 = arith.addf %1136, %1133 : vector<1x128xf32>
    %1138 = arith.index_cast %1126 : i32 to index
    %c0_670 = arith.constant 0 : index
    %c0_671 = arith.constant 0 : index
    %1139 = vector.load %arg18[%1138, %c0_670, %c0_671] : memref<16x1x128xf32, #tpu.memory_space<vmem>>, vector<1x1x128xf32>
    %1140 = vector.shape_cast %1139 : vector<1x1x128xf32> to vector<1x128xf32>
    %1141 = vector.shape_cast %1137 : vector<1x128xf32> to vector<1x1x128xf32>
    tpu.vector_store %arg18[%1138, %c0_670, %c0_671], %1141 {strides = array<i32>} : memref<16x1x128xf32, #tpu.memory_space<vmem>>, vector<1x1x128xf32>,
    %c23_672 = arith.constant 23 : index
    %1142 = memref.load %arg0[%c23_672] : memref<32xi32, #tpu.memory_space<smem>>
    %c23_673 = arith.constant 23 : index
    %1143 = memref.load %arg1[%c23_673] : memref<32xi32, #tpu.memory_space<smem>>
    %1144 = arith.index_cast %1142 : i32 to index
    %c0_674 = arith.constant 0 : index
    %c0_675 = arith.constant 0 : index
    %1145 = vector.load %arg17[%1144, %c0_674, %c0_675] : memref<16x1x128xf32, #tpu.memory_space<vmem>>, vector<1x1x128xf32>
    %1146 = vector.shape_cast %1145 : vector<1x1x128xf32> to vector<1x128xf32>
    %1147 = vector.extract_strided_slice %15 {offsets = [23, 0], sizes = [1, 128], strides = [1, 1]} : vector<32x128xf32> to vector<1x128xf32>
    %1148 = arith.addf %1146, %1147 : vector<1x128xf32>
    %cst_676 = arith.constant 0.000000e+00 : f32
    %1149 = vector.broadcast %cst_676 : f32 to vector<1x128xf32>
    %1150 = arith.maximumf %1148, %1149 : vector<1x128xf32>
    %1151 = arith.index_cast %1143 : i32 to index
    %c0_677 = arith.constant 0 : index
    %c0_678 = arith.constant 0 : index
    %1152 = vector.load %arg18[%1151, %c0_677, %c0_678] : memref<16x1x128xf32, #tpu.memory_space<vmem>>, vector<1x1x128xf32>
    %1153 = vector.shape_cast %1152 : vector<1x1x128xf32> to vector<1x128xf32>
    %1154 = arith.addf %1153, %1150 : vector<1x128xf32>
    %1155 = arith.index_cast %1143 : i32 to index
    %c0_679 = arith.constant 0 : index
    %c0_680 = arith.constant 0 : index
    %1156 = vector.load %arg18[%1155, %c0_679, %c0_680] : memref<16x1x128xf32, #tpu.memory_space<vmem>>, vector<1x1x128xf32>
    %1157 = vector.shape_cast %1156 : vector<1x1x128xf32> to vector<1x128xf32>
    %1158 = vector.shape_cast %1154 : vector<1x128xf32> to vector<1x1x128xf32>
    tpu.vector_store %arg18[%1155, %c0_679, %c0_680], %1158 {strides = array<i32>} : memref<16x1x128xf32, #tpu.memory_space<vmem>>, vector<1x1x128xf32>,
    %c24_681 = arith.constant 24 : index
    %1159 = memref.load %arg0[%c24_681] : memref<32xi32, #tpu.memory_space<smem>>
    %c24_682 = arith.constant 24 : index
    %1160 = memref.load %arg1[%c24_682] : memref<32xi32, #tpu.memory_space<smem>>
    %1161 = arith.index_cast %1159 : i32 to index
    %c0_683 = arith.constant 0 : index
    %c0_684 = arith.constant 0 : index
    %1162 = vector.load %arg17[%1161, %c0_683, %c0_684] : memref<16x1x128xf32, #tpu.memory_space<vmem>>, vector<1x1x128xf32>
    %1163 = vector.shape_cast %1162 : vector<1x1x128xf32> to vector<1x128xf32>
    %1164 = vector.extract_strided_slice %15 {offsets = [24, 0], sizes = [1, 128], strides = [1, 1]} : vector<32x128xf32> to vector<1x128xf32>
    %1165 = arith.addf %1163, %1164 : vector<1x128xf32>
    %cst_685 = arith.constant 0.000000e+00 : f32
    %1166 = vector.broadcast %cst_685 : f32 to vector<1x128xf32>
    %1167 = arith.maximumf %1165, %1166 : vector<1x128xf32>
    %1168 = arith.index_cast %1160 : i32 to index
    %c0_686 = arith.constant 0 : index
    %c0_687 = arith.constant 0 : index
    %1169 = vector.load %arg18[%1168, %c0_686, %c0_687] : memref<16x1x128xf32, #tpu.memory_space<vmem>>, vector<1x1x128xf32>
    %1170 = vector.shape_cast %1169 : vector<1x1x128xf32> to vector<1x128xf32>
    %1171 = arith.addf %1170, %1167 : vector<1x128xf32>
    %1172 = arith.index_cast %1160 : i32 to index
    %c0_688 = arith.constant 0 : index
    %c0_689 = arith.constant 0 : index
    %1173 = vector.load %arg18[%1172, %c0_688, %c0_689] : memref<16x1x128xf32, #tpu.memory_space<vmem>>, vector<1x1x128xf32>
    %1174 = vector.shape_cast %1173 : vector<1x1x128xf32> to vector<1x128xf32>
    %1175 = vector.shape_cast %1171 : vector<1x128xf32> to vector<1x1x128xf32>
    tpu.vector_store %arg18[%1172, %c0_688, %c0_689], %1175 {strides = array<i32>} : memref<16x1x128xf32, #tpu.memory_space<vmem>>, vector<1x1x128xf32>,
    %c25_690 = arith.constant 25 : index
    %1176 = memref.load %arg0[%c25_690] : memref<32xi32, #tpu.memory_space<smem>>
    %c25_691 = arith.constant 25 : index
    %1177 = memref.load %arg1[%c25_691] : memref<32xi32, #tpu.memory_space<smem>>
    %1178 = arith.index_cast %1176 : i32 to index
    %c0_692 = arith.constant 0 : index
    %c0_693 = arith.constant 0 : index
    %1179 = vector.load %arg17[%1178, %c0_692, %c0_693] : memref<16x1x128xf32, #tpu.memory_space<vmem>>, vector<1x1x128xf32>
    %1180 = vector.shape_cast %1179 : vector<1x1x128xf32> to vector<1x128xf32>
    %1181 = vector.extract_strided_slice %15 {offsets = [25, 0], sizes = [1, 128], strides = [1, 1]} : vector<32x128xf32> to vector<1x128xf32>
    %1182 = arith.addf %1180, %1181 : vector<1x128xf32>
    %cst_694 = arith.constant 0.000000e+00 : f32
    %1183 = vector.broadcast %cst_694 : f32 to vector<1x128xf32>
    %1184 = arith.maximumf %1182, %1183 : vector<1x128xf32>
    %1185 = arith.index_cast %1177 : i32 to index
    %c0_695 = arith.constant 0 : index
    %c0_696 = arith.constant 0 : index
    %1186 = vector.load %arg18[%1185, %c0_695, %c0_696] : memref<16x1x128xf32, #tpu.memory_space<vmem>>, vector<1x1x128xf32>
    %1187 = vector.shape_cast %1186 : vector<1x1x128xf32> to vector<1x128xf32>
    %1188 = arith.addf %1187, %1184 : vector<1x128xf32>
    %1189 = arith.index_cast %1177 : i32 to index
    %c0_697 = arith.constant 0 : index
    %c0_698 = arith.constant 0 : index
    %1190 = vector.load %arg18[%1189, %c0_697, %c0_698] : memref<16x1x128xf32, #tpu.memory_space<vmem>>, vector<1x1x128xf32>
    %1191 = vector.shape_cast %1190 : vector<1x1x128xf32> to vector<1x128xf32>
    %1192 = vector.shape_cast %1188 : vector<1x128xf32> to vector<1x1x128xf32>
    tpu.vector_store %arg18[%1189, %c0_697, %c0_698], %1192 {strides = array<i32>} : memref<16x1x128xf32, #tpu.memory_space<vmem>>, vector<1x1x128xf32>,
    %c26_699 = arith.constant 26 : index
    %1193 = memref.load %arg0[%c26_699] : memref<32xi32, #tpu.memory_space<smem>>
    %c26_700 = arith.constant 26 : index
    %1194 = memref.load %arg1[%c26_700] : memref<32xi32, #tpu.memory_space<smem>>
    %1195 = arith.index_cast %1193 : i32 to index
    %c0_701 = arith.constant 0 : index
    %c0_702 = arith.constant 0 : index
    %1196 = vector.load %arg17[%1195, %c0_701, %c0_702] : memref<16x1x128xf32, #tpu.memory_space<vmem>>, vector<1x1x128xf32>
    %1197 = vector.shape_cast %1196 : vector<1x1x128xf32> to vector<1x128xf32>
    %1198 = vector.extract_strided_slice %15 {offsets = [26, 0], sizes = [1, 128], strides = [1, 1]} : vector<32x128xf32> to vector<1x128xf32>
    %1199 = arith.addf %1197, %1198 : vector<1x128xf32>
    %cst_703 = arith.constant 0.000000e+00 : f32
    %1200 = vector.broadcast %cst_703 : f32 to vector<1x128xf32>
    %1201 = arith.maximumf %1199, %1200 : vector<1x128xf32>
    %1202 = arith.index_cast %1194 : i32 to index
    %c0_704 = arith.constant 0 : index
    %c0_705 = arith.constant 0 : index
    %1203 = vector.load %arg18[%1202, %c0_704, %c0_705] : memref<16x1x128xf32, #tpu.memory_space<vmem>>, vector<1x1x128xf32>
    %1204 = vector.shape_cast %1203 : vector<1x1x128xf32> to vector<1x128xf32>
    %1205 = arith.addf %1204, %1201 : vector<1x128xf32>
    %1206 = arith.index_cast %1194 : i32 to index
    %c0_706 = arith.constant 0 : index
    %c0_707 = arith.constant 0 : index
    %1207 = vector.load %arg18[%1206, %c0_706, %c0_707] : memref<16x1x128xf32, #tpu.memory_space<vmem>>, vector<1x1x128xf32>
    %1208 = vector.shape_cast %1207 : vector<1x1x128xf32> to vector<1x128xf32>
    %1209 = vector.shape_cast %1205 : vector<1x128xf32> to vector<1x1x128xf32>
    tpu.vector_store %arg18[%1206, %c0_706, %c0_707], %1209 {strides = array<i32>} : memref<16x1x128xf32, #tpu.memory_space<vmem>>, vector<1x1x128xf32>,
    %c27_708 = arith.constant 27 : index
    %1210 = memref.load %arg0[%c27_708] : memref<32xi32, #tpu.memory_space<smem>>
    %c27_709 = arith.constant 27 : index
    %1211 = memref.load %arg1[%c27_709] : memref<32xi32, #tpu.memory_space<smem>>
    %1212 = arith.index_cast %1210 : i32 to index
    %c0_710 = arith.constant 0 : index
    %c0_711 = arith.constant 0 : index
    %1213 = vector.load %arg17[%1212, %c0_710, %c0_711] : memref<16x1x128xf32, #tpu.memory_space<vmem>>, vector<1x1x128xf32>
    %1214 = vector.shape_cast %1213 : vector<1x1x128xf32> to vector<1x128xf32>
    %1215 = vector.extract_strided_slice %15 {offsets = [27, 0], sizes = [1, 128], strides = [1, 1]} : vector<32x128xf32> to vector<1x128xf32>
    %1216 = arith.addf %1214, %1215 : vector<1x128xf32>
    %cst_712 = arith.constant 0.000000e+00 : f32
    %1217 = vector.broadcast %cst_712 : f32 to vector<1x128xf32>
    %1218 = arith.maximumf %1216, %1217 : vector<1x128xf32>
    %1219 = arith.index_cast %1211 : i32 to index
    %c0_713 = arith.constant 0 : index
    %c0_714 = arith.constant 0 : index
    %1220 = vector.load %arg18[%1219, %c0_713, %c0_714] : memref<16x1x128xf32, #tpu.memory_space<vmem>>, vector<1x1x128xf32>
    %1221 = vector.shape_cast %1220 : vector<1x1x128xf32> to vector<1x128xf32>
    %1222 = arith.addf %1221, %1218 : vector<1x128xf32>
    %1223 = arith.index_cast %1211 : i32 to index
    %c0_715 = arith.constant 0 : index
    %c0_716 = arith.constant 0 : index
    %1224 = vector.load %arg18[%1223, %c0_715, %c0_716] : memref<16x1x128xf32, #tpu.memory_space<vmem>>, vector<1x1x128xf32>
    %1225 = vector.shape_cast %1224 : vector<1x1x128xf32> to vector<1x128xf32>
    %1226 = vector.shape_cast %1222 : vector<1x128xf32> to vector<1x1x128xf32>
    tpu.vector_store %arg18[%1223, %c0_715, %c0_716], %1226 {strides = array<i32>} : memref<16x1x128xf32, #tpu.memory_space<vmem>>, vector<1x1x128xf32>,
    %c28_717 = arith.constant 28 : index
    %1227 = memref.load %arg0[%c28_717] : memref<32xi32, #tpu.memory_space<smem>>
    %c28_718 = arith.constant 28 : index
    %1228 = memref.load %arg1[%c28_718] : memref<32xi32, #tpu.memory_space<smem>>
    %1229 = arith.index_cast %1227 : i32 to index
    %c0_719 = arith.constant 0 : index
    %c0_720 = arith.constant 0 : index
    %1230 = vector.load %arg17[%1229, %c0_719, %c0_720] : memref<16x1x128xf32, #tpu.memory_space<vmem>>, vector<1x1x128xf32>
    %1231 = vector.shape_cast %1230 : vector<1x1x128xf32> to vector<1x128xf32>
    %1232 = vector.extract_strided_slice %15 {offsets = [28, 0], sizes = [1, 128], strides = [1, 1]} : vector<32x128xf32> to vector<1x128xf32>
    %1233 = arith.addf %1231, %1232 : vector<1x128xf32>
    %cst_721 = arith.constant 0.000000e+00 : f32
    %1234 = vector.broadcast %cst_721 : f32 to vector<1x128xf32>
    %1235 = arith.maximumf %1233, %1234 : vector<1x128xf32>
    %1236 = arith.index_cast %1228 : i32 to index
    %c0_722 = arith.constant 0 : index
    %c0_723 = arith.constant 0 : index
    %1237 = vector.load %arg18[%1236, %c0_722, %c0_723] : memref<16x1x128xf32, #tpu.memory_space<vmem>>, vector<1x1x128xf32>
    %1238 = vector.shape_cast %1237 : vector<1x1x128xf32> to vector<1x128xf32>
    %1239 = arith.addf %1238, %1235 : vector<1x128xf32>
    %1240 = arith.index_cast %1228 : i32 to index
    %c0_724 = arith.constant 0 : index
    %c0_725 = arith.constant 0 : index
    %1241 = vector.load %arg18[%1240, %c0_724, %c0_725] : memref<16x1x128xf32, #tpu.memory_space<vmem>>, vector<1x1x128xf32>
    %1242 = vector.shape_cast %1241 : vector<1x1x128xf32> to vector<1x128xf32>
    %1243 = vector.shape_cast %1239 : vector<1x128xf32> to vector<1x1x128xf32>
    tpu.vector_store %arg18[%1240, %c0_724, %c0_725], %1243 {strides = array<i32>} : memref<16x1x128xf32, #tpu.memory_space<vmem>>, vector<1x1x128xf32>,
    %c29_726 = arith.constant 29 : index
    %1244 = memref.load %arg0[%c29_726] : memref<32xi32, #tpu.memory_space<smem>>
    %c29_727 = arith.constant 29 : index
    %1245 = memref.load %arg1[%c29_727] : memref<32xi32, #tpu.memory_space<smem>>
    %1246 = arith.index_cast %1244 : i32 to index
    %c0_728 = arith.constant 0 : index
    %c0_729 = arith.constant 0 : index
    %1247 = vector.load %arg17[%1246, %c0_728, %c0_729] : memref<16x1x128xf32, #tpu.memory_space<vmem>>, vector<1x1x128xf32>
    %1248 = vector.shape_cast %1247 : vector<1x1x128xf32> to vector<1x128xf32>
    %1249 = vector.extract_strided_slice %15 {offsets = [29, 0], sizes = [1, 128], strides = [1, 1]} : vector<32x128xf32> to vector<1x128xf32>
    %1250 = arith.addf %1248, %1249 : vector<1x128xf32>
    %cst_730 = arith.constant 0.000000e+00 : f32
    %1251 = vector.broadcast %cst_730 : f32 to vector<1x128xf32>
    %1252 = arith.maximumf %1250, %1251 : vector<1x128xf32>
    %1253 = arith.index_cast %1245 : i32 to index
    %c0_731 = arith.constant 0 : index
    %c0_732 = arith.constant 0 : index
    %1254 = vector.load %arg18[%1253, %c0_731, %c0_732] : memref<16x1x128xf32, #tpu.memory_space<vmem>>, vector<1x1x128xf32>
    %1255 = vector.shape_cast %1254 : vector<1x1x128xf32> to vector<1x128xf32>
    %1256 = arith.addf %1255, %1252 : vector<1x128xf32>
    %1257 = arith.index_cast %1245 : i32 to index
    %c0_733 = arith.constant 0 : index
    %c0_734 = arith.constant 0 : index
    %1258 = vector.load %arg18[%1257, %c0_733, %c0_734] : memref<16x1x128xf32, #tpu.memory_space<vmem>>, vector<1x1x128xf32>
    %1259 = vector.shape_cast %1258 : vector<1x1x128xf32> to vector<1x128xf32>
    %1260 = vector.shape_cast %1256 : vector<1x128xf32> to vector<1x1x128xf32>
    tpu.vector_store %arg18[%1257, %c0_733, %c0_734], %1260 {strides = array<i32>} : memref<16x1x128xf32, #tpu.memory_space<vmem>>, vector<1x1x128xf32>,
    %c30_735 = arith.constant 30 : index
    %1261 = memref.load %arg0[%c30_735] : memref<32xi32, #tpu.memory_space<smem>>
    %c30_736 = arith.constant 30 : index
    %1262 = memref.load %arg1[%c30_736] : memref<32xi32, #tpu.memory_space<smem>>
    %1263 = arith.index_cast %1261 : i32 to index
    %c0_737 = arith.constant 0 : index
    %c0_738 = arith.constant 0 : index
    %1264 = vector.load %arg17[%1263, %c0_737, %c0_738] : memref<16x1x128xf32, #tpu.memory_space<vmem>>, vector<1x1x128xf32>
    %1265 = vector.shape_cast %1264 : vector<1x1x128xf32> to vector<1x128xf32>
    %1266 = vector.extract_strided_slice %15 {offsets = [30, 0], sizes = [1, 128], strides = [1, 1]} : vector<32x128xf32> to vector<1x128xf32>
    %1267 = arith.addf %1265, %1266 : vector<1x128xf32>
    %cst_739 = arith.constant 0.000000e+00 : f32
    %1268 = vector.broadcast %cst_739 : f32 to vector<1x128xf32>
    %1269 = arith.maximumf %1267, %1268 : vector<1x128xf32>
    %1270 = arith.index_cast %1262 : i32 to index
    %c0_740 = arith.constant 0 : index
    %c0_741 = arith.constant 0 : index
    %1271 = vector.load %arg18[%1270, %c0_740, %c0_741] : memref<16x1x128xf32, #tpu.memory_space<vmem>>, vector<1x1x128xf32>
    %1272 = vector.shape_cast %1271 : vector<1x1x128xf32> to vector<1x128xf32>
    %1273 = arith.addf %1272, %1269 : vector<1x128xf32>
    %1274 = arith.index_cast %1262 : i32 to index
    %c0_742 = arith.constant 0 : index
    %c0_743 = arith.constant 0 : index
    %1275 = vector.load %arg18[%1274, %c0_742, %c0_743] : memref<16x1x128xf32, #tpu.memory_space<vmem>>, vector<1x1x128xf32>
    %1276 = vector.shape_cast %1275 : vector<1x1x128xf32> to vector<1x128xf32>
    %1277 = vector.shape_cast %1273 : vector<1x128xf32> to vector<1x1x128xf32>
    tpu.vector_store %arg18[%1274, %c0_742, %c0_743], %1277 {strides = array<i32>} : memref<16x1x128xf32, #tpu.memory_space<vmem>>, vector<1x1x128xf32>,
    %c31_744 = arith.constant 31 : index
    %1278 = memref.load %arg0[%c31_744] : memref<32xi32, #tpu.memory_space<smem>>
    %c31_745 = arith.constant 31 : index
    %1279 = memref.load %arg1[%c31_745] : memref<32xi32, #tpu.memory_space<smem>>
    %1280 = arith.index_cast %1278 : i32 to index
    %c0_746 = arith.constant 0 : index
    %c0_747 = arith.constant 0 : index
    %1281 = vector.load %arg17[%1280, %c0_746, %c0_747] : memref<16x1x128xf32, #tpu.memory_space<vmem>>, vector<1x1x128xf32>
    %1282 = vector.shape_cast %1281 : vector<1x1x128xf32> to vector<1x128xf32>
    %1283 = vector.extract_strided_slice %15 {offsets = [31, 0], sizes = [1, 128], strides = [1, 1]} : vector<32x128xf32> to vector<1x128xf32>
    %1284 = arith.addf %1282, %1283 : vector<1x128xf32>
    %cst_748 = arith.constant 0.000000e+00 : f32
    %1285 = vector.broadcast %cst_748 : f32 to vector<1x128xf32>
    %1286 = arith.maximumf %1284, %1285 : vector<1x128xf32>
    %1287 = arith.index_cast %1279 : i32 to index
    %c0_749 = arith.constant 0 : index
    %c0_750 = arith.constant 0 : index
    %1288 = vector.load %arg18[%1287, %c0_749, %c0_750] : memref<16x1x128xf32, #tpu.memory_space<vmem>>, vector<1x1x128xf32>
    %1289 = vector.shape_cast %1288 : vector<1x1x128xf32> to vector<1x128xf32>
    %1290 = arith.addf %1289, %1286 : vector<1x128xf32>
    %1291 = arith.index_cast %1279 : i32 to index
    %c0_751 = arith.constant 0 : index
    %c0_752 = arith.constant 0 : index
    %1292 = vector.load %arg18[%1291, %c0_751, %c0_752] : memref<16x1x128xf32, #tpu.memory_space<vmem>>, vector<1x1x128xf32>
    %1293 = vector.shape_cast %1292 : vector<1x1x128xf32> to vector<1x128xf32>
    %1294 = vector.shape_cast %1290 : vector<1x128xf32> to vector<1x1x128xf32>
    tpu.vector_store %arg18[%1291, %c0_751, %c0_752], %1294 {strides = array<i32>} : memref<16x1x128xf32, #tpu.memory_space<vmem>>, vector<1x1x128xf32>,
    %c0_753 = arith.constant 0 : index
    %c0_754 = arith.constant 0 : index
    %c0_755 = arith.constant 0 : index
    %1295 = vector.load %arg18[%c0_753, %c0_754, %c0_755] : memref<16x1x128xf32, #tpu.memory_space<vmem>>, vector<1x1x128xf32>
    %1296 = vector.shape_cast %1295 : vector<1x1x128xf32> to vector<1x128xf32>
    %c0_756 = arith.constant 0 : index
    %c0_757 = arith.constant 0 : index
    %1297 = vector.load %arg20[%c0_756, %c0_757] : memref<16x128xf32, #tpu.memory_space<vmem>>, vector<1x128xf32>
    tpu.vector_store %arg20[%c0_756, %c0_757], %1296 {strides = array<i32>} : memref<16x128xf32, #tpu.memory_space<vmem>>, vector<1x128xf32>,
    %c1_758 = arith.constant 1 : index
    %c0_759 = arith.constant 0 : index
    %c0_760 = arith.constant 0 : index
    %1298 = vector.load %arg18[%c1_758, %c0_759, %c0_760] : memref<16x1x128xf32, #tpu.memory_space<vmem>>, vector<1x1x128xf32>
    %1299 = vector.shape_cast %1298 : vector<1x1x128xf32> to vector<1x128xf32>
    %c1_761 = arith.constant 1 : index
    %c0_762 = arith.constant 0 : index
    %1300 = vector.load %arg20[%c1_761, %c0_762] : memref<16x128xf32, #tpu.memory_space<vmem>>, vector<1x128xf32>
    tpu.vector_store %arg20[%c1_761, %c0_762], %1299 {strides = array<i32>} : memref<16x128xf32, #tpu.memory_space<vmem>>, vector<1x128xf32>,
    %c2_763 = arith.constant 2 : index
    %c0_764 = arith.constant 0 : index
    %c0_765 = arith.constant 0 : index
    %1301 = vector.load %arg18[%c2_763, %c0_764, %c0_765] : memref<16x1x128xf32, #tpu.memory_space<vmem>>, vector<1x1x128xf32>
    %1302 = vector.shape_cast %1301 : vector<1x1x128xf32> to vector<1x128xf32>
    %c2_766 = arith.constant 2 : index
    %c0_767 = arith.constant 0 : index
    %1303 = vector.load %arg20[%c2_766, %c0_767] : memref<16x128xf32, #tpu.memory_space<vmem>>, vector<1x128xf32>
    tpu.vector_store %arg20[%c2_766, %c0_767], %1302 {strides = array<i32>} : memref<16x128xf32, #tpu.memory_space<vmem>>, vector<1x128xf32>,
    %c3_768 = arith.constant 3 : index
    %c0_769 = arith.constant 0 : index
    %c0_770 = arith.constant 0 : index
    %1304 = vector.load %arg18[%c3_768, %c0_769, %c0_770] : memref<16x1x128xf32, #tpu.memory_space<vmem>>, vector<1x1x128xf32>
    %1305 = vector.shape_cast %1304 : vector<1x1x128xf32> to vector<1x128xf32>
    %c3_771 = arith.constant 3 : index
    %c0_772 = arith.constant 0 : index
    %1306 = vector.load %arg20[%c3_771, %c0_772] : memref<16x128xf32, #tpu.memory_space<vmem>>, vector<1x128xf32>
    tpu.vector_store %arg20[%c3_771, %c0_772], %1305 {strides = array<i32>} : memref<16x128xf32, #tpu.memory_space<vmem>>, vector<1x128xf32>,
    %c4_773 = arith.constant 4 : index
    %c0_774 = arith.constant 0 : index
    %c0_775 = arith.constant 0 : index
    %1307 = vector.load %arg18[%c4_773, %c0_774, %c0_775] : memref<16x1x128xf32, #tpu.memory_space<vmem>>, vector<1x1x128xf32>
    %1308 = vector.shape_cast %1307 : vector<1x1x128xf32> to vector<1x128xf32>
    %c4_776 = arith.constant 4 : index
    %c0_777 = arith.constant 0 : index
    %1309 = vector.load %arg20[%c4_776, %c0_777] : memref<16x128xf32, #tpu.memory_space<vmem>>, vector<1x128xf32>
    tpu.vector_store %arg20[%c4_776, %c0_777], %1308 {strides = array<i32>} : memref<16x128xf32, #tpu.memory_space<vmem>>, vector<1x128xf32>,
    %c5_778 = arith.constant 5 : index
    %c0_779 = arith.constant 0 : index
    %c0_780 = arith.constant 0 : index
    %1310 = vector.load %arg18[%c5_778, %c0_779, %c0_780] : memref<16x1x128xf32, #tpu.memory_space<vmem>>, vector<1x1x128xf32>
    %1311 = vector.shape_cast %1310 : vector<1x1x128xf32> to vector<1x128xf32>
    %c5_781 = arith.constant 5 : index
    %c0_782 = arith.constant 0 : index
    %1312 = vector.load %arg20[%c5_781, %c0_782] : memref<16x128xf32, #tpu.memory_space<vmem>>, vector<1x128xf32>
    tpu.vector_store %arg20[%c5_781, %c0_782], %1311 {strides = array<i32>} : memref<16x128xf32, #tpu.memory_space<vmem>>, vector<1x128xf32>,
    %c6_783 = arith.constant 6 : index
    %c0_784 = arith.constant 0 : index
    %c0_785 = arith.constant 0 : index
    %1313 = vector.load %arg18[%c6_783, %c0_784, %c0_785] : memref<16x1x128xf32, #tpu.memory_space<vmem>>, vector<1x1x128xf32>
    %1314 = vector.shape_cast %1313 : vector<1x1x128xf32> to vector<1x128xf32>
    %c6_786 = arith.constant 6 : index
    %c0_787 = arith.constant 0 : index
    %1315 = vector.load %arg20[%c6_786, %c0_787] : memref<16x128xf32, #tpu.memory_space<vmem>>, vector<1x128xf32>
    tpu.vector_store %arg20[%c6_786, %c0_787], %1314 {strides = array<i32>} : memref<16x128xf32, #tpu.memory_space<vmem>>, vector<1x128xf32>,
    %c7_788 = arith.constant 7 : index
    %c0_789 = arith.constant 0 : index
    %c0_790 = arith.constant 0 : index
    %1316 = vector.load %arg18[%c7_788, %c0_789, %c0_790] : memref<16x1x128xf32, #tpu.memory_space<vmem>>, vector<1x1x128xf32>
    %1317 = vector.shape_cast %1316 : vector<1x1x128xf32> to vector<1x128xf32>
    %c7_791 = arith.constant 7 : index
    %c0_792 = arith.constant 0 : index
    %1318 = vector.load %arg20[%c7_791, %c0_792] : memref<16x128xf32, #tpu.memory_space<vmem>>, vector<1x128xf32>
    tpu.vector_store %arg20[%c7_791, %c0_792], %1317 {strides = array<i32>} : memref<16x128xf32, #tpu.memory_space<vmem>>, vector<1x128xf32>,
    %c8_793 = arith.constant 8 : index
    %c0_794 = arith.constant 0 : index
    %c0_795 = arith.constant 0 : index
    %1319 = vector.load %arg18[%c8_793, %c0_794, %c0_795] : memref<16x1x128xf32, #tpu.memory_space<vmem>>, vector<1x1x128xf32>
    %1320 = vector.shape_cast %1319 : vector<1x1x128xf32> to vector<1x128xf32>
    %c8_796 = arith.constant 8 : index
    %c0_797 = arith.constant 0 : index
    %1321 = vector.load %arg20[%c8_796, %c0_797] : memref<16x128xf32, #tpu.memory_space<vmem>>, vector<1x128xf32>
    tpu.vector_store %arg20[%c8_796, %c0_797], %1320 {strides = array<i32>} : memref<16x128xf32, #tpu.memory_space<vmem>>, vector<1x128xf32>,
    %c9_798 = arith.constant 9 : index
    %c0_799 = arith.constant 0 : index
    %c0_800 = arith.constant 0 : index
    %1322 = vector.load %arg18[%c9_798, %c0_799, %c0_800] : memref<16x1x128xf32, #tpu.memory_space<vmem>>, vector<1x1x128xf32>
    %1323 = vector.shape_cast %1322 : vector<1x1x128xf32> to vector<1x128xf32>
    %c9_801 = arith.constant 9 : index
    %c0_802 = arith.constant 0 : index
    %1324 = vector.load %arg20[%c9_801, %c0_802] : memref<16x128xf32, #tpu.memory_space<vmem>>, vector<1x128xf32>
    tpu.vector_store %arg20[%c9_801, %c0_802], %1323 {strides = array<i32>} : memref<16x128xf32, #tpu.memory_space<vmem>>, vector<1x128xf32>,
    %c10_803 = arith.constant 10 : index
    %c0_804 = arith.constant 0 : index
    %c0_805 = arith.constant 0 : index
    %1325 = vector.load %arg18[%c10_803, %c0_804, %c0_805] : memref<16x1x128xf32, #tpu.memory_space<vmem>>, vector<1x1x128xf32>
    %1326 = vector.shape_cast %1325 : vector<1x1x128xf32> to vector<1x128xf32>
    %c10_806 = arith.constant 10 : index
    %c0_807 = arith.constant 0 : index
    %1327 = vector.load %arg20[%c10_806, %c0_807] : memref<16x128xf32, #tpu.memory_space<vmem>>, vector<1x128xf32>
    tpu.vector_store %arg20[%c10_806, %c0_807], %1326 {strides = array<i32>} : memref<16x128xf32, #tpu.memory_space<vmem>>, vector<1x128xf32>,
    %c11_808 = arith.constant 11 : index
    %c0_809 = arith.constant 0 : index
    %c0_810 = arith.constant 0 : index
    %1328 = vector.load %arg18[%c11_808, %c0_809, %c0_810] : memref<16x1x128xf32, #tpu.memory_space<vmem>>, vector<1x1x128xf32>
    %1329 = vector.shape_cast %1328 : vector<1x1x128xf32> to vector<1x128xf32>
    %c11_811 = arith.constant 11 : index
    %c0_812 = arith.constant 0 : index
    %1330 = vector.load %arg20[%c11_811, %c0_812] : memref<16x128xf32, #tpu.memory_space<vmem>>, vector<1x128xf32>
    tpu.vector_store %arg20[%c11_811, %c0_812], %1329 {strides = array<i32>} : memref<16x128xf32, #tpu.memory_space<vmem>>, vector<1x128xf32>,
    %c12_813 = arith.constant 12 : index
    %c0_814 = arith.constant 0 : index
    %c0_815 = arith.constant 0 : index
    %1331 = vector.load %arg18[%c12_813, %c0_814, %c0_815] : memref<16x1x128xf32, #tpu.memory_space<vmem>>, vector<1x1x128xf32>
    %1332 = vector.shape_cast %1331 : vector<1x1x128xf32> to vector<1x128xf32>
    %c12_816 = arith.constant 12 : index
    %c0_817 = arith.constant 0 : index
    %1333 = vector.load %arg20[%c12_816, %c0_817] : memref<16x128xf32, #tpu.memory_space<vmem>>, vector<1x128xf32>
    tpu.vector_store %arg20[%c12_816, %c0_817], %1332 {strides = array<i32>} : memref<16x128xf32, #tpu.memory_space<vmem>>, vector<1x128xf32>,
    %c13_818 = arith.constant 13 : index
    %c0_819 = arith.constant 0 : index
    %c0_820 = arith.constant 0 : index
    %1334 = vector.load %arg18[%c13_818, %c0_819, %c0_820] : memref<16x1x128xf32, #tpu.memory_space<vmem>>, vector<1x1x128xf32>
    %1335 = vector.shape_cast %1334 : vector<1x1x128xf32> to vector<1x128xf32>
    %c13_821 = arith.constant 13 : index
    %c0_822 = arith.constant 0 : index
    %1336 = vector.load %arg20[%c13_821, %c0_822] : memref<16x128xf32, #tpu.memory_space<vmem>>, vector<1x128xf32>
    tpu.vector_store %arg20[%c13_821, %c0_822], %1335 {strides = array<i32>} : memref<16x128xf32, #tpu.memory_space<vmem>>, vector<1x128xf32>,
    %c14_823 = arith.constant 14 : index
    %c0_824 = arith.constant 0 : index
    %c0_825 = arith.constant 0 : index
    %1337 = vector.load %arg18[%c14_823, %c0_824, %c0_825] : memref<16x1x128xf32, #tpu.memory_space<vmem>>, vector<1x1x128xf32>
    %1338 = vector.shape_cast %1337 : vector<1x1x128xf32> to vector<1x128xf32>
    %c14_826 = arith.constant 14 : index
    %c0_827 = arith.constant 0 : index
    %1339 = vector.load %arg20[%c14_826, %c0_827] : memref<16x128xf32, #tpu.memory_space<vmem>>, vector<1x128xf32>
    tpu.vector_store %arg20[%c14_826, %c0_827], %1338 {strides = array<i32>} : memref<16x128xf32, #tpu.memory_space<vmem>>, vector<1x128xf32>,
    %c15_828 = arith.constant 15 : index
    %c0_829 = arith.constant 0 : index
    %c0_830 = arith.constant 0 : index
    %1340 = vector.load %arg18[%c15_828, %c0_829, %c0_830] : memref<16x1x128xf32, #tpu.memory_space<vmem>>, vector<1x1x128xf32>
    %1341 = vector.shape_cast %1340 : vector<1x1x128xf32> to vector<1x128xf32>
    %c15_831 = arith.constant 15 : index
    %c0_832 = arith.constant 0 : index
    %1342 = vector.load %arg20[%c15_831, %c0_832] : memref<16x128xf32, #tpu.memory_space<vmem>>, vector<1x128xf32>
    tpu.vector_store %arg20[%c15_831, %c0_832], %1341 {strides = array<i32>} : memref<16x128xf32, #tpu.memory_space<vmem>>, vector<1x128xf32>,
    %c0_833 = arith.constant 0 : index
    %c0_834 = arith.constant 0 : index
    %1343 = vector.load %arg20[%c0_833, %c0_834] : memref<16x128xf32, #tpu.memory_space<vmem>>, vector<16x128xf32>
    %c1_835 = arith.constant 1 : index
    %c0_836 = arith.constant 0 : index
    %c0_837 = arith.constant 0 : index
    %1344 = vector.load %arg10[%c1_835, %c0_836, %c0_837] : memref<2x128x128xbf16, #tpu.memory_space<vmem>>, vector<1x128x128xbf16>
    %1345 = vector.shape_cast %1344 : vector<1x128x128xbf16> to vector<128x128xbf16>
    %c1_838 = arith.constant 1 : index
    %c0_839 = arith.constant 0 : index
    %c0_840 = arith.constant 0 : index
    %1346 = vector.load %arg11[%c1_838, %c0_839, %c0_840] : memref<2x1x128xf32, #tpu.memory_space<vmem>>, vector<1x1x128xf32>
    %1347 = vector.shape_cast %1346 : vector<1x1x128xf32> to vector<1x128xf32>
    %1348 = arith.truncf %1343 : vector<16x128xf32> to vector<16x128xbf16>
    %cst_841 = arith.constant dense<0.000000e+00> : vector<16x128xf32>
    %1349 = tpu.matmul %1348, %1345, %cst_841 {dimension_numbers = #tpu.dot_dimension_numbers<[1], [0], [0], [1], [0, 0, 1, 1], [], []>} : vector<16x128xbf16>, vector<128x128xbf16>, vector<16x128xf32> -> vector<16x128xf32>
    %1350 = vector.broadcast %1347 : vector<1x128xf32> to vector<16x128xf32>
    %1351 = arith.addf %1349, %1350 : vector<16x128xf32>
    %cst_842 = arith.constant 0.000000e+00 : f32
    %1352 = vector.broadcast %cst_842 : f32 to vector<16x128xf32>
    %1353 = arith.maximumf %1351, %1352 : vector<16x128xf32>
    %cst_843 = arith.constant 0.000000e+00 : f32
    %1354 = vector.broadcast %cst_843 : f32 to vector<2x1x128xf32>
    %c0_844 = arith.constant 0 : index
    %c0_845 = arith.constant 0 : index
    %c0_846 = arith.constant 0 : index
    %1355 = vector.load %arg19[%c0_844, %c0_845, %c0_846] : memref<2x1x128xf32, #tpu.memory_space<vmem>>, vector<2x1x128xf32>
    tpu.vector_store %arg19[%c0_844, %c0_845, %c0_846], %1354 {strides = array<i32>} : memref<2x1x128xf32, #tpu.memory_space<vmem>>, vector<2x1x128xf32>,
    %c0_847 = arith.constant 0 : index
    %1356 = memref.load %arg2[%c0_847] : memref<16xi32, #tpu.memory_space<smem>>
    %1357 = arith.index_cast %1356 : i32 to index
    %c0_848 = arith.constant 0 : index
    %c0_849 = arith.constant 0 : index
    %1358 = vector.load %arg19[%1357, %c0_848, %c0_849] : memref<2x1x128xf32, #tpu.memory_space<vmem>>, vector<1x1x128xf32>
    %1359 = vector.shape_cast %1358 : vector<1x1x128xf32> to vector<1x128xf32>
    %1360 = vector.extract_strided_slice %1353 {offsets = [0, 0], sizes = [1, 128], strides = [1, 1]} : vector<16x128xf32> to vector<1x128xf32>
    %1361 = arith.addf %1359, %1360 : vector<1x128xf32>
    %1362 = arith.index_cast %1356 : i32 to index
    %c0_850 = arith.constant 0 : index
    %c0_851 = arith.constant 0 : index
    %1363 = vector.load %arg19[%1362, %c0_850, %c0_851] : memref<2x1x128xf32, #tpu.memory_space<vmem>>, vector<1x1x128xf32>
    %1364 = vector.shape_cast %1363 : vector<1x1x128xf32> to vector<1x128xf32>
    %1365 = vector.shape_cast %1361 : vector<1x128xf32> to vector<1x1x128xf32>
    tpu.vector_store %arg19[%1362, %c0_850, %c0_851], %1365 {strides = array<i32>} : memref<2x1x128xf32, #tpu.memory_space<vmem>>, vector<1x1x128xf32>,
    %c1_852 = arith.constant 1 : index
    %1366 = memref.load %arg2[%c1_852] : memref<16xi32, #tpu.memory_space<smem>>
    %1367 = arith.index_cast %1366 : i32 to index
    %c0_853 = arith.constant 0 : index
    %c0_854 = arith.constant 0 : index
    %1368 = vector.load %arg19[%1367, %c0_853, %c0_854] : memref<2x1x128xf32, #tpu.memory_space<vmem>>, vector<1x1x128xf32>
    %1369 = vector.shape_cast %1368 : vector<1x1x128xf32> to vector<1x128xf32>
    %1370 = vector.extract_strided_slice %1353 {offsets = [1, 0], sizes = [1, 128], strides = [1, 1]} : vector<16x128xf32> to vector<1x128xf32>
    %1371 = arith.addf %1369, %1370 : vector<1x128xf32>
    %1372 = arith.index_cast %1366 : i32 to index
    %c0_855 = arith.constant 0 : index
    %c0_856 = arith.constant 0 : index
    %1373 = vector.load %arg19[%1372, %c0_855, %c0_856] : memref<2x1x128xf32, #tpu.memory_space<vmem>>, vector<1x1x128xf32>
    %1374 = vector.shape_cast %1373 : vector<1x1x128xf32> to vector<1x128xf32>
    %1375 = vector.shape_cast %1371 : vector<1x128xf32> to vector<1x1x128xf32>
    tpu.vector_store %arg19[%1372, %c0_855, %c0_856], %1375 {strides = array<i32>} : memref<2x1x128xf32, #tpu.memory_space<vmem>>, vector<1x1x128xf32>,
    %c2_857 = arith.constant 2 : index
    %1376 = memref.load %arg2[%c2_857] : memref<16xi32, #tpu.memory_space<smem>>
    %1377 = arith.index_cast %1376 : i32 to index
    %c0_858 = arith.constant 0 : index
    %c0_859 = arith.constant 0 : index
    %1378 = vector.load %arg19[%1377, %c0_858, %c0_859] : memref<2x1x128xf32, #tpu.memory_space<vmem>>, vector<1x1x128xf32>
    %1379 = vector.shape_cast %1378 : vector<1x1x128xf32> to vector<1x128xf32>
    %1380 = vector.extract_strided_slice %1353 {offsets = [2, 0], sizes = [1, 128], strides = [1, 1]} : vector<16x128xf32> to vector<1x128xf32>
    %1381 = arith.addf %1379, %1380 : vector<1x128xf32>
    %1382 = arith.index_cast %1376 : i32 to index
    %c0_860 = arith.constant 0 : index
    %c0_861 = arith.constant 0 : index
    %1383 = vector.load %arg19[%1382, %c0_860, %c0_861] : memref<2x1x128xf32, #tpu.memory_space<vmem>>, vector<1x1x128xf32>
    %1384 = vector.shape_cast %1383 : vector<1x1x128xf32> to vector<1x128xf32>
    %1385 = vector.shape_cast %1381 : vector<1x128xf32> to vector<1x1x128xf32>
    tpu.vector_store %arg19[%1382, %c0_860, %c0_861], %1385 {strides = array<i32>} : memref<2x1x128xf32, #tpu.memory_space<vmem>>, vector<1x1x128xf32>,
    %c3_862 = arith.constant 3 : index
    %1386 = memref.load %arg2[%c3_862] : memref<16xi32, #tpu.memory_space<smem>>
    %1387 = arith.index_cast %1386 : i32 to index
    %c0_863 = arith.constant 0 : index
    %c0_864 = arith.constant 0 : index
    %1388 = vector.load %arg19[%1387, %c0_863, %c0_864] : memref<2x1x128xf32, #tpu.memory_space<vmem>>, vector<1x1x128xf32>
    %1389 = vector.shape_cast %1388 : vector<1x1x128xf32> to vector<1x128xf32>
    %1390 = vector.extract_strided_slice %1353 {offsets = [3, 0], sizes = [1, 128], strides = [1, 1]} : vector<16x128xf32> to vector<1x128xf32>
    %1391 = arith.addf %1389, %1390 : vector<1x128xf32>
    %1392 = arith.index_cast %1386 : i32 to index
    %c0_865 = arith.constant 0 : index
    %c0_866 = arith.constant 0 : index
    %1393 = vector.load %arg19[%1392, %c0_865, %c0_866] : memref<2x1x128xf32, #tpu.memory_space<vmem>>, vector<1x1x128xf32>
    %1394 = vector.shape_cast %1393 : vector<1x1x128xf32> to vector<1x128xf32>
    %1395 = vector.shape_cast %1391 : vector<1x128xf32> to vector<1x1x128xf32>
    tpu.vector_store %arg19[%1392, %c0_865, %c0_866], %1395 {strides = array<i32>} : memref<2x1x128xf32, #tpu.memory_space<vmem>>, vector<1x1x128xf32>,
    %c4_867 = arith.constant 4 : index
    %1396 = memref.load %arg2[%c4_867] : memref<16xi32, #tpu.memory_space<smem>>
    %1397 = arith.index_cast %1396 : i32 to index
    %c0_868 = arith.constant 0 : index
    %c0_869 = arith.constant 0 : index
    %1398 = vector.load %arg19[%1397, %c0_868, %c0_869] : memref<2x1x128xf32, #tpu.memory_space<vmem>>, vector<1x1x128xf32>
    %1399 = vector.shape_cast %1398 : vector<1x1x128xf32> to vector<1x128xf32>
    %1400 = vector.extract_strided_slice %1353 {offsets = [4, 0], sizes = [1, 128], strides = [1, 1]} : vector<16x128xf32> to vector<1x128xf32>
    %1401 = arith.addf %1399, %1400 : vector<1x128xf32>
    %1402 = arith.index_cast %1396 : i32 to index
    %c0_870 = arith.constant 0 : index
    %c0_871 = arith.constant 0 : index
    %1403 = vector.load %arg19[%1402, %c0_870, %c0_871] : memref<2x1x128xf32, #tpu.memory_space<vmem>>, vector<1x1x128xf32>
    %1404 = vector.shape_cast %1403 : vector<1x1x128xf32> to vector<1x128xf32>
    %1405 = vector.shape_cast %1401 : vector<1x128xf32> to vector<1x1x128xf32>
    tpu.vector_store %arg19[%1402, %c0_870, %c0_871], %1405 {strides = array<i32>} : memref<2x1x128xf32, #tpu.memory_space<vmem>>, vector<1x1x128xf32>,
    %c5_872 = arith.constant 5 : index
    %1406 = memref.load %arg2[%c5_872] : memref<16xi32, #tpu.memory_space<smem>>
    %1407 = arith.index_cast %1406 : i32 to index
    %c0_873 = arith.constant 0 : index
    %c0_874 = arith.constant 0 : index
    %1408 = vector.load %arg19[%1407, %c0_873, %c0_874] : memref<2x1x128xf32, #tpu.memory_space<vmem>>, vector<1x1x128xf32>
    %1409 = vector.shape_cast %1408 : vector<1x1x128xf32> to vector<1x128xf32>
    %1410 = vector.extract_strided_slice %1353 {offsets = [5, 0], sizes = [1, 128], strides = [1, 1]} : vector<16x128xf32> to vector<1x128xf32>
    %1411 = arith.addf %1409, %1410 : vector<1x128xf32>
    %1412 = arith.index_cast %1406 : i32 to index
    %c0_875 = arith.constant 0 : index
    %c0_876 = arith.constant 0 : index
    %1413 = vector.load %arg19[%1412, %c0_875, %c0_876] : memref<2x1x128xf32, #tpu.memory_space<vmem>>, vector<1x1x128xf32>
    %1414 = vector.shape_cast %1413 : vector<1x1x128xf32> to vector<1x128xf32>
    %1415 = vector.shape_cast %1411 : vector<1x128xf32> to vector<1x1x128xf32>
    tpu.vector_store %arg19[%1412, %c0_875, %c0_876], %1415 {strides = array<i32>} : memref<2x1x128xf32, #tpu.memory_space<vmem>>, vector<1x1x128xf32>,
    %c6_877 = arith.constant 6 : index
    %1416 = memref.load %arg2[%c6_877] : memref<16xi32, #tpu.memory_space<smem>>
    %1417 = arith.index_cast %1416 : i32 to index
    %c0_878 = arith.constant 0 : index
    %c0_879 = arith.constant 0 : index
    %1418 = vector.load %arg19[%1417, %c0_878, %c0_879] : memref<2x1x128xf32, #tpu.memory_space<vmem>>, vector<1x1x128xf32>
    %1419 = vector.shape_cast %1418 : vector<1x1x128xf32> to vector<1x128xf32>
    %1420 = vector.extract_strided_slice %1353 {offsets = [6, 0], sizes = [1, 128], strides = [1, 1]} : vector<16x128xf32> to vector<1x128xf32>
    %1421 = arith.addf %1419, %1420 : vector<1x128xf32>
    %1422 = arith.index_cast %1416 : i32 to index
    %c0_880 = arith.constant 0 : index
    %c0_881 = arith.constant 0 : index
    %1423 = vector.load %arg19[%1422, %c0_880, %c0_881] : memref<2x1x128xf32, #tpu.memory_space<vmem>>, vector<1x1x128xf32>
    %1424 = vector.shape_cast %1423 : vector<1x1x128xf32> to vector<1x128xf32>
    %1425 = vector.shape_cast %1421 : vector<1x128xf32> to vector<1x1x128xf32>
    tpu.vector_store %arg19[%1422, %c0_880, %c0_881], %1425 {strides = array<i32>} : memref<2x1x128xf32, #tpu.memory_space<vmem>>, vector<1x1x128xf32>,
    %c7_882 = arith.constant 7 : index
    %1426 = memref.load %arg2[%c7_882] : memref<16xi32, #tpu.memory_space<smem>>
    %1427 = arith.index_cast %1426 : i32 to index
    %c0_883 = arith.constant 0 : index
    %c0_884 = arith.constant 0 : index
    %1428 = vector.load %arg19[%1427, %c0_883, %c0_884] : memref<2x1x128xf32, #tpu.memory_space<vmem>>, vector<1x1x128xf32>
    %1429 = vector.shape_cast %1428 : vector<1x1x128xf32> to vector<1x128xf32>
    %1430 = vector.extract_strided_slice %1353 {offsets = [7, 0], sizes = [1, 128], strides = [1, 1]} : vector<16x128xf32> to vector<1x128xf32>
    %1431 = arith.addf %1429, %1430 : vector<1x128xf32>
    %1432 = arith.index_cast %1426 : i32 to index
    %c0_885 = arith.constant 0 : index
    %c0_886 = arith.constant 0 : index
    %1433 = vector.load %arg19[%1432, %c0_885, %c0_886] : memref<2x1x128xf32, #tpu.memory_space<vmem>>, vector<1x1x128xf32>
    %1434 = vector.shape_cast %1433 : vector<1x1x128xf32> to vector<1x128xf32>
    %1435 = vector.shape_cast %1431 : vector<1x128xf32> to vector<1x1x128xf32>
    tpu.vector_store %arg19[%1432, %c0_885, %c0_886], %1435 {strides = array<i32>} : memref<2x1x128xf32, #tpu.memory_space<vmem>>, vector<1x1x128xf32>,
    %c8_887 = arith.constant 8 : index
    %1436 = memref.load %arg2[%c8_887] : memref<16xi32, #tpu.memory_space<smem>>
    %1437 = arith.index_cast %1436 : i32 to index
    %c0_888 = arith.constant 0 : index
    %c0_889 = arith.constant 0 : index
    %1438 = vector.load %arg19[%1437, %c0_888, %c0_889] : memref<2x1x128xf32, #tpu.memory_space<vmem>>, vector<1x1x128xf32>
    %1439 = vector.shape_cast %1438 : vector<1x1x128xf32> to vector<1x128xf32>
    %1440 = vector.extract_strided_slice %1353 {offsets = [8, 0], sizes = [1, 128], strides = [1, 1]} : vector<16x128xf32> to vector<1x128xf32>
    %1441 = arith.addf %1439, %1440 : vector<1x128xf32>
    %1442 = arith.index_cast %1436 : i32 to index
    %c0_890 = arith.constant 0 : index
    %c0_891 = arith.constant 0 : index
    %1443 = vector.load %arg19[%1442, %c0_890, %c0_891] : memref<2x1x128xf32, #tpu.memory_space<vmem>>, vector<1x1x128xf32>
    %1444 = vector.shape_cast %1443 : vector<1x1x128xf32> to vector<1x128xf32>
    %1445 = vector.shape_cast %1441 : vector<1x128xf32> to vector<1x1x128xf32>
    tpu.vector_store %arg19[%1442, %c0_890, %c0_891], %1445 {strides = array<i32>} : memref<2x1x128xf32, #tpu.memory_space<vmem>>, vector<1x1x128xf32>,
    %c9_892 = arith.constant 9 : index
    %1446 = memref.load %arg2[%c9_892] : memref<16xi32, #tpu.memory_space<smem>>
    %1447 = arith.index_cast %1446 : i32 to index
    %c0_893 = arith.constant 0 : index
    %c0_894 = arith.constant 0 : index
    %1448 = vector.load %arg19[%1447, %c0_893, %c0_894] : memref<2x1x128xf32, #tpu.memory_space<vmem>>, vector<1x1x128xf32>
    %1449 = vector.shape_cast %1448 : vector<1x1x128xf32> to vector<1x128xf32>
    %1450 = vector.extract_strided_slice %1353 {offsets = [9, 0], sizes = [1, 128], strides = [1, 1]} : vector<16x128xf32> to vector<1x128xf32>
    %1451 = arith.addf %1449, %1450 : vector<1x128xf32>
    %1452 = arith.index_cast %1446 : i32 to index
    %c0_895 = arith.constant 0 : index
    %c0_896 = arith.constant 0 : index
    %1453 = vector.load %arg19[%1452, %c0_895, %c0_896] : memref<2x1x128xf32, #tpu.memory_space<vmem>>, vector<1x1x128xf32>
    %1454 = vector.shape_cast %1453 : vector<1x1x128xf32> to vector<1x128xf32>
    %1455 = vector.shape_cast %1451 : vector<1x128xf32> to vector<1x1x128xf32>
    tpu.vector_store %arg19[%1452, %c0_895, %c0_896], %1455 {strides = array<i32>} : memref<2x1x128xf32, #tpu.memory_space<vmem>>, vector<1x1x128xf32>,
    %c10_897 = arith.constant 10 : index
    %1456 = memref.load %arg2[%c10_897] : memref<16xi32, #tpu.memory_space<smem>>
    %1457 = arith.index_cast %1456 : i32 to index
    %c0_898 = arith.constant 0 : index
    %c0_899 = arith.constant 0 : index
    %1458 = vector.load %arg19[%1457, %c0_898, %c0_899] : memref<2x1x128xf32, #tpu.memory_space<vmem>>, vector<1x1x128xf32>
    %1459 = vector.shape_cast %1458 : vector<1x1x128xf32> to vector<1x128xf32>
    %1460 = vector.extract_strided_slice %1353 {offsets = [10, 0], sizes = [1, 128], strides = [1, 1]} : vector<16x128xf32> to vector<1x128xf32>
    %1461 = arith.addf %1459, %1460 : vector<1x128xf32>
    %1462 = arith.index_cast %1456 : i32 to index
    %c0_900 = arith.constant 0 : index
    %c0_901 = arith.constant 0 : index
    %1463 = vector.load %arg19[%1462, %c0_900, %c0_901] : memref<2x1x128xf32, #tpu.memory_space<vmem>>, vector<1x1x128xf32>
    %1464 = vector.shape_cast %1463 : vector<1x1x128xf32> to vector<1x128xf32>
    %1465 = vector.shape_cast %1461 : vector<1x128xf32> to vector<1x1x128xf32>
    tpu.vector_store %arg19[%1462, %c0_900, %c0_901], %1465 {strides = array<i32>} : memref<2x1x128xf32, #tpu.memory_space<vmem>>, vector<1x1x128xf32>,
    %c11_902 = arith.constant 11 : index
    %1466 = memref.load %arg2[%c11_902] : memref<16xi32, #tpu.memory_space<smem>>
    %1467 = arith.index_cast %1466 : i32 to index
    %c0_903 = arith.constant 0 : index
    %c0_904 = arith.constant 0 : index
    %1468 = vector.load %arg19[%1467, %c0_903, %c0_904] : memref<2x1x128xf32, #tpu.memory_space<vmem>>, vector<1x1x128xf32>
    %1469 = vector.shape_cast %1468 : vector<1x1x128xf32> to vector<1x128xf32>
    %1470 = vector.extract_strided_slice %1353 {offsets = [11, 0], sizes = [1, 128], strides = [1, 1]} : vector<16x128xf32> to vector<1x128xf32>
    %1471 = arith.addf %1469, %1470 : vector<1x128xf32>
    %1472 = arith.index_cast %1466 : i32 to index
    %c0_905 = arith.constant 0 : index
    %c0_906 = arith.constant 0 : index
    %1473 = vector.load %arg19[%1472, %c0_905, %c0_906] : memref<2x1x128xf32, #tpu.memory_space<vmem>>, vector<1x1x128xf32>
    %1474 = vector.shape_cast %1473 : vector<1x1x128xf32> to vector<1x128xf32>
    %1475 = vector.shape_cast %1471 : vector<1x128xf32> to vector<1x1x128xf32>
    tpu.vector_store %arg19[%1472, %c0_905, %c0_906], %1475 {strides = array<i32>} : memref<2x1x128xf32, #tpu.memory_space<vmem>>, vector<1x1x128xf32>,
    %c12_907 = arith.constant 12 : index
    %1476 = memref.load %arg2[%c12_907] : memref<16xi32, #tpu.memory_space<smem>>
    %1477 = arith.index_cast %1476 : i32 to index
    %c0_908 = arith.constant 0 : index
    %c0_909 = arith.constant 0 : index
    %1478 = vector.load %arg19[%1477, %c0_908, %c0_909] : memref<2x1x128xf32, #tpu.memory_space<vmem>>, vector<1x1x128xf32>
    %1479 = vector.shape_cast %1478 : vector<1x1x128xf32> to vector<1x128xf32>
    %1480 = vector.extract_strided_slice %1353 {offsets = [12, 0], sizes = [1, 128], strides = [1, 1]} : vector<16x128xf32> to vector<1x128xf32>
    %1481 = arith.addf %1479, %1480 : vector<1x128xf32>
    %1482 = arith.index_cast %1476 : i32 to index
    %c0_910 = arith.constant 0 : index
    %c0_911 = arith.constant 0 : index
    %1483 = vector.load %arg19[%1482, %c0_910, %c0_911] : memref<2x1x128xf32, #tpu.memory_space<vmem>>, vector<1x1x128xf32>
    %1484 = vector.shape_cast %1483 : vector<1x1x128xf32> to vector<1x128xf32>
    %1485 = vector.shape_cast %1481 : vector<1x128xf32> to vector<1x1x128xf32>
    tpu.vector_store %arg19[%1482, %c0_910, %c0_911], %1485 {strides = array<i32>} : memref<2x1x128xf32, #tpu.memory_space<vmem>>, vector<1x1x128xf32>,
    %c13_912 = arith.constant 13 : index
    %1486 = memref.load %arg2[%c13_912] : memref<16xi32, #tpu.memory_space<smem>>
    %1487 = arith.index_cast %1486 : i32 to index
    %c0_913 = arith.constant 0 : index
    %c0_914 = arith.constant 0 : index
    %1488 = vector.load %arg19[%1487, %c0_913, %c0_914] : memref<2x1x128xf32, #tpu.memory_space<vmem>>, vector<1x1x128xf32>
    %1489 = vector.shape_cast %1488 : vector<1x1x128xf32> to vector<1x128xf32>
    %1490 = vector.extract_strided_slice %1353 {offsets = [13, 0], sizes = [1, 128], strides = [1, 1]} : vector<16x128xf32> to vector<1x128xf32>
    %1491 = arith.addf %1489, %1490 : vector<1x128xf32>
    %1492 = arith.index_cast %1486 : i32 to index
    %c0_915 = arith.constant 0 : index
    %c0_916 = arith.constant 0 : index
    %1493 = vector.load %arg19[%1492, %c0_915, %c0_916] : memref<2x1x128xf32, #tpu.memory_space<vmem>>, vector<1x1x128xf32>
    %1494 = vector.shape_cast %1493 : vector<1x1x128xf32> to vector<1x128xf32>
    %1495 = vector.shape_cast %1491 : vector<1x128xf32> to vector<1x1x128xf32>
    tpu.vector_store %arg19[%1492, %c0_915, %c0_916], %1495 {strides = array<i32>} : memref<2x1x128xf32, #tpu.memory_space<vmem>>, vector<1x1x128xf32>,
    %c14_917 = arith.constant 14 : index
    %1496 = memref.load %arg2[%c14_917] : memref<16xi32, #tpu.memory_space<smem>>
    %1497 = arith.index_cast %1496 : i32 to index
    %c0_918 = arith.constant 0 : index
    %c0_919 = arith.constant 0 : index
    %1498 = vector.load %arg19[%1497, %c0_918, %c0_919] : memref<2x1x128xf32, #tpu.memory_space<vmem>>, vector<1x1x128xf32>
    %1499 = vector.shape_cast %1498 : vector<1x1x128xf32> to vector<1x128xf32>
    %1500 = vector.extract_strided_slice %1353 {offsets = [14, 0], sizes = [1, 128], strides = [1, 1]} : vector<16x128xf32> to vector<1x128xf32>
    %1501 = arith.addf %1499, %1500 : vector<1x128xf32>
    %1502 = arith.index_cast %1496 : i32 to index
    %c0_920 = arith.constant 0 : index
    %c0_921 = arith.constant 0 : index
    %1503 = vector.load %arg19[%1502, %c0_920, %c0_921] : memref<2x1x128xf32, #tpu.memory_space<vmem>>, vector<1x1x128xf32>
    %1504 = vector.shape_cast %1503 : vector<1x1x128xf32> to vector<1x128xf32>
    %1505 = vector.shape_cast %1501 : vector<1x128xf32> to vector<1x1x128xf32>
    tpu.vector_store %arg19[%1502, %c0_920, %c0_921], %1505 {strides = array<i32>} : memref<2x1x128xf32, #tpu.memory_space<vmem>>, vector<1x1x128xf32>,
    %c15_922 = arith.constant 15 : index
    %1506 = memref.load %arg2[%c15_922] : memref<16xi32, #tpu.memory_space<smem>>
    %1507 = arith.index_cast %1506 : i32 to index
    %c0_923 = arith.constant 0 : index
    %c0_924 = arith.constant 0 : index
    %1508 = vector.load %arg19[%1507, %c0_923, %c0_924] : memref<2x1x128xf32, #tpu.memory_space<vmem>>, vector<1x1x128xf32>
    %1509 = vector.shape_cast %1508 : vector<1x1x128xf32> to vector<1x128xf32>
    %1510 = vector.extract_strided_slice %1353 {offsets = [15, 0], sizes = [1, 128], strides = [1, 1]} : vector<16x128xf32> to vector<1x128xf32>
    %1511 = arith.addf %1509, %1510 : vector<1x128xf32>
    %1512 = arith.index_cast %1506 : i32 to index
    %c0_925 = arith.constant 0 : index
    %c0_926 = arith.constant 0 : index
    %1513 = vector.load %arg19[%1512, %c0_925, %c0_926] : memref<2x1x128xf32, #tpu.memory_space<vmem>>, vector<1x1x128xf32>
    %1514 = vector.shape_cast %1513 : vector<1x1x128xf32> to vector<1x128xf32>
    %1515 = vector.shape_cast %1511 : vector<1x128xf32> to vector<1x1x128xf32>
    tpu.vector_store %arg19[%1512, %c0_925, %c0_926], %1515 {strides = array<i32>} : memref<2x1x128xf32, #tpu.memory_space<vmem>>, vector<1x1x128xf32>,
    %c0_927 = arith.constant 0 : index
    %c0_928 = arith.constant 0 : index
    %c0_929 = arith.constant 0 : index
    %1516 = vector.load %arg19[%c0_927, %c0_928, %c0_929] : memref<2x1x128xf32, #tpu.memory_space<vmem>>, vector<1x1x128xf32>
    %1517 = vector.shape_cast %1516 : vector<1x1x128xf32> to vector<1x128xf32>
    %c0_930 = arith.constant 0 : index
    %c0_931 = arith.constant 0 : index
    %1518 = vector.load %arg20[%c0_930, %c0_931] : memref<16x128xf32, #tpu.memory_space<vmem>>, vector<1x128xf32>
    tpu.vector_store %arg20[%c0_930, %c0_931], %1517 {strides = array<i32>} : memref<16x128xf32, #tpu.memory_space<vmem>>, vector<1x128xf32>,
    %c1_932 = arith.constant 1 : index
    %c0_933 = arith.constant 0 : index
    %c0_934 = arith.constant 0 : index
    %1519 = vector.load %arg19[%c1_932, %c0_933, %c0_934] : memref<2x1x128xf32, #tpu.memory_space<vmem>>, vector<1x1x128xf32>
    %1520 = vector.shape_cast %1519 : vector<1x1x128xf32> to vector<1x128xf32>
    %c1_935 = arith.constant 1 : index
    %c0_936 = arith.constant 0 : index
    %1521 = vector.load %arg20[%c1_935, %c0_936] : memref<16x128xf32, #tpu.memory_space<vmem>>, vector<1x128xf32>
    tpu.vector_store %arg20[%c1_935, %c0_936], %1520 {strides = array<i32>} : memref<16x128xf32, #tpu.memory_space<vmem>>, vector<1x128xf32>,
    %c0_937 = arith.constant 0 : index
    %c0_938 = arith.constant 0 : index
    %1522 = vector.load %arg20[%c0_937, %c0_938] : memref<16x128xf32, #tpu.memory_space<vmem>>, vector<2x128xf32>
    %c0_939 = arith.constant 0 : index
    %c0_940 = arith.constant 0 : index
    %1523 = vector.load %arg5[%c0_939, %c0_940] : memref<2x1xf32, #tpu.memory_space<vmem>>, vector<2x1xf32>
    %1524 = vector.broadcast %1523 : vector<2x1xf32> to vector<2x128xf32>
    %1525 = arith.mulf %1522, %1524 : vector<2x128xf32>
    %c0_941 = arith.constant 0 : index
    %c0_942 = arith.constant 0 : index
    %1526 = vector.load %arg12[%c0_941, %c0_942] : memref<128x128xbf16, #tpu.memory_space<vmem>>, vector<128x128xbf16>
    %c0_943 = arith.constant 0 : index
    %c0_944 = arith.constant 0 : index
    %1527 = vector.load %arg13[%c0_943, %c0_944] : memref<1x128xf32, #tpu.memory_space<vmem>>, vector<1x128xf32>
    %1528 = arith.truncf %1525 : vector<2x128xf32> to vector<2x128xbf16>
    %cst_945 = arith.constant dense<0.000000e+00> : vector<2x128xf32>
    %1529 = tpu.matmul %1528, %1526, %cst_945 {dimension_numbers = #tpu.dot_dimension_numbers<[1], [0], [0], [1], [0, 0, 1, 1], [], []>} : vector<2x128xbf16>, vector<128x128xbf16>, vector<2x128xf32> -> vector<2x128xf32>
    %1530 = vector.broadcast %1527 : vector<1x128xf32> to vector<2x128xf32>
    %1531 = arith.addf %1529, %1530 : vector<2x128xf32>
    %cst_946 = arith.constant 0.000000e+00 : f32
    %1532 = vector.broadcast %cst_946 : f32 to vector<2x128xf32>
    %1533 = arith.maximumf %1531, %1532 : vector<2x128xf32>
    %c0_947 = arith.constant 0 : index
    %c0_948 = arith.constant 0 : index
    %1534 = vector.load %arg14[%c0_947, %c0_948] : memref<128x128xbf16, #tpu.memory_space<vmem>>, vector<128x128xbf16>
    %c0_949 = arith.constant 0 : index
    %c0_950 = arith.constant 0 : index
    %1535 = vector.load %arg15[%c0_949, %c0_950] : memref<1x128xf32, #tpu.memory_space<vmem>>, vector<1x128xf32>
    %1536 = arith.truncf %1533 : vector<2x128xf32> to vector<2x128xbf16>
    %cst_951 = arith.constant dense<0.000000e+00> : vector<2x128xf32>
    %1537 = tpu.matmul %1536, %1534, %cst_951 {dimension_numbers = #tpu.dot_dimension_numbers<[1], [0], [0], [1], [0, 0, 1, 1], [], []>} : vector<2x128xbf16>, vector<128x128xbf16>, vector<2x128xf32> -> vector<2x128xf32>
    %1538 = vector.broadcast %1535 : vector<1x128xf32> to vector<2x128xf32>
    %1539 = arith.addf %1537, %1538 : vector<2x128xf32>
    %c0_952 = arith.constant 0 : index
    %c0_953 = arith.constant 0 : index
    %1540 = vector.load %arg16[%c0_952, %c0_953] : memref<2x128xf32, #tpu.memory_space<vmem>>, vector<2x128xf32>
    tpu.vector_store %arg16[%c0_952, %c0_953], %1539 {strides = array<i32>} : memref<2x128xf32, #tpu.memory_space<vmem>>, vector<2x128xf32>,
    return
  }
}

</mosaic_0001>

<llo_original>
// kernel: tpu_custom_call.1
$region0: #{tpu_custom_call.1}
  #allocation0 [shape = 'u32[]', space=smem, size = 0x4, offset = 0x4, fixed_abs, tag = 'smem constant byte address 0x4 - core index']
  #allocation1 [shape = 'u32[144,128]{1,0:T(1,128)}', space=vmem, size = 0x12000, scoped, tag = 'internal scratch']
  #allocation2 [shape = 'f32[16,1,128]{2,1,0:T(1,128)}', space=vmem, size = 0x2000, scoped, tag = 'scratch operand']
  #allocation3 [shape = 'f32[16,1,128]{2,1,0:T(1,128)}', space=vmem, size = 0x2000, scoped, tag = 'scratch operand']
  #allocation4 [shape = 'f32[2,1,128]{2,1,0:T(1,128)}', space=vmem, size = 0x400, scoped, tag = 'scratch operand']
  #allocation5 [shape = 'f32[16,128]{1,0:T(8,128)}', space=vmem, size = 0x2000, scoped, tag = 'scratch operand']
  %s0 = inlined_call_operand.vmem [shape: s32[32], index: 0, kind: input, shape index: {}]
  %s1 = inlined_call_operand.vmem [shape: s32[32], index: 1, kind: input, shape index: {}]
  %s2 = inlined_call_operand.vmem [shape: s32[16], index: 2, kind: input, shape index: {}]
  %s3 = inlined_call_operand.vmem [shape: bf16[16,8], index: 3, kind: input, shape index: {}]
  %s4 = inlined_call_operand.vmem [shape: bf16[32,4], index: 4, kind: input, shape index: {}]
  %s5 = inlined_call_operand.vmem [shape: f32[2,1], index: 5, kind: input, shape index: {}]
  %s6 = inlined_call_operand.vmem [shape: bf16[8,128], index: 6, kind: input, shape index: {}]
  %s7 = inlined_call_operand.vmem [shape: f32[1,128], index: 7, kind: input, shape index: {}]
  %s8 = inlined_call_operand.vmem [shape: bf16[4,128], index: 8, kind: input, shape index: {}]
  %s9 = inlined_call_operand.vmem [shape: f32[1,128], index: 9, kind: input, shape index: {}]
  %s10 = inlined_call_operand.hbm [shape: bf16[2,128,128], index: 10, kind: input, shape index: {}]
  %s11 = inlined_call_operand.vmem [shape: f32[2,1,128], index: 11, kind: input, shape index: {}]
  %s12 = inlined_call_operand.hbm [shape: bf16[128,128], index: 12, kind: input, shape index: {}]
  %s13 = inlined_call_operand.vmem [shape: f32[1,128], index: 13, kind: input, shape index: {}]
  %s14 = inlined_call_operand.hbm [shape: bf16[128,128], index: 14, kind: input, shape index: {}]
  %s15 = inlined_call_operand.vmem [shape: f32[1,128], index: 15, kind: input, shape index: {}]
  %s16 = inlined_call_operand.hbm [shape: f32[2,128], index: 16, kind: output, shape index: {}]
  %s17 = sld [smem:[#allocation0]]
  $region98: #{tpu_custom_call.1} parent=0
    _
  %s19 = ssub.s32 1, %s17
  %s20 = scalar_select 0, %s19, %s17
  $region1: #{tpu_custom_call.1} parent=0
    #allocation6 [shape = 'u8[512]{0}', space=smem, size = 0x200, scoped, tag = 'input window, operand 0, single buffered']
    #allocation7 [shape = 's32[1]{0}', space=sflag, size = 0x4, scoped, tag = 'scoped memory for tpu_custom_call.1']
    #allocation8 [shape = 's32[1]{0}', space=sflag, size = 0x4, scoped, tag = 'scoped memory for tpu_custom_call.1']
    #allocation9 [shape = 's32[1]{0}', space=sflag, size = 0x4, scoped, tag = 'scoped memory for tpu_custom_call.1']
    #allocation10 [shape = 'u8[512]{0}', space=smem, size = 0x200, scoped, tag = 'input window, operand 1, single buffered']
    #allocation11 [shape = 's32[1]{0}', space=sflag, size = 0x4, scoped, tag = 'scoped memory for tpu_custom_call.1']
    #allocation12 [shape = 'u8[512]{0}', space=smem, size = 0x200, scoped, tag = 'input window, operand 2, single buffered']
    #allocation13 [shape = 'u8[65536]{0}', space=vmem, size = 0x10000, scoped, tag = 'input window, operand 10, single buffered']
    #allocation14 [shape = 'u8[32768]{0}', space=vmem, size = 0x8000, scoped, tag = 'input window, operand 12, single buffered']
    #allocation15 [shape = 's32[1]{0}', space=sflag, size = 0x4, scoped, tag = 'scoped memory for tpu_custom_call.1']
    #allocation16 [shape = 'u8[32768]{0}', space=vmem, size = 0x8000, scoped, tag = 'input window, operand 14, single buffered']
    #allocation17 [shape = 'u8[1024]{0}', space=vmem, size = 0x400, scoped, tag = 'output window, operand 0, single buffered']
    %21 = vsyncpa [#allocation9], 0
    %22 = vsyncpa [#allocation11], 0
    %23 = vsyncpa [#allocation7], 0
    %24 = vsyncpa [#allocation15], 0
    %25 = vsyncpa [#allocation8], 0
    // Predicated region
    $region2: #{tpu_custom_call.1} parent=1 // pred_check
      _
    $region3: #{tpu_custom_call.1} parent=1 // pred_check_branch
      %27 = sbr.rel (0) target = $region5
    $region4: #{tpu_custom_call.1} parent=1 // pred_region
      %s29 = ssub.s32 16, 16
      %30 = vsyncadd [#allocation9], %s29
      %s32 = sshll.u32 %s0, 4
      %s33 = int_to_ptr.vmem [resolvable:$true] %s32
      %35 = dma.vmem_to_smem %s33, 16, [#allocation6], [#allocation9]
    $region5: #{tpu_custom_call.1} parent=1 // pred_fallthru
      _
    // Predicated region
    $region6: #{tpu_custom_call.1} parent=1 // pred_check
      _
    $region7: #{tpu_custom_call.1} parent=1 // pred_check_branch
      %37 = sbr.rel (0) target = $region9
    $region8: #{tpu_custom_call.1} parent=1 // pred_region
      %s39 = ssub.s32 16, 16
      %40 = vsyncadd [#allocation11], %s39
      %s42 = sshll.u32 %s1, 4
      %s43 = int_to_ptr.vmem [resolvable:$true] %s42
      %45 = dma.vmem_to_smem %s43, 16, [#allocation10], [#allocation11]
    $region9: #{tpu_custom_call.1} parent=1 // pred_fallthru
      _
    // Predicated region
    $region10: #{tpu_custom_call.1} parent=1 // pred_check
      _
    $region11: #{tpu_custom_call.1} parent=1 // pred_check_branch
      %47 = sbr.rel (0) target = $region13
    $region12: #{tpu_custom_call.1} parent=1 // pred_region
      %s49 = ssub.s32 16, 16
      %50 = vsyncadd [#allocation11], %s49
      %s52 = sshll.u32 %s2, 4
      %s53 = int_to_ptr.vmem [resolvable:$true] %s52
      %55 = dma.vmem_to_smem %s53, 16, [#allocation12], [#allocation11]
    $region13: #{tpu_custom_call.1} parent=1 // pred_fallthru
      _
    // Predicated region
    $region14: #{tpu_custom_call.1} parent=1 // pred_check
      _
    $region15: #{tpu_custom_call.1} parent=1 // pred_check_branch
      %57 = sbr.rel (0) target = $region17
    $region16: #{tpu_custom_call.1} parent=1 // pred_region
      _
    $region17: #{tpu_custom_call.1} parent=1 // pred_fallthru
      _
    // Predicated region
    $region18: #{tpu_custom_call.1} parent=1 // pred_check
      _
    $region19: #{tpu_custom_call.1} parent=1 // pred_check_branch
      %59 = sbr.rel (0) target = $region21
    $region20: #{tpu_custom_call.1} parent=1 // pred_region
      _
    $region21: #{tpu_custom_call.1} parent=1 // pred_fallthru
      _
    // Predicated region
    $region22: #{tpu_custom_call.1} parent=1 // pred_check
      _
    $region23: #{tpu_custom_call.1} parent=1 // pred_check_branch
      %61 = sbr.rel (0) target = $region25
    $region24: #{tpu_custom_call.1} parent=1 // pred_region
      _
    $region25: #{tpu_custom_call.1} parent=1 // pred_fallthru
      _
    // Predicated region
    $region26: #{tpu_custom_call.1} parent=1 // pred_check
      _
    $region27: #{tpu_custom_call.1} parent=1 // pred_check_branch
      %63 = sbr.rel (0) target = $region29
    $region28: #{tpu_custom_call.1} parent=1 // pred_region
      _
    $region29: #{tpu_custom_call.1} parent=1 // pred_fallthru
      _
    // Predicated region
    $region30: #{tpu_custom_call.1} parent=1 // pred_check
      _
    $region31: #{tpu_custom_call.1} parent=1 // pred_check_branch
      %65 = sbr.rel (0) target = $region33
    $region32: #{tpu_custom_call.1} parent=1 // pred_region
      _
    $region33: #{tpu_custom_call.1} parent=1 // pred_fallthru
      _
    // Predicated region
    $region34: #{tpu_custom_call.1} parent=1 // pred_check
      _
    $region35: #{tpu_custom_call.1} parent=1 // pred_check_branch
      %67 = sbr.rel (0) target = $region37
    $region36: #{tpu_custom_call.1} parent=1 // pred_region
      _
    $region37: #{tpu_custom_call.1} parent=1 // pred_fallthru
      _
    // Predicated region
    $region38: #{tpu_custom_call.1} parent=1 // pred_check
      _
    $region39: #{tpu_custom_call.1} parent=1 // pred_check_branch
      %69 = sbr.rel (0) target = $region41
    $region40: #{tpu_custom_call.1} parent=1 // pred_region
      _
    $region41: #{tpu_custom_call.1} parent=1 // pred_fallthru
      _
    // Predicated region
    $region42: #{tpu_custom_call.1} parent=1 // pred_check
      _
    $region43: #{tpu_custom_call.1} parent=1 // pred_check_branch
      %71 = sbr.rel (0) target = $region45
    $region44: #{tpu_custom_call.1} parent=1 // pred_region
      %s73 = ssub.s32 2048, 2048
      %74 = vsyncadd [#allocation7], %s73
      %s75 = sshll.u32 [#allocation13], 4
      %s76 = int_to_ptr.vmem [resolvable:$true] %s75
      %81 = dma.hbm_to_vmem [thread:$0]  %s10, 2048, %s76, [#allocation7], 64, 64, 4
    $region45: #{tpu_custom_call.1} parent=1 // pred_fallthru
      _
    // Predicated region
    $region46: #{tpu_custom_call.1} parent=1 // pred_check
      _
    $region47: #{tpu_custom_call.1} parent=1 // pred_check_branch
      %83 = sbr.rel (0) target = $region49
    $region48: #{tpu_custom_call.1} parent=1 // pred_region
      _
    $region49: #{tpu_custom_call.1} parent=1 // pred_fallthru
      _
    // Predicated region
    $region50: #{tpu_custom_call.1} parent=1 // pred_check
      _
    $region51: #{tpu_custom_call.1} parent=1 // pred_check_branch
      %85 = sbr.rel (0) target = $region53
    $region52: #{tpu_custom_call.1} parent=1 // pred_region
      %s87 = ssub.s32 1024, 1024
      %88 = vsyncadd [#allocation15], %s87
      %s89 = sshll.u32 [#allocation14], 4
      %s90 = int_to_ptr.vmem [resolvable:$true] %s89
      %95 = dma.hbm_to_vmem [thread:$0]  %s12, 1024, %s90, [#allocation15], 64, 64, 4
    $region53: #{tpu_custom_call.1} parent=1 // pred_fallthru
      _
    // Predicated region
    $region54: #{tpu_custom_call.1} parent=1 // pred_check
      _
    $region55: #{tpu_custom_call.1} parent=1 // pred_check_branch
      %97 = sbr.rel (0) target = $region57
    $region56: #{tpu_custom_call.1} parent=1 // pred_region
      _
    $region57: #{tpu_custom_call.1} parent=1 // pred_fallthru
      _
    // Predicated region
    $region58: #{tpu_custom_call.1} parent=1 // pred_check
      _
    $region59: #{tpu_custom_call.1} parent=1 // pred_check_branch
      %99 = sbr.rel (0) target = $region61
    $region60: #{tpu_custom_call.1} parent=1 // pred_region
      %s101 = ssub.s32 1024, 1024
      %102 = vsyncadd [#allocation15], %s101
      %s103 = sshll.u32 [#allocation16], 4
      %s104 = int_to_ptr.vmem [resolvable:$true] %s103
      %109 = dma.hbm_to_vmem [thread:$0]  %s14, 1024, %s104, [#allocation15], 64, 64, 4
    $region61: #{tpu_custom_call.1} parent=1 // pred_fallthru
      _
    // Predicated region
    $region62: #{tpu_custom_call.1} parent=1 // pred_check
      _
    $region63: #{tpu_custom_call.1} parent=1 // pred_check_branch
      %111 = sbr.rel (0) target = $region65
    $region64: #{tpu_custom_call.1} parent=1 // pred_region
      _
    $region65: #{tpu_custom_call.1} parent=1 // pred_fallthru
      _
    // Predicated region
    $region66: #{tpu_custom_call.1} parent=1 // pred_check
      _
    $region67: #{tpu_custom_call.1} parent=1 // pred_check_branch
      %113 = sbr.rel (0) target = $region69
    $region68: #{tpu_custom_call.1} parent=1 // pred_region
      %114 = dma.done [#allocation9], 16
    $region69: #{tpu_custom_call.1} parent=1 // pred_fallthru
      _
    // Predicated region
    $region70: #{tpu_custom_call.1} parent=1 // pred_check
      _
    $region71: #{tpu_custom_call.1} parent=1 // pred_check_branch
      %116 = sbr.rel (0) target = $region73
    $region72: #{tpu_custom_call.1} parent=1 // pred_region
      %117 = dma.done [#allocation11], 16
    $region73: #{tpu_custom_call.1} parent=1 // pred_fallthru
      _
    // Predicated region
    $region74: #{tpu_custom_call.1} parent=1 // pred_check
      _
    $region75: #{tpu_custom_call.1} parent=1 // pred_check_branch
      %119 = sbr.rel (0) target = $region77
    $region76: #{tpu_custom_call.1} parent=1 // pred_region
      %120 = dma.done [#allocation11], 16
    $region77: #{tpu_custom_call.1} parent=1 // pred_fallthru
      _
    // Predicated region
    $region78: #{tpu_custom_call.1} parent=1 // pred_check
      _
    $region79: #{tpu_custom_call.1} parent=1 // pred_check_branch
      %122 = sbr.rel (0) target = $region81
    $region80: #{tpu_custom_call.1} parent=1 // pred_region
      %123 = dma.done [#allocation7], 2048
    $region81: #{tpu_custom_call.1} parent=1 // pred_fallthru
      _
    // Predicated region
    $region82: #{tpu_custom_call.1} parent=1 // pred_check
      _
    $region83: #{tpu_custom_call.1} parent=1 // pred_check_branch
      %125 = sbr.rel (0) target = $region85
    $region84: #{tpu_custom_call.1} parent=1 // pred_region
      %126 = dma.done [#allocation15], 1024
    $region85: #{tpu_custom_call.1} parent=1 // pred_fallthru
      _
    // Predicated region
    $region86: #{tpu_custom_call.1} parent=1 // pred_check
      _
    $region87: #{tpu_custom_call.1} parent=1 // pred_check_branch
      %128 = sbr.rel (0) target = $region89
    $region88: #{tpu_custom_call.1} parent=1 // pred_region
      %129 = dma.done [#allocation15], 1024
    $region89: #{tpu_custom_call.1} parent=1 // pred_fallthru
      _
    %130 = sfence
    %v132 = vld [vmem:[%s3] sm:$0xf]
    %v133 = vld [vmem:[%s3 + $0x4] sm:$0xf]
    %v134 = vld [vmem:[%s6] sm:$0xf]
    %v135 = vld [vmem:[%s7] sm:$0x1]
    %v137 = vlaneseq
    %v138 = vshrl.u32 %v137, 7
    %v139 = vsub.s32 0, %v138
    %v140 = vrot.slane %v135, %v139
    %v144 = vunpack.c.l.b16 %v132
    %v145 = vunpack.c.l.b16 %v133
    %v146 = vpack.c.b16 %v145, %v144
    %vm147 = vcmask 64512
    %v149 = vsel %vm147, %v146, 0
    %vm151 = vcmask 1043456
    %v153 = vsel %vm151, %v134, 0
    %155 = vmatprep.subr.bf16.mxu0 0
    %156 = vmatpush1.bf16.msra.mxu0 0
    %157 = vmatprep.subr.bf16.mxu0 0
    %158 = vmatpush1.bf16.msra.mxu0 0
    %159 = vmatprep.subr.bf16.mxu0 0
    %160 = vmatpush1.bf16.msra.mxu0 0
    %161 = vmatprep.subr.bf16.mxu0 0
    %162 = vmatpush1.bf16.msra.mxu0 0
    %163 = vmatprep.subr.bf16.mxu0 0
    %164 = vmatpush1.bf16.msra.mxu0 0
    %165 = vmatprep.subr.bf16.mxu0 0
    %166 = vmatpush1.bf16.msra.mxu0 0
    %167 = vmatprep.subr.bf16.mxu0 0
    %168 = vmatpush1.bf16.msra.mxu0 0
    %169 = vmatprep.subr.bf16.mxu0 0
    %170 = vmatpush1.bf16.msra.mxu0 %v153
    %171 = vmatprep.subr.bf16.mxu0 0
    %172 = vmatpush2.bf16.msra.mxu0 0
    %173 = vmatprep.subr.bf16.mxu0 0
    %174 = vmatpush2.bf16.msra.mxu0 0
    %175 = vmatprep.subr.bf16.mxu0 0
    %176 = vmatpush2.bf16.msra.mxu0 0
    %177 = vmatprep.subr.bf16.mxu0 0
    %178 = vmatpush2.bf16.msra.mxu0 0
    %179 = vmatprep.subr.bf16.mxu0 0
    %180 = vmatpush2.bf16.msra.mxu0 0
    %181 = vmatprep.subr.bf16.mxu0 0
    %182 = vmatpush2.bf16.msra.mxu0 0
    %183 = vmatprep.subr.bf16.mxu0 0
    %184 = vmatpush2.bf16.msra.mxu0 0
    %185 = vmatprep.subr.bf16.mxu0 0
    %186 = vmatpush2.bf16.msra.mxu0 0
    %187 = vmatprep.mubr.bf16.mxu0 0
    %188 = vmatmul.mubr.bf16.gmra.mxu0 %v149
    %v189 = vpop.f32.mrf.mxu0
    %v190 = vadd.f32 %v140, %v189
    %v191 = vpop.f32.mrf.mxu0
    %v192 = vpop.f32.mrf.mxu0
    %v193 = vadd.f32 %v140, %v192
    %v194 = vpop.f32.mrf.mxu0
    %195 = vdwg.mxu0
    %v196 = vmax.f32 %v190, 0.0
    %v197 = vmax.f32 %v193, 0.0
    %v198 = vld [vmem:[%s4] sm:$0xf]
    %v199 = vld [vmem:[%s4 + $0x4] sm:$0xf]
    %v200 = vld [vmem:[%s4 + $0x8] sm:$0xf]
    %v201 = vld [vmem:[%s4 + $0xc] sm:$0xf]
    %v202 = vld [vmem:[%s8] sm:$0x3]
    %v203 = vld [vmem:[%s9] sm:$0x1]
    %v205 = vlaneseq
    %v206 = vshrl.u32 %v205, 7
    %v207 = vsub.s32 0, %v206
    %v208 = vrot.slane %v203, %v207
    %v214 = vunpack.c.l.b16 %v198
    %v215 = vunpack.c.l.b16 %v199
    %v216 = vunpack.c.l.b16 %v200
    %v217 = vunpack.c.l.b16 %v201
    %v218 = vpack.c.b16 %v215, %v214
    %v219 = vpack.c.b16 %v217, %v216
    %vm220 = vcmask 31744
    %v222 = vsel %vm220, %v218, 0
    %v225 = vsel %vm220, %v219, 0
    %vm227 = vcmask 1041408
    %v229 = vsel %vm227, %v202, 0
    %231 = vmatprep.subr.bf16.mxu0 0
    %232 = vmatpush1.bf16.msra.mxu0 0
    %233 = vmatprep.subr.bf16.mxu0 0
    %234 = vmatpush1.bf16.msra.mxu0 0
    %235 = vmatprep.subr.bf16.mxu0 0
    %236 = vmatpush1.bf16.msra.mxu0 0
    %237 = vmatprep.subr.bf16.mxu0 0
    %238 = vmatpush1.bf16.msra.mxu0 0
    %239 = vmatprep.subr.bf16.mxu0 0
    %240 = vmatpush1.bf16.msra.mxu0 0
    %241 = vmatprep.subr.bf16.mxu0 0
    %242 = vmatpush1.bf16.msra.mxu0 0
    %243 = vmatprep.subr.bf16.mxu0 0
    %244 = vmatpush1.bf16.msra.mxu0 0
    %245 = vmatprep.subr.bf16.mxu0 0
    %246 = vmatpush1.bf16.msra.mxu0 %v229
    %247 = vmatprep.subr.bf16.mxu0 0
    %248 = vmatpush2.bf16.msra.mxu0 0
    %249 = vmatprep.subr.bf16.mxu0 0
    %250 = vmatpush2.bf16.msra.mxu0 0
    %251 = vmatprep.subr.bf16.mxu0 0
    %252 = vmatpush2.bf16.msra.mxu0 0
    %253 = vmatprep.subr.bf16.mxu0 0
    %254 = vmatpush2.bf16.msra.mxu0 0
    %255 = vmatprep.subr.bf16.mxu0 0
    %256 = vmatpush2.bf16.msra.mxu0 0
    %257 = vmatprep.subr.bf16.mxu0 0
    %258 = vmatpush2.bf16.msra.mxu0 0
    %259 = vmatprep.subr.bf16.mxu0 0
    %260 = vmatpush2.bf16.msra.mxu0 0
    %261 = vmatprep.subr.bf16.mxu0 0
    %262 = vmatpush2.bf16.msra.mxu0 0
    %263 = vmatprep.mubr.bf16.mxu0 0
    %264 = vmatmul.mubr.bf16.gmra.mxu0 %v222
    %v265 = vpop.f32.mrf.mxu0
    %v266 = vadd.f32 %v208, %v265
    %v267 = vpop.f32.mrf.mxu0
    %v268 = vpop.f32.mrf.mxu0
    %v269 = vadd.f32 %v208, %v268
    %v270 = vpop.f32.mrf.mxu0
    %271 = vmatprep.mubr.bf16.mxu0 0
    %272 = vmatmul.mubr.bf16.gmra.mxu0 %v225
    %v273 = vpop.f32.mrf.mxu0
    %v274 = vadd.f32 %v208, %v273
    %v275 = vpop.f32.mrf.mxu0
    %v276 = vpop.f32.mrf.mxu0
    %v277 = vadd.f32 %v208, %v276
    %v278 = vpop.f32.mrf.mxu0
    %279 = vdwg.mxu0
    %v280 = vmax.f32 %v266, 0.0
    %v281 = vmax.f32 %v269, 0.0
    %v282 = vmax.f32 %v274, 0.0
    %v283 = vmax.f32 %v277, 0.0
    %284 = vst [vmem:[#allocation2] sm:$0x1] %v196
    %s285 = scalar_lea.vmem [#allocation2], 1
    %286 = vst [vmem:[%s285 - $0x1] sm:$0x2] %v196
    %s287 = scalar_lea.vmem [#allocation2], 2
    %288 = vst [vmem:[%s287 - $0x2] sm:$0x4] %v196
    %s289 = scalar_lea.vmem [#allocation2], 3
    %290 = vst [vmem:[%s289 - $0x3] sm:$0x8] %v196
    %s291 = scalar_lea.vmem [#allocation2], 4
    %292 = vst [vmem:[%s291 - $0x4] sm:$0x10] %v196
    %s293 = scalar_lea.vmem [#allocation2], 5
    %294 = vst [vmem:[%s293 - $0x5] sm:$0x20] %v196
    %s295 = scalar_lea.vmem [#allocation2], 6
    %296 = vst [vmem:[%s295 - $0x6] sm:$0x40] %v196
    %s297 = scalar_lea.vmem [#allocation2], 7
    %298 = vst [vmem:[%s297 - $0x7] sm:$0x80] %v196
    %s299 = scalar_lea.vmem [#allocation2], 8
    %300 = vst [vmem:[%s299] sm:$0x1] %v197
    %s301 = scalar_lea.vmem [#allocation2], 9
    %302 = vst [vmem:[%s301 - $0x1] sm:$0x2] %v197
    %s303 = scalar_lea.vmem [#allocation2], 10
    %304 = vst [vmem:[%s303 - $0x2] sm:$0x4] %v197
    %s305 = scalar_lea.vmem [#allocation2], 11
    %306 = vst [vmem:[%s305 - $0x3] sm:$0x8] %v197
    %s307 = scalar_lea.vmem [#allocation2], 12
    %308 = vst [vmem:[%s307 - $0x4] sm:$0x10] %v197
    %s309 = scalar_lea.vmem [#allocation2], 13
    %310 = vst [vmem:[%s309 - $0x5] sm:$0x20] %v197
    %s311 = scalar_lea.vmem [#allocation2], 14
    %312 = vst [vmem:[%s311 - $0x6] sm:$0x40] %v197
    %s313 = scalar_lea.vmem [#allocation2], 15
    %314 = vst [vmem:[%s313 - $0x7] sm:$0x80] %v197
    %315 = vst [vmem:[#allocation3] sm:$0x1] 0.0
    %316 = vst [vmem:[#allocation3 + $0x1] sm:$0x1] 0.0
    %317 = vst [vmem:[#allocation3 + $0x2] sm:$0x1] 0.0
    %318 = vst [vmem:[#allocation3 + $0x3] sm:$0x1] 0.0
    %319 = vst [vmem:[#allocation3 + $0x4] sm:$0x1] 0.0
    %320 = vst [vmem:[#allocation3 + $0x5] sm:$0x1] 0.0
    %321 = vst [vmem:[#allocation3 + $0x6] sm:$0x1] 0.0
    %322 = vst [vmem:[#allocation3 + $0x7] sm:$0x1] 0.0
    %323 = vst [vmem:[#allocation3 + $0x8] sm:$0x1] 0.0
    %324 = vst [vmem:[#allocation3 + $0x9] sm:$0x1] 0.0
    %325 = vst [vmem:[#allocation3 + $0xa] sm:$0x1] 0.0
    %326 = vst [vmem:[#allocation3 + $0xb] sm:$0x1] 0.0
    %327 = vst [vmem:[#allocation3 + $0xc] sm:$0x1] 0.0
    %328 = vst [vmem:[#allocation3 + $0xd] sm:$0x1] 0.0
    %329 = vst [vmem:[#allocation3 + $0xe] sm:$0x1] 0.0
    %330 = vst [vmem:[#allocation3 + $0xf] sm:$0x1] 0.0
    %s331 = sld [smem:[#allocation6]]
    %s332 = sld [smem:[#allocation10]]
    %s333 = scalar_lea.vmem [#allocation2], %s331
    %v334 = vld [vmem:[%s333] sm:$0x1]
    %v335 = vadd.f32 %v334, %v280
    %v336 = vmax.f32 %v335, 0.0
    %s337 = scalar_lea.vmem [#allocation3], %s332
    %v338 = vld [vmem:[%s337] sm:$0x1]
    %v339 = vadd.f32 %v338, %v336
    %340 = vst [vmem:[%s337] sm:$0x1] %v339
    %s341 = sld [smem:[#allocation6 + $0x1]]
    %s342 = sld [smem:[#allocation10 + $0x1]]
    %s343 = scalar_lea.vmem [#allocation2], %s341
    %v344 = vld [vmem:[%s343] sm:$0x1]
    %v347 = vunpack.c.l.s4 1966171168
    %v348 = vunpack.c.0.s8 %v347
    %v349 = vlaneseq
    %v350 = vshrl.u32 %v349, 7
    %v351 = vsub.s32 %v348, %v350
    %v352 = vrot.slane %v280, %v351
    %v353 = vcombine.high %v352, %v352
    %v355 = vunpack.c.l.s4 1966171168
    %v356 = vunpack.c.0.s8 %v355
    %v357 = vlaneseq
    %v358 = vshrl.u32 %v357, 7
    %v359 = vsub.s32 %v356, %v358
    %v360 = vrot.slane %v352, %v359
    %v362 = vunpack.c.l.s4 1966171168
    %v363 = vunpack.c.0.s8 %v362
    %v364 = vlaneseq
    %v365 = vshrl.u32 %v364, 7
    %v366 = vsub.s32 %v363, %v365
    %v367 = vrot.slane %v353, %v366
    %v369 = vadd.f32 %v344, %v367
    %v370 = vmax.f32 %v369, 0.0
    %s371 = scalar_lea.vmem [#allocation3], %s342
    %v372 = vld [vmem:[%s371] sm:$0x1]
    %v373 = vadd.f32 %v372, %v370
    %374 = vst [vmem:[%s371] sm:$0x1] %v373
    %s375 = sld [smem:[#allocation6 + $0x2]]
    %s376 = sld [smem:[#allocation10 + $0x2]]
    %s377 = scalar_lea.vmem [#allocation2], %s375
    %v378 = vld [vmem:[%s377] sm:$0x1]
    %v379 = vcombine.high %v360, %v360
    %v381 = vadd.f32 %v378, %v379
    %v382 = vmax.f32 %v381, 0.0
    %s383 = scalar_lea.vmem [#allocation3], %s376
    %v384 = vld [vmem:[%s383] sm:$0x1]
    %v385 = vadd.f32 %v384, %v382
    %386 = vst [vmem:[%s383] sm:$0x1] %v385
    %s387 = sld [smem:[#allocation6 + $0x3]]
    %s388 = sld [smem:[#allocation10 + $0x3]]
    %s389 = scalar_lea.vmem [#allocation2], %s387
    %v390 = vld [vmem:[%s389] sm:$0x1]
    %v391 = vcombine.high %v367, %v367
    %v393 = vadd.f32 %v390, %v391
    %v394 = vmax.f32 %v393, 0.0
    %s395 = scalar_lea.vmem [#allocation3], %s388
    %v396 = vld [vmem:[%s395] sm:$0x1]
    %v397 = vadd.f32 %v396, %v394
    %398 = vst [vmem:[%s395] sm:$0x1] %v397
    %s399 = sld [smem:[#allocation6 + $0x4]]
    %s400 = sld [smem:[#allocation10 + $0x4]]
    %s401 = scalar_lea.vmem [#allocation2], %s399
    %v402 = vld [vmem:[%s401] sm:$0x1]
    %v403 = vcombine.high %v280, %v280
    %v405 = vunpack.c.l.s4 1966171168
    %v406 = vunpack.c.0.s8 %v405
    %v407 = vlaneseq
    %v408 = vshrl.u32 %v407, 7
    %v409 = vsub.s32 %v406, %v408
    %v410 = vrot.slane %v403, %v409
    %v412 = vunpack.c.l.s4 1966171168
    %v413 = vunpack.c.0.s8 %v412
    %v414 = vlaneseq
    %v415 = vshrl.u32 %v414, 7
    %v416 = vsub.s32 %v413, %v415
    %v417 = vrot.slane %v410, %v416
    %v419 = vadd.f32 %v402, %v417
    %v420 = vmax.f32 %v419, 0.0
    %s421 = scalar_lea.vmem [#allocation3], %s400
    %v422 = vld [vmem:[%s421] sm:$0x1]
    %v423 = vadd.f32 %v422, %v420
    %424 = vst [vmem:[%s421] sm:$0x1] %v423
    %s425 = sld [smem:[#allocation6 + $0x5]]
    %s426 = sld [smem:[#allocation10 + $0x5]]
    %s427 = scalar_lea.vmem [#allocation2], %s425
    %v428 = vld [vmem:[%s427] sm:$0x1]
    %v429 = vcombine.high %v410, %v410
    %v431 = vunpack.c.l.s4 1966171168
    %v432 = vunpack.c.0.s8 %v431
    %v433 = vlaneseq
    %v434 = vshrl.u32 %v433, 7
    %v435 = vsub.s32 %v432, %v434
    %v436 = vrot.slane %v429, %v435
    %v438 = vadd.f32 %v428, %v436
    %v439 = vmax.f32 %v438, 0.0
    %s440 = scalar_lea.vmem [#allocation3], %s426
    %v441 = vld [vmem:[%s440] sm:$0x1]
    %v442 = vadd.f32 %v441, %v439
    %443 = vst [vmem:[%s440] sm:$0x1] %v442
    %s444 = sld [smem:[#allocation6 + $0x6]]
    %s445 = sld [smem:[#allocation10 + $0x6]]
    %s446 = scalar_lea.vmem [#allocation2], %s444
    %v447 = vld [vmem:[%s446] sm:$0x1]
    %v448 = vcombine.high %v417, %v417
    %v450 = vadd.f32 %v447, %v448
    %v451 = vmax.f32 %v450, 0.0
    %s452 = scalar_lea.vmem [#allocation3], %s445
    %v453 = vld [vmem:[%s452] sm:$0x1]
    %v454 = vadd.f32 %v453, %v451
    %455 = vst [vmem:[%s452] sm:$0x1] %v454
    %s456 = sld [smem:[#allocation6 + $0x7]]
    %s457 = sld [smem:[#allocation10 + $0x7]]
    %s458 = scalar_lea.vmem [#allocation2], %s456
    %v459 = vld [vmem:[%s458] sm:$0x1]
    %v460 = vcombine.high %v436, %v436
    %v462 = vadd.f32 %v459, %v460
    %v463 = vmax.f32 %v462, 0.0
    %s464 = scalar_lea.vmem [#allocation3], %s457
    %v465 = vld [vmem:[%s464] sm:$0x1]
    %v466 = vadd.f32 %v465, %v463
    %467 = vst [vmem:[%s464] sm:$0x1] %v466
    %s468 = sld [smem:[#allocation6 + $0x8]]
    %s469 = sld [smem:[#allocation10 + $0x8]]
    %s470 = scalar_lea.vmem [#allocation2], %s468
    %v471 = vld [vmem:[%s470] sm:$0x1]
    %v472 = vadd.f32 %v471, %v281
    %v473 = vmax.f32 %v472, 0.0
    %s474 = scalar_lea.vmem [#allocation3], %s469
    %v475 = vld [vmem:[%s474] sm:$0x1]
    %v476 = vadd.f32 %v475, %v473
    %477 = vst [vmem:[%s474] sm:$0x1] %v476
    %s478 = sld [smem:[#allocation6 + $0x9]]
    %s479 = sld [smem:[#allocation10 + $0x9]]
    %s480 = scalar_lea.vmem [#allocation2], %s478
    %v481 = vld [vmem:[%s480] sm:$0x1]
    %v484 = vunpack.c.l.s4 1966171168
    %v485 = vunpack.c.0.s8 %v484
    %v486 = vlaneseq
    %v487 = vshrl.u32 %v486, 7
    %v488 = vsub.s32 %v485, %v487
    %v489 = vrot.slane %v281, %v488
    %v490 = vcombine.high %v489, %v489
    %v492 = vunpack.c.l.s4 1966171168
    %v493 = vunpack.c.0.s8 %v492
    %v494 = vlaneseq
    %v495 = vshrl.u32 %v494, 7
    %v496 = vsub.s32 %v493, %v495
    %v497 = vrot.slane %v489, %v496
    %v499 = vunpack.c.l.s4 1966171168
    %v500 = vunpack.c.0.s8 %v499
    %v501 = vlaneseq
    %v502 = vshrl.u32 %v501, 7
    %v503 = vsub.s32 %v500, %v502
    %v504 = vrot.slane %v490, %v503
    %v506 = vadd.f32 %v481, %v504
    %v507 = vmax.f32 %v506, 0.0
    %s508 = scalar_lea.vmem [#allocation3], %s479
    %v509 = vld [vmem:[%s508] sm:$0x1]
    %v510 = vadd.f32 %v509, %v507
    %511 = vst [vmem:[%s508] sm:$0x1] %v510
    %s512 = sld [smem:[#allocation6 + $0xa]]
    %s513 = sld [smem:[#allocation10 + $0xa]]
    %s514 = scalar_lea.vmem [#allocation2], %s512
    %v515 = vld [vmem:[%s514] sm:$0x1]
    %v516 = vcombine.high %v497, %v497
    %v518 = vadd.f32 %v515, %v516
    %v519 = vmax.f32 %v518, 0.0
    %s520 = scalar_lea.vmem [#allocation3], %s513
    %v521 = vld [vmem:[%s520] sm:$0x1]
    %v522 = vadd.f32 %v521, %v519
    %523 = vst [vmem:[%s520] sm:$0x1] %v522
    %s524 = sld [smem:[#allocation6 + $0xb]]
    %s525 = sld [smem:[#allocation10 + $0xb]]
    %s526 = scalar_lea.vmem [#allocation2], %s524
    %v527 = vld [vmem:[%s526] sm:$0x1]
    %v528 = vcombine.high %v504, %v504
    %v530 = vadd.f32 %v527, %v528
    %v531 = vmax.f32 %v530, 0.0
    %s532 = scalar_lea.vmem [#allocation3], %s525
    %v533 = vld [vmem:[%s532] sm:$0x1]
    %v534 = vadd.f32 %v533, %v531
    %535 = vst [vmem:[%s532] sm:$0x1] %v534
    %s536 = sld [smem:[#allocation6 + $0xc]]
    %s537 = sld [smem:[#allocation10 + $0xc]]
    %s538 = scalar_lea.vmem [#allocation2], %s536
    %v539 = vld [vmem:[%s538] sm:$0x1]
    %v540 = vcombine.high %v281, %v281
    %v542 = vunpack.c.l.s4 1966171168
    %v543 = vunpack.c.0.s8 %v542
    %v544 = vlaneseq
    %v545 = vshrl.u32 %v544, 7
    %v546 = vsub.s32 %v543, %v545
    %v547 = vrot.slane %v540, %v546
    %v549 = vunpack.c.l.s4 1966171168
    %v550 = vunpack.c.0.s8 %v549
    %v551 = vlaneseq
    %v552 = vshrl.u32 %v551, 7
    %v553 = vsub.s32 %v550, %v552
    %v554 = vrot.slane %v547, %v553
    %v556 = vadd.f32 %v539, %v554
    %v557 = vmax.f32 %v556, 0.0
    %s558 = scalar_lea.vmem [#allocation3], %s537
    %v559 = vld [vmem:[%s558] sm:$0x1]
    %v560 = vadd.f32 %v559, %v557
    %561 = vst [vmem:[%s558] sm:$0x1] %v560
    %s562 = sld [smem:[#allocation6 + $0xd]]
    %s563 = sld [smem:[#allocation10 + $0xd]]
    %s564 = scalar_lea.vmem [#allocation2], %s562
    %v565 = vld [vmem:[%s564] sm:$0x1]
    %v566 = vcombine.high %v547, %v547
    %v568 = vunpack.c.l.s4 1966171168
    %v569 = vunpack.c.0.s8 %v568
    %v570 = vlaneseq
    %v571 = vshrl.u32 %v570, 7
    %v572 = vsub.s32 %v569, %v571
    %v573 = vrot.slane %v566, %v572
    %v575 = vadd.f32 %v565, %v573
    %v576 = vmax.f32 %v575, 0.0
    %s577 = scalar_lea.vmem [#allocation3], %s563
    %v578 = vld [vmem:[%s577] sm:$0x1]
    %v579 = vadd.f32 %v578, %v576
    %580 = vst [vmem:[%s577] sm:$0x1] %v579
    %s581 = sld [smem:[#allocation6 + $0xe]]
    %s582 = sld [smem:[#allocation10 + $0xe]]
    %s583 = scalar_lea.vmem [#allocation2], %s581
    %v584 = vld [vmem:[%s583] sm:$0x1]
    %v585 = vcombine.high %v554, %v554
    %v587 = vadd.f32 %v584, %v585
    %v588 = vmax.f32 %v587, 0.0
    %s589 = scalar_lea.vmem [#allocation3], %s582
    %v590 = vld [vmem:[%s589] sm:$0x1]
    %v591 = vadd.f32 %v590, %v588
    %592 = vst [vmem:[%s589] sm:$0x1] %v591
    %s593 = sld [smem:[#allocation6 + $0xf]]
    %s594 = sld [smem:[#allocation10 + $0xf]]
    %s595 = scalar_lea.vmem [#allocation2], %s593
    %v596 = vld [vmem:[%s595] sm:$0x1]
    %v597 = vcombine.high %v573, %v573
    %v599 = vadd.f32 %v596, %v597
    %v600 = vmax.f32 %v599, 0.0
    %s601 = scalar_lea.vmem [#allocation3], %s594
    %v602 = vld [vmem:[%s601] sm:$0x1]
    %v603 = vadd.f32 %v602, %v600
    %604 = vst [vmem:[%s601] sm:$0x1] %v603
    %s605 = sld [smem:[#allocation6 + $0x10]]
    %s606 = sld [smem:[#allocation10 + $0x10]]
    %s607 = scalar_lea.vmem [#allocation2], %s605
    %v608 = vld [vmem:[%s607] sm:$0x1]
    %v609 = vadd.f32 %v608, %v282
    %v610 = vmax.f32 %v609, 0.0
    %s611 = scalar_lea.vmem [#allocation3], %s606
    %v612 = vld [vmem:[%s611] sm:$0x1]
    %v613 = vadd.f32 %v612, %v610
    %614 = vst [vmem:[%s611] sm:$0x1] %v613
    %s615 = sld [smem:[#allocation6 + $0x11]]
    %s616 = sld [smem:[#allocation10 + $0x11]]
    %s617 = scalar_lea.vmem [#allocation2], %s615
    %v618 = vld [vmem:[%s617] sm:$0x1]
    %v621 = vunpack.c.l.s4 1966171168
    %v622 = vunpack.c.0.s8 %v621
    %v623 = vlaneseq
    %v624 = vshrl.u32 %v623, 7
    %v625 = vsub.s32 %v622, %v624
    %v626 = vrot.slane %v282, %v625
    %v627 = vcombine.high %v626, %v626
    %v629 = vunpack.c.l.s4 1966171168
    %v630 = vunpack.c.0.s8 %v629
    %v631 = vlaneseq
    %v632 = vshrl.u32 %v631, 7
    %v633 = vsub.s32 %v630, %v632
    %v634 = vrot.slane %v626, %v633
    %v636 = vunpack.c.l.s4 1966171168
    %v637 = vunpack.c.0.s8 %v636
    %v638 = vlaneseq
    %v639 = vshrl.u32 %v638, 7
    %v640 = vsub.s32 %v637, %v639
    %v641 = vrot.slane %v627, %v640
    %v643 = vadd.f32 %v618, %v641
    %v644 = vmax.f32 %v643, 0.0
    %s645 = scalar_lea.vmem [#allocation3], %s616
    %v646 = vld [vmem:[%s645] sm:$0x1]
    %v647 = vadd.f32 %v646, %v644
    %648 = vst [vmem:[%s645] sm:$0x1] %v647
    %s649 = sld [smem:[#allocation6 + $0x12]]
    %s650 = sld [smem:[#allocation10 + $0x12]]
    %s651 = scalar_lea.vmem [#allocation2], %s649
    %v652 = vld [vmem:[%s651] sm:$0x1]
    %v653 = vcombine.high %v634, %v634
    %v655 = vadd.f32 %v652, %v653
    %v656 = vmax.f32 %v655, 0.0
    %s657 = scalar_lea.vmem [#allocation3], %s650
    %v658 = vld [vmem:[%s657] sm:$0x1]
    %v659 = vadd.f32 %v658, %v656
    %660 = vst [vmem:[%s657] sm:$0x1] %v659
    %s661 = sld [smem:[#allocation6 + $0x13]]
    %s662 = sld [smem:[#allocation10 + $0x13]]
    %s663 = scalar_lea.vmem [#allocation2], %s661
    %v664 = vld [vmem:[%s663] sm:$0x1]
    %v665 = vcombine.high %v641, %v641
    %v667 = vadd.f32 %v664, %v665
    %v668 = vmax.f32 %v667, 0.0
    %s669 = scalar_lea.vmem [#allocation3], %s662
    %v670 = vld [vmem:[%s669] sm:$0x1]
    %v671 = vadd.f32 %v670, %v668
    %672 = vst [vmem:[%s669] sm:$0x1] %v671
    %s673 = sld [smem:[#allocation6 + $0x14]]
    %s674 = sld [smem:[#allocation10 + $0x14]]
    %s675 = scalar_lea.vmem [#allocation2], %s673
    %v676 = vld [vmem:[%s675] sm:$0x1]
    %v677 = vcombine.high %v282, %v282
    %v679 = vunpack.c.l.s4 1966171168
    %v680 = vunpack.c.0.s8 %v679
    %v681 = vlaneseq
    %v682 = vshrl.u32 %v681, 7
    %v683 = vsub.s32 %v680, %v682
    %v684 = vrot.slane %v677, %v683
    %v686 = vunpack.c.l.s4 1966171168
    %v687 = vunpack.c.0.s8 %v686
    %v688 = vlaneseq
    %v689 = vshrl.u32 %v688, 7
    %v690 = vsub.s32 %v687, %v689
    %v691 = vrot.slane %v684, %v690
    %v693 = vadd.f32 %v676, %v691
    %v694 = vmax.f32 %v693, 0.0
    %s695 = scalar_lea.vmem [#allocation3], %s674
    %v696 = vld [vmem:[%s695] sm:$0x1]
    %v697 = vadd.f32 %v696, %v694
    %698 = vst [vmem:[%s695] sm:$0x1] %v697
    %s699 = sld [smem:[#allocation6 + $0x15]]
    %s700 = sld [smem:[#allocation10 + $0x15]]
    %s701 = scalar_lea.vmem [#allocation2], %s699
    %v702 = vld [vmem:[%s701] sm:$0x1]
    %v703 = vcombine.high %v684, %v684
    %v705 = vunpack.c.l.s4 1966171168
    %v706 = vunpack.c.0.s8 %v705
    %v707 = vlaneseq
    %v708 = vshrl.u32 %v707, 7
    %v709 = vsub.s32 %v706, %v708
    %v710 = vrot.slane %v703, %v709
    %v712 = vadd.f32 %v702, %v710
    %v713 = vmax.f32 %v712, 0.0
    %s714 = scalar_lea.vmem [#allocation3], %s700
    %v715 = vld [vmem:[%s714] sm:$0x1]
    %v716 = vadd.f32 %v715, %v713
    %717 = vst [vmem:[%s714] sm:$0x1] %v716
    %s718 = sld [smem:[#allocation6 + $0x16]]
    %s719 = sld [smem:[#allocation10 + $0x16]]
    %s720 = scalar_lea.vmem [#allocation2], %s718
    %v721 = vld [vmem:[%s720] sm:$0x1]
    %v722 = vcombine.high %v691, %v691
    %v724 = vadd.f32 %v721, %v722
    %v725 = vmax.f32 %v724, 0.0
    %s726 = scalar_lea.vmem [#allocation3], %s719
    %v727 = vld [vmem:[%s726] sm:$0x1]
    %v728 = vadd.f32 %v727, %v725
    %729 = vst [vmem:[%s726] sm:$0x1] %v728
    %s730 = sld [smem:[#allocation6 + $0x17]]
    %s731 = sld [smem:[#allocation10 + $0x17]]
    %s732 = scalar_lea.vmem [#allocation2], %s730
    %v733 = vld [vmem:[%s732] sm:$0x1]
    %v734 = vcombine.high %v710, %v710
    %v736 = vadd.f32 %v733, %v734
    %v737 = vmax.f32 %v736, 0.0
    %s738 = scalar_lea.vmem [#allocation3], %s731
    %v739 = vld [vmem:[%s738] sm:$0x1]
    %v740 = vadd.f32 %v739, %v737
    %741 = vst [vmem:[%s738] sm:$0x1] %v740
    %s742 = sld [smem:[#allocation6 + $0x18]]
    %s743 = sld [smem:[#allocation10 + $0x18]]
    %s744 = scalar_lea.vmem [#allocation2], %s742
    %v745 = vld [vmem:[%s744] sm:$0x1]
    %v746 = vadd.f32 %v745, %v283
    %v747 = vmax.f32 %v746, 0.0
    %s748 = scalar_lea.vmem [#allocation3], %s743
    %v749 = vld [vmem:[%s748] sm:$0x1]
    %v750 = vadd.f32 %v749, %v747
    %751 = vst [vmem:[%s748] sm:$0x1] %v750
    %s752 = sld [smem:[#allocation6 + $0x19]]
    %s753 = sld [smem:[#allocation10 + $0x19]]
    %s754 = scalar_lea.vmem [#allocation2], %s752
    %v755 = vld [vmem:[%s754] sm:$0x1]
    %v758 = vunpack.c.l.s4 1966171168
    %v759 = vunpack.c.0.s8 %v758
    %v760 = vlaneseq
    %v761 = vshrl.u32 %v760, 7
    %v762 = vsub.s32 %v759, %v761
    %v763 = vrot.slane %v283, %v762
    %v764 = vcombine.high %v763, %v763
    %v766 = vunpack.c.l.s4 1966171168
    %v767 = vunpack.c.0.s8 %v766
    %v768 = vlaneseq
    %v769 = vshrl.u32 %v768, 7
    %v770 = vsub.s32 %v767, %v769
    %v771 = vrot.slane %v763, %v770
    %v773 = vunpack.c.l.s4 1966171168
    %v774 = vunpack.c.0.s8 %v773
    %v775 = vlaneseq
    %v776 = vshrl.u32 %v775, 7
    %v777 = vsub.s32 %v774, %v776
    %v778 = vrot.slane %v764, %v777
    %v780 = vadd.f32 %v755, %v778
    %v781 = vmax.f32 %v780, 0.0
    %s782 = scalar_lea.vmem [#allocation3], %s753
    %v783 = vld [vmem:[%s782] sm:$0x1]
    %v784 = vadd.f32 %v783, %v781
    %785 = vst [vmem:[%s782] sm:$0x1] %v784
    %s786 = sld [smem:[#allocation6 + $0x1a]]
    %s787 = sld [smem:[#allocation10 + $0x1a]]
    %s788 = scalar_lea.vmem [#allocation2], %s786
    %v789 = vld [vmem:[%s788] sm:$0x1]
    %v790 = vcombine.high %v771, %v771
    %v792 = vadd.f32 %v789, %v790
    %v793 = vmax.f32 %v792, 0.0
    %s794 = scalar_lea.vmem [#allocation3], %s787
    %v795 = vld [vmem:[%s794] sm:$0x1]
    %v796 = vadd.f32 %v795, %v793
    %797 = vst [vmem:[%s794] sm:$0x1] %v796
    %s798 = sld [smem:[#allocation6 + $0x1b]]
    %s799 = sld [smem:[#allocation10 + $0x1b]]
    %s800 = scalar_lea.vmem [#allocation2], %s798
    %v801 = vld [vmem:[%s800] sm:$0x1]
    %v802 = vcombine.high %v778, %v778
    %v804 = vadd.f32 %v801, %v802
    %v805 = vmax.f32 %v804, 0.0
    %s806 = scalar_lea.vmem [#allocation3], %s799
    %v807 = vld [vmem:[%s806] sm:$0x1]
    %v808 = vadd.f32 %v807, %v805
    %809 = vst [vmem:[%s806] sm:$0x1] %v808
    %s810 = sld [smem:[#allocation6 + $0x1c]]
    %s811 = sld [smem:[#allocation10 + $0x1c]]
    %s812 = scalar_lea.vmem [#allocation2], %s810
    %v813 = vld [vmem:[%s812] sm:$0x1]
    %v814 = vcombine.high %v283, %v283
    %v816 = vunpack.c.l.s4 1966171168
    %v817 = vunpack.c.0.s8 %v816
    %v818 = vlaneseq
    %v819 = vshrl.u32 %v818, 7
    %v820 = vsub.s32 %v817, %v819
    %v821 = vrot.slane %v814, %v820
    %v823 = vunpack.c.l.s4 1966171168
    %v824 = vunpack.c.0.s8 %v823
    %v825 = vlaneseq
    %v826 = vshrl.u32 %v825, 7
    %v827 = vsub.s32 %v824, %v826
    %v828 = vrot.slane %v821, %v827
    %v830 = vadd.f32 %v813, %v828
    %v831 = vmax.f32 %v830, 0.0
    %s832 = scalar_lea.vmem [#allocation3], %s811
    %v833 = vld [vmem:[%s832] sm:$0x1]
    %v834 = vadd.f32 %v833, %v831
    %835 = vst [vmem:[%s832] sm:$0x1] %v834
    %s836 = sld [smem:[#allocation6 + $0x1d]]
    %s837 = sld [smem:[#allocation10 + $0x1d]]
    %s838 = scalar_lea.vmem [#allocation2], %s836
    %v839 = vld [vmem:[%s838] sm:$0x1]
    %v840 = vcombine.high %v821, %v821
    %v842 = vunpack.c.l.s4 1966171168
    %v843 = vunpack.c.0.s8 %v842
    %v844 = vlaneseq
    %v845 = vshrl.u32 %v844, 7
    %v846 = vsub.s32 %v843, %v845
    %v847 = vrot.slane %v840, %v846
    %v849 = vadd.f32 %v839, %v847
    %v850 = vmax.f32 %v849, 0.0
    %s851 = scalar_lea.vmem [#allocation3], %s837
    %v852 = vld [vmem:[%s851] sm:$0x1]
    %v853 = vadd.f32 %v852, %v850
    %854 = vst [vmem:[%s851] sm:$0x1] %v853
    %s855 = sld [smem:[#allocation6 + $0x1e]]
    %s856 = sld [smem:[#allocation10 + $0x1e]]
    %s857 = scalar_lea.vmem [#allocation2], %s855
    %v858 = vld [vmem:[%s857] sm:$0x1]
    %v859 = vcombine.high %v828, %v828
    %v861 = vadd.f32 %v858, %v859
    %v862 = vmax.f32 %v861, 0.0
    %s863 = scalar_lea.vmem [#allocation3], %s856
    %v864 = vld [vmem:[%s863] sm:$0x1]
    %v865 = vadd.f32 %v864, %v862
    %866 = vst [vmem:[%s863] sm:$0x1] %v865
    %s867 = sld [smem:[#allocation6 + $0x1f]]
    %s868 = sld [smem:[#allocation10 + $0x1f]]
    %s869 = scalar_lea.vmem [#allocation2], %s867
    %v870 = vld [vmem:[%s869] sm:$0x1]
    %v871 = vcombine.high %v847, %v847
    %v873 = vadd.f32 %v870, %v871
    %v874 = vmax.f32 %v873, 0.0
    %s875 = scalar_lea.vmem [#allocation3], %s868
    %v876 = vld [vmem:[%s875] sm:$0x1]
    %v877 = vadd.f32 %v876, %v874
    %878 = vst [vmem:[%s875] sm:$0x1] %v877
    %v879 = vld [vmem:[#allocation3] sm:$0x1]
    %880 = vst [vmem:[#allocation5] sm:$0x1] %v879
    %s881 = scalar_lea.vmem [#allocation3], 1
    %v882 = vld [vmem:[%s881] sm:$0x1]
    %883 = vst [vmem:[#allocation5 + $0x1] sm:$0x1] %v882
    %s884 = scalar_lea.vmem [#allocation3], 2
    %v885 = vld [vmem:[%s884] sm:$0x1]
    %886 = vst [vmem:[#allocation5 + $0x2] sm:$0x1] %v885
    %s887 = scalar_lea.vmem [#allocation3], 3
    %v888 = vld [vmem:[%s887] sm:$0x1]
    %889 = vst [vmem:[#allocation5 + $0x3] sm:$0x1] %v888
    %s890 = scalar_lea.vmem [#allocation3], 4
    %v891 = vld [vmem:[%s890] sm:$0x1]
    %892 = vst [vmem:[#allocation5 + $0x4] sm:$0x1] %v891
    %s893 = scalar_lea.vmem [#allocation3], 5
    %v894 = vld [vmem:[%s893] sm:$0x1]
    %895 = vst [vmem:[#allocation5 + $0x5] sm:$0x1] %v894
    %s896 = scalar_lea.vmem [#allocation3], 6
    %v897 = vld [vmem:[%s896] sm:$0x1]
    %898 = vst [vmem:[#allocation5 + $0x6] sm:$0x1] %v897
    %s899 = scalar_lea.vmem [#allocation3], 7
    %v900 = vld [vmem:[%s899] sm:$0x1]
    %901 = vst [vmem:[#allocation5 + $0x7] sm:$0x1] %v900
    %s902 = scalar_lea.vmem [#allocation3], 8
    %v903 = vld [vmem:[%s902] sm:$0x1]
    %904 = vst [vmem:[#allocation5 + $0x8] sm:$0x1] %v903
    %s905 = scalar_lea.vmem [#allocation3], 9
    %v906 = vld [vmem:[%s905] sm:$0x1]
    %907 = vst [vmem:[#allocation5 + $0x9] sm:$0x1] %v906
    %s908 = scalar_lea.vmem [#allocation3], 10
    %v909 = vld [vmem:[%s908] sm:$0x1]
    %910 = vst [vmem:[#allocation5 + $0xa] sm:$0x1] %v909
    %s911 = scalar_lea.vmem [#allocation3], 11
    %v912 = vld [vmem:[%s911] sm:$0x1]
    %913 = vst [vmem:[#allocation5 + $0xb] sm:$0x1] %v912
    %s914 = scalar_lea.vmem [#allocation3], 12
    %v915 = vld [vmem:[%s914] sm:$0x1]
    %916 = vst [vmem:[#allocation5 + $0xc] sm:$0x1] %v915
    %s917 = scalar_lea.vmem [#allocation3], 13
    %v918 = vld [vmem:[%s917] sm:$0x1]
    %919 = vst [vmem:[#allocation5 + $0xd] sm:$0x1] %v918
    %s920 = scalar_lea.vmem [#allocation3], 14
    %v921 = vld [vmem:[%s920] sm:$0x1]
    %922 = vst [vmem:[#allocation5 + $0xe] sm:$0x1] %v921
    %s923 = scalar_lea.vmem [#allocation3], 15
    %v924 = vld [vmem:[%s923] sm:$0x1]
    %925 = vst [vmem:[#allocation5 + $0xf] sm:$0x1] %v924
    %v926 = vld [vmem:[#allocation5] sm:$0xff]
    %v927 = vld [vmem:[#allocation5 + $0x8] sm:$0xff]
    %v928 = vld [vmem:[#allocation13] sm:$0xf]
    %v929 = vld [vmem:[#allocation13 + $0x4] sm:$0xf]
    %v930 = vld [vmem:[#allocation13 + $0x8] sm:$0xf]
    %v931 = vld [vmem:[#allocation13 + $0xc] sm:$0xf]
    %v932 = vld [vmem:[#allocation13 + $0x10] sm:$0xf]
    %v933 = vld [vmem:[#allocation13 + $0x14] sm:$0xf]
    %v934 = vld [vmem:[#allocation13 + $0x18] sm:$0xf]
    %v935 = vld [vmem:[#allocation13 + $0x1c] sm:$0xf]
    %v936 = vld [vmem:[#allocation13 + $0x20] sm:$0xf]
    %v937 = vld [vmem:[#allocation13 + $0x24] sm:$0xf]
    %v938 = vld [vmem:[#allocation13 + $0x28] sm:$0xf]
    %v939 = vld [vmem:[#allocation13 + $0x2c] sm:$0xf]
    %v940 = vld [vmem:[#allocation13 + $0x30] sm:$0xf]
    %v941 = vld [vmem:[#allocation13 + $0x34] sm:$0xf]
    %v942 = vld [vmem:[#allocation13 + $0x38] sm:$0xf]
    %v943 = vld [vmem:[#allocation13 + $0x3c] sm:$0xf]
    %v944 = vld [vmem:[%s11] sm:$0x1]
    %v945 = vpack.c.bf16 %v927, %v926
    %v947 = vlaneseq
    %v948 = vshrl.u32 %v947, 7
    %v949 = vsub.s32 0, %v948
    %v950 = vrot.slane %v944, %v949
    %v968 = vunpack.c.l.b16 %v928
    %v969 = vunpack.c.l.b16 %v929
    %v970 = vunpack.c.l.b16 %v930
    %v971 = vunpack.c.l.b16 %v931
    %v972 = vunpack.c.l.b16 %v932
    %v973 = vunpack.c.l.b16 %v933
    %v974 = vunpack.c.l.b16 %v934
    %v975 = vunpack.c.l.b16 %v935
    %v976 = vunpack.c.l.b16 %v936
    %v977 = vunpack.c.l.b16 %v937
    %v978 = vunpack.c.l.b16 %v938
    %v979 = vunpack.c.l.b16 %v939
    %v980 = vunpack.c.l.b16 %v940
    %v981 = vunpack.c.l.b16 %v941
    %v982 = vunpack.c.l.b16 %v942
    %v983 = vunpack.c.l.b16 %v943
    %v984 = vpack.c.b16 %v969, %v968
    %v985 = vpack.c.b16 %v971, %v970
    %v986 = vpack.c.b16 %v973, %v972
    %v987 = vpack.c.b16 %v975, %v974
    %v988 = vpack.c.b16 %v977, %v976
    %v989 = vpack.c.b16 %v979, %v978
    %v990 = vpack.c.b16 %v981, %v980
    %v991 = vpack.c.b16 %v983, %v982
    %1000 = vmatprep.subr.bf16.mxu0 0
    %1001 = vmatpush1.bf16.msra.mxu0 %v991
    %1002 = vmatprep.subr.bf16.mxu0 0
    %1003 = vmatpush1.bf16.msra.mxu0 %v990
    %1004 = vmatprep.subr.bf16.mxu0 0
    %1005 = vmatpush1.bf16.msra.mxu0 %v989
    %1006 = vmatprep.subr.bf16.mxu0 0
    %1007 = vmatpush1.bf16.msra.mxu0 %v988
    %1008 = vmatprep.subr.bf16.mxu0 0
    %1009 = vmatpush1.bf16.msra.mxu0 %v987
    %1010 = vmatprep.subr.bf16.mxu0 0
    %1011 = vmatpush1.bf16.msra.mxu0 %v986
    %1012 = vmatprep.subr.bf16.mxu0 0
    %1013 = vmatpush1.bf16.msra.mxu0 %v985
    %1014 = vmatprep.subr.bf16.mxu0 0
    %1015 = vmatpush1.bf16.msra.mxu0 %v984
    %1016 = vmatprep.subr.bf16.mxu0 0
    %1017 = vmatpush2.bf16.msra.mxu0 0
    %1018 = vmatprep.subr.bf16.mxu0 0
    %1019 = vmatpush2.bf16.msra.mxu0 0
    %1020 = vmatprep.subr.bf16.mxu0 0
    %1021 = vmatpush2.bf16.msra.mxu0 0
    %1022 = vmatprep.subr.bf16.mxu0 0
    %1023 = vmatpush2.bf16.msra.mxu0 0
    %1024 = vmatprep.subr.bf16.mxu0 0
    %1025 = vmatpush2.bf16.msra.mxu0 0
    %1026 = vmatprep.subr.bf16.mxu0 0
    %1027 = vmatpush2.bf16.msra.mxu0 0
    %1028 = vmatprep.subr.bf16.mxu0 0
    %1029 = vmatpush2.bf16.msra.mxu0 0
    %1030 = vmatprep.subr.bf16.mxu0 0
    %1031 = vmatpush2.bf16.msra.mxu0 0
    %1032 = vmatprep.mubr.bf16.mxu0 0
    %1033 = vmatmul.mubr.bf16.gmra.mxu0 %v945
    %v1034 = vpop.f32.mrf.mxu0
    %v1035 = vadd.f32 %v950, %v1034
    %v1036 = vpop.f32.mrf.mxu0
    %v1037 = vpop.f32.mrf.mxu0
    %v1038 = vadd.f32 %v950, %v1037
    %v1039 = vpop.f32.mrf.mxu0
    %1040 = vdwg.mxu0
    %v1041 = vmax.f32 %v1035, 0.0
    %v1042 = vmax.f32 %v1038, 0.0
    %1043 = vst [vmem:[#allocation2] sm:$0x1] %v1041
    %1044 = vst [vmem:[%s285 - $0x1] sm:$0x2] %v1041
    %1045 = vst [vmem:[%s287 - $0x2] sm:$0x4] %v1041
    %1046 = vst [vmem:[%s289 - $0x3] sm:$0x8] %v1041
    %1047 = vst [vmem:[%s291 - $0x4] sm:$0x10] %v1041
    %1048 = vst [vmem:[%s293 - $0x5] sm:$0x20] %v1041
    %1049 = vst [vmem:[%s295 - $0x6] sm:$0x40] %v1041
    %1050 = vst [vmem:[%s297 - $0x7] sm:$0x80] %v1041
    %1051 = vst [vmem:[%s299] sm:$0x1] %v1042
    %1052 = vst [vmem:[%s301 - $0x1] sm:$0x2] %v1042
    %1053 = vst [vmem:[%s303 - $0x2] sm:$0x4] %v1042
    %1054 = vst [vmem:[%s305 - $0x3] sm:$0x8] %v1042
    %1055 = vst [vmem:[%s307 - $0x4] sm:$0x10] %v1042
    %1056 = vst [vmem:[%s309 - $0x5] sm:$0x20] %v1042
    %1057 = vst [vmem:[%s311 - $0x6] sm:$0x40] %v1042
    %1058 = vst [vmem:[%s313 - $0x7] sm:$0x80] %v1042
    %1059 = vst [vmem:[#allocation3] sm:$0x1] 0.0
    %1060 = vst [vmem:[#allocation3 + $0x1] sm:$0x1] 0.0
    %1061 = vst [vmem:[#allocation3 + $0x2] sm:$0x1] 0.0
    %1062 = vst [vmem:[#allocation3 + $0x3] sm:$0x1] 0.0
    %1063 = vst [vmem:[#allocation3 + $0x4] sm:$0x1] 0.0
    %1064 = vst [vmem:[#allocation3 + $0x5] sm:$0x1] 0.0
    %1065 = vst [vmem:[#allocation3 + $0x6] sm:$0x1] 0.0
    %1066 = vst [vmem:[#allocation3 + $0x7] sm:$0x1] 0.0
    %1067 = vst [vmem:[#allocation3 + $0x8] sm:$0x1] 0.0
    %1068 = vst [vmem:[#allocation3 + $0x9] sm:$0x1] 0.0
    %1069 = vst [vmem:[#allocation3 + $0xa] sm:$0x1] 0.0
    %1070 = vst [vmem:[#allocation3 + $0xb] sm:$0x1] 0.0
    %1071 = vst [vmem:[#allocation3 + $0xc] sm:$0x1] 0.0
    %1072 = vst [vmem:[#allocation3 + $0xd] sm:$0x1] 0.0
    %1073 = vst [vmem:[#allocation3 + $0xe] sm:$0x1] 0.0
    %1074 = vst [vmem:[#allocation3 + $0xf] sm:$0x1] 0.0
    %s1075 = sld [smem:[#allocation6]]
    %s1076 = sld [smem:[#allocation10]]
    %s1077 = scalar_lea.vmem [#allocation2], %s1075
    %v1078 = vld [vmem:[%s1077] sm:$0x1]
    %v1079 = vadd.f32 %v1078, %v280
    %v1080 = vmax.f32 %v1079, 0.0
    %s1081 = scalar_lea.vmem [#allocation3], %s1076
    %v1082 = vld [vmem:[%s1081] sm:$0x1]
    %v1083 = vadd.f32 %v1082, %v1080
    %1084 = vst [vmem:[%s1081] sm:$0x1] %v1083
    %s1085 = sld [smem:[#allocation6 + $0x1]]
    %s1086 = sld [smem:[#allocation10 + $0x1]]
    %s1087 = scalar_lea.vmem [#allocation2], %s1085
    %v1088 = vld [vmem:[%s1087] sm:$0x1]
    %v1089 = vadd.f32 %v1088, %v367
    %v1090 = vmax.f32 %v1089, 0.0
    %s1091 = scalar_lea.vmem [#allocation3], %s1086
    %v1092 = vld [vmem:[%s1091] sm:$0x1]
    %v1093 = vadd.f32 %v1092, %v1090
    %1094 = vst [vmem:[%s1091] sm:$0x1] %v1093
    %s1095 = sld [smem:[#allocation6 + $0x2]]
    %s1096 = sld [smem:[#allocation10 + $0x2]]
    %s1097 = scalar_lea.vmem [#allocation2], %s1095
    %v1098 = vld [vmem:[%s1097] sm:$0x1]
    %v1099 = vadd.f32 %v1098, %v379
    %v1100 = vmax.f32 %v1099, 0.0
    %s1101 = scalar_lea.vmem [#allocation3], %s1096
    %v1102 = vld [vmem:[%s1101] sm:$0x1]
    %v1103 = vadd.f32 %v1102, %v1100
    %1104 = vst [vmem:[%s1101] sm:$0x1] %v1103
    %s1105 = sld [smem:[#allocation6 + $0x3]]
    %s1106 = sld [smem:[#allocation10 + $0x3]]
    %s1107 = scalar_lea.vmem [#allocation2], %s1105
    %v1108 = vld [vmem:[%s1107] sm:$0x1]
    %v1109 = vadd.f32 %v1108, %v391
    %v1110 = vmax.f32 %v1109, 0.0
    %s1111 = scalar_lea.vmem [#allocation3], %s1106
    %v1112 = vld [vmem:[%s1111] sm:$0x1]
    %v1113 = vadd.f32 %v1112, %v1110
    %1114 = vst [vmem:[%s1111] sm:$0x1] %v1113
    %s1115 = sld [smem:[#allocation6 + $0x4]]
    %s1116 = sld [smem:[#allocation10 + $0x4]]
    %s1117 = scalar_lea.vmem [#allocation2], %s1115
    %v1118 = vld [vmem:[%s1117] sm:$0x1]
    %v1119 = vadd.f32 %v1118, %v417
    %v1120 = vmax.f32 %v1119, 0.0
    %s1121 = scalar_lea.vmem [#allocation3], %s1116
    %v1122 = vld [vmem:[%s1121] sm:$0x1]
    %v1123 = vadd.f32 %v1122, %v1120
    %1124 = vst [vmem:[%s1121] sm:$0x1] %v1123
    %s1125 = sld [smem:[#allocation6 + $0x5]]
    %s1126 = sld [smem:[#allocation10 + $0x5]]
    %s1127 = scalar_lea.vmem [#allocation2], %s1125
    %v1128 = vld [vmem:[%s1127] sm:$0x1]
    %v1129 = vadd.f32 %v1128, %v436
    %v1130 = vmax.f32 %v1129, 0.0
    %s1131 = scalar_lea.vmem [#allocation3], %s1126
    %v1132 = vld [vmem:[%s1131] sm:$0x1]
    %v1133 = vadd.f32 %v1132, %v1130
    %1134 = vst [vmem:[%s1131] sm:$0x1] %v1133
    %s1135 = sld [smem:[#allocation6 + $0x6]]
    %s1136 = sld [smem:[#allocation10 + $0x6]]
    %s1137 = scalar_lea.vmem [#allocation2], %s1135
    %v1138 = vld [vmem:[%s1137] sm:$0x1]
    %v1139 = vadd.f32 %v1138, %v448
    %v1140 = vmax.f32 %v1139, 0.0
    %s1141 = scalar_lea.vmem [#allocation3], %s1136
    %v1142 = vld [vmem:[%s1141] sm:$0x1]
    %v1143 = vadd.f32 %v1142, %v1140
    %1144 = vst [vmem:[%s1141] sm:$0x1] %v1143
    %s1145 = sld [smem:[#allocation6 + $0x7]]
    %s1146 = sld [smem:[#allocation10 + $0x7]]
    %s1147 = scalar_lea.vmem [#allocation2], %s1145
    %v1148 = vld [vmem:[%s1147] sm:$0x1]
    %v1149 = vadd.f32 %v1148, %v460
    %v1150 = vmax.f32 %v1149, 0.0
    %s1151 = scalar_lea.vmem [#allocation3], %s1146
    %v1152 = vld [vmem:[%s1151] sm:$0x1]
    %v1153 = vadd.f32 %v1152, %v1150
    %1154 = vst [vmem:[%s1151] sm:$0x1] %v1153
    %s1155 = sld [smem:[#allocation6 + $0x8]]
    %s1156 = sld [smem:[#allocation10 + $0x8]]
    %s1157 = scalar_lea.vmem [#allocation2], %s1155
    %v1158 = vld [vmem:[%s1157] sm:$0x1]
    %v1159 = vadd.f32 %v1158, %v281
    %v1160 = vmax.f32 %v1159, 0.0
    %s1161 = scalar_lea.vmem [#allocation3], %s1156
    %v1162 = vld [vmem:[%s1161] sm:$0x1]
    %v1163 = vadd.f32 %v1162, %v1160
    %1164 = vst [vmem:[%s1161] sm:$0x1] %v1163
    %s1165 = sld [smem:[#allocation6 + $0x9]]
    %s1166 = sld [smem:[#allocation10 + $0x9]]
    %s1167 = scalar_lea.vmem [#allocation2], %s1165
    %v1168 = vld [vmem:[%s1167] sm:$0x1]
    %v1169 = vadd.f32 %v1168, %v504
    %v1170 = vmax.f32 %v1169, 0.0
    %s1171 = scalar_lea.vmem [#allocation3], %s1166
    %v1172 = vld [vmem:[%s1171] sm:$0x1]
    %v1173 = vadd.f32 %v1172, %v1170
    %1174 = vst [vmem:[%s1171] sm:$0x1] %v1173
    %s1175 = sld [smem:[#allocation6 + $0xa]]
    %s1176 = sld [smem:[#allocation10 + $0xa]]
    %s1177 = scalar_lea.vmem [#allocation2], %s1175
    %v1178 = vld [vmem:[%s1177] sm:$0x1]
    %v1179 = vadd.f32 %v1178, %v516
    %v1180 = vmax.f32 %v1179, 0.0
    %s1181 = scalar_lea.vmem [#allocation3], %s1176
    %v1182 = vld [vmem:[%s1181] sm:$0x1]
    %v1183 = vadd.f32 %v1182, %v1180
    %1184 = vst [vmem:[%s1181] sm:$0x1] %v1183
    %s1185 = sld [smem:[#allocation6 + $0xb]]
    %s1186 = sld [smem:[#allocation10 + $0xb]]
    %s1187 = scalar_lea.vmem [#allocation2], %s1185
    %v1188 = vld [vmem:[%s1187] sm:$0x1]
    %v1189 = vadd.f32 %v1188, %v528
    %v1190 = vmax.f32 %v1189, 0.0
    %s1191 = scalar_lea.vmem [#allocation3], %s1186
    %v1192 = vld [vmem:[%s1191] sm:$0x1]
    %v1193 = vadd.f32 %v1192, %v1190
    %1194 = vst [vmem:[%s1191] sm:$0x1] %v1193
    %s1195 = sld [smem:[#allocation6 + $0xc]]
    %s1196 = sld [smem:[#allocation10 + $0xc]]
    %s1197 = scalar_lea.vmem [#allocation2], %s1195
    %v1198 = vld [vmem:[%s1197] sm:$0x1]
    %v1199 = vadd.f32 %v1198, %v554
    %v1200 = vmax.f32 %v1199, 0.0
    %s1201 = scalar_lea.vmem [#allocation3], %s1196
    %v1202 = vld [vmem:[%s1201] sm:$0x1]
    %v1203 = vadd.f32 %v1202, %v1200
    %1204 = vst [vmem:[%s1201] sm:$0x1] %v1203
    %s1205 = sld [smem:[#allocation6 + $0xd]]
    %s1206 = sld [smem:[#allocation10 + $0xd]]
    %s1207 = scalar_lea.vmem [#allocation2], %s1205
    %v1208 = vld [vmem:[%s1207] sm:$0x1]
    %v1209 = vadd.f32 %v1208, %v573
    %v1210 = vmax.f32 %v1209, 0.0
    %s1211 = scalar_lea.vmem [#allocation3], %s1206
    %v1212 = vld [vmem:[%s1211] sm:$0x1]
    %v1213 = vadd.f32 %v1212, %v1210
    %1214 = vst [vmem:[%s1211] sm:$0x1] %v1213
    %s1215 = sld [smem:[#allocation6 + $0xe]]
    %s1216 = sld [smem:[#allocation10 + $0xe]]
    %s1217 = scalar_lea.vmem [#allocation2], %s1215
    %v1218 = vld [vmem:[%s1217] sm:$0x1]
    %v1219 = vadd.f32 %v1218, %v585
    %v1220 = vmax.f32 %v1219, 0.0
    %s1221 = scalar_lea.vmem [#allocation3], %s1216
    %v1222 = vld [vmem:[%s1221] sm:$0x1]
    %v1223 = vadd.f32 %v1222, %v1220
    %1224 = vst [vmem:[%s1221] sm:$0x1] %v1223
    %s1225 = sld [smem:[#allocation6 + $0xf]]
    %s1226 = sld [smem:[#allocation10 + $0xf]]
    %s1227 = scalar_lea.vmem [#allocation2], %s1225
    %v1228 = vld [vmem:[%s1227] sm:$0x1]
    %v1229 = vadd.f32 %v1228, %v597
    %v1230 = vmax.f32 %v1229, 0.0
    %s1231 = scalar_lea.vmem [#allocation3], %s1226
    %v1232 = vld [vmem:[%s1231] sm:$0x1]
    %v1233 = vadd.f32 %v1232, %v1230
    %1234 = vst [vmem:[%s1231] sm:$0x1] %v1233
    %s1235 = sld [smem:[#allocation6 + $0x10]]
    %s1236 = sld [smem:[#allocation10 + $0x10]]
    %s1237 = scalar_lea.vmem [#allocation2], %s1235
    %v1238 = vld [vmem:[%s1237] sm:$0x1]
    %v1239 = vadd.f32 %v1238, %v282
    %v1240 = vmax.f32 %v1239, 0.0
    %s1241 = scalar_lea.vmem [#allocation3], %s1236
    %v1242 = vld [vmem:[%s1241] sm:$0x1]
    %v1243 = vadd.f32 %v1242, %v1240
    %1244 = vst [vmem:[%s1241] sm:$0x1] %v1243
    %s1245 = sld [smem:[#allocation6 + $0x11]]
    %s1246 = sld [smem:[#allocation10 + $0x11]]
    %s1247 = scalar_lea.vmem [#allocation2], %s1245
    %v1248 = vld [vmem:[%s1247] sm:$0x1]
    %v1249 = vadd.f32 %v1248, %v641
    %v1250 = vmax.f32 %v1249, 0.0
    %s1251 = scalar_lea.vmem [#allocation3], %s1246
    %v1252 = vld [vmem:[%s1251] sm:$0x1]
    %v1253 = vadd.f32 %v1252, %v1250
    %1254 = vst [vmem:[%s1251] sm:$0x1] %v1253
    %s1255 = sld [smem:[#allocation6 + $0x12]]
    %s1256 = sld [smem:[#allocation10 + $0x12]]
    %s1257 = scalar_lea.vmem [#allocation2], %s1255
    %v1258 = vld [vmem:[%s1257] sm:$0x1]
    %v1259 = vadd.f32 %v1258, %v653
    %v1260 = vmax.f32 %v1259, 0.0
    %s1261 = scalar_lea.vmem [#allocation3], %s1256
    %v1262 = vld [vmem:[%s1261] sm:$0x1]
    %v1263 = vadd.f32 %v1262, %v1260
    %1264 = vst [vmem:[%s1261] sm:$0x1] %v1263
    %s1265 = sld [smem:[#allocation6 + $0x13]]
    %s1266 = sld [smem:[#allocation10 + $0x13]]
    %s1267 = scalar_lea.vmem [#allocation2], %s1265
    %v1268 = vld [vmem:[%s1267] sm:$0x1]
    %v1269 = vadd.f32 %v1268, %v665
    %v1270 = vmax.f32 %v1269, 0.0
    %s1271 = scalar_lea.vmem [#allocation3], %s1266
    %v1272 = vld [vmem:[%s1271] sm:$0x1]
    %v1273 = vadd.f32 %v1272, %v1270
    %1274 = vst [vmem:[%s1271] sm:$0x1] %v1273
    %s1275 = sld [smem:[#allocation6 + $0x14]]
    %s1276 = sld [smem:[#allocation10 + $0x14]]
    %s1277 = scalar_lea.vmem [#allocation2], %s1275
    %v1278 = vld [vmem:[%s1277] sm:$0x1]
    %v1279 = vadd.f32 %v1278, %v691
    %v1280 = vmax.f32 %v1279, 0.0
    %s1281 = scalar_lea.vmem [#allocation3], %s1276
    %v1282 = vld [vmem:[%s1281] sm:$0x1]
    %v1283 = vadd.f32 %v1282, %v1280
    %1284 = vst [vmem:[%s1281] sm:$0x1] %v1283
    %s1285 = sld [smem:[#allocation6 + $0x15]]
    %s1286 = sld [smem:[#allocation10 + $0x15]]
    %s1287 = scalar_lea.vmem [#allocation2], %s1285
    %v1288 = vld [vmem:[%s1287] sm:$0x1]
    %v1289 = vadd.f32 %v1288, %v710
    %v1290 = vmax.f32 %v1289, 0.0
    %s1291 = scalar_lea.vmem [#allocation3], %s1286
    %v1292 = vld [vmem:[%s1291] sm:$0x1]
    %v1293 = vadd.f32 %v1292, %v1290
    %1294 = vst [vmem:[%s1291] sm:$0x1] %v1293
    %s1295 = sld [smem:[#allocation6 + $0x16]]
    %s1296 = sld [smem:[#allocation10 + $0x16]]
    %s1297 = scalar_lea.vmem [#allocation2], %s1295
    %v1298 = vld [vmem:[%s1297] sm:$0x1]
    %v1299 = vadd.f32 %v1298, %v722
    %v1300 = vmax.f32 %v1299, 0.0
    %s1301 = scalar_lea.vmem [#allocation3], %s1296
    %v1302 = vld [vmem:[%s1301] sm:$0x1]
    %v1303 = vadd.f32 %v1302, %v1300
    %1304 = vst [vmem:[%s1301] sm:$0x1] %v1303
    %s1305 = sld [smem:[#allocation6 + $0x17]]
    %s1306 = sld [smem:[#allocation10 + $0x17]]
    %s1307 = scalar_lea.vmem [#allocation2], %s1305
    %v1308 = vld [vmem:[%s1307] sm:$0x1]
    %v1309 = vadd.f32 %v1308, %v734
    %v1310 = vmax.f32 %v1309, 0.0
    %s1311 = scalar_lea.vmem [#allocation3], %s1306
    %v1312 = vld [vmem:[%s1311] sm:$0x1]
    %v1313 = vadd.f32 %v1312, %v1310
    %1314 = vst [vmem:[%s1311] sm:$0x1] %v1313
    %s1315 = sld [smem:[#allocation6 + $0x18]]
    %s1316 = sld [smem:[#allocation10 + $0x18]]
    %s1317 = scalar_lea.vmem [#allocation2], %s1315
    %v1318 = vld [vmem:[%s1317] sm:$0x1]
    %v1319 = vadd.f32 %v1318, %v283
    %v1320 = vmax.f32 %v1319, 0.0
    %s1321 = scalar_lea.vmem [#allocation3], %s1316
    %v1322 = vld [vmem:[%s1321] sm:$0x1]
    %v1323 = vadd.f32 %v1322, %v1320
    %1324 = vst [vmem:[%s1321] sm:$0x1] %v1323
    %s1325 = sld [smem:[#allocation6 + $0x19]]
    %s1326 = sld [smem:[#allocation10 + $0x19]]
    %s1327 = scalar_lea.vmem [#allocation2], %s1325
    %v1328 = vld [vmem:[%s1327] sm:$0x1]
    %v1329 = vadd.f32 %v1328, %v778
    %v1330 = vmax.f32 %v1329, 0.0
    %s1331 = scalar_lea.vmem [#allocation3], %s1326
    %v1332 = vld [vmem:[%s1331] sm:$0x1]
    %v1333 = vadd.f32 %v1332, %v1330
    %1334 = vst [vmem:[%s1331] sm:$0x1] %v1333
    %s1335 = sld [smem:[#allocation6 + $0x1a]]
    %s1336 = sld [smem:[#allocation10 + $0x1a]]
    %s1337 = scalar_lea.vmem [#allocation2], %s1335
    %v1338 = vld [vmem:[%s1337] sm:$0x1]
    %v1339 = vadd.f32 %v1338, %v790
    %v1340 = vmax.f32 %v1339, 0.0
    %s1341 = scalar_lea.vmem [#allocation3], %s1336
    %v1342 = vld [vmem:[%s1341] sm:$0x1]
    %v1343 = vadd.f32 %v1342, %v1340
    %1344 = vst [vmem:[%s1341] sm:$0x1] %v1343
    %s1345 = sld [smem:[#allocation6 + $0x1b]]
    %s1346 = sld [smem:[#allocation10 + $0x1b]]
    %s1347 = scalar_lea.vmem [#allocation2], %s1345
    %v1348 = vld [vmem:[%s1347] sm:$0x1]
    %v1349 = vadd.f32 %v1348, %v802
    %v1350 = vmax.f32 %v1349, 0.0
    %s1351 = scalar_lea.vmem [#allocation3], %s1346
    %v1352 = vld [vmem:[%s1351] sm:$0x1]
    %v1353 = vadd.f32 %v1352, %v1350
    %1354 = vst [vmem:[%s1351] sm:$0x1] %v1353
    %s1355 = sld [smem:[#allocation6 + $0x1c]]
    %s1356 = sld [smem:[#allocation10 + $0x1c]]
    %s1357 = scalar_lea.vmem [#allocation2], %s1355
    %v1358 = vld [vmem:[%s1357] sm:$0x1]
    %v1359 = vadd.f32 %v1358, %v828
    %v1360 = vmax.f32 %v1359, 0.0
    %s1361 = scalar_lea.vmem [#allocation3], %s1356
    %v1362 = vld [vmem:[%s1361] sm:$0x1]
    %v1363 = vadd.f32 %v1362, %v1360
    %1364 = vst [vmem:[%s1361] sm:$0x1] %v1363
    %s1365 = sld [smem:[#allocation6 + $0x1d]]
    %s1366 = sld [smem:[#allocation10 + $0x1d]]
    %s1367 = scalar_lea.vmem [#allocation2], %s1365
    %v1368 = vld [vmem:[%s1367] sm:$0x1]
    %v1369 = vadd.f32 %v1368, %v847
    %v1370 = vmax.f32 %v1369, 0.0
    %s1371 = scalar_lea.vmem [#allocation3], %s1366
    %v1372 = vld [vmem:[%s1371] sm:$0x1]
    %v1373 = vadd.f32 %v1372, %v1370
    %1374 = vst [vmem:[%s1371] sm:$0x1] %v1373
    %s1375 = sld [smem:[#allocation6 + $0x1e]]
    %s1376 = sld [smem:[#allocation10 + $0x1e]]
    %s1377 = scalar_lea.vmem [#allocation2], %s1375
    %v1378 = vld [vmem:[%s1377] sm:$0x1]
    %v1379 = vadd.f32 %v1378, %v859
    %v1380 = vmax.f32 %v1379, 0.0
    %s1381 = scalar_lea.vmem [#allocation3], %s1376
    %v1382 = vld [vmem:[%s1381] sm:$0x1]
    %v1383 = vadd.f32 %v1382, %v1380
    %1384 = vst [vmem:[%s1381] sm:$0x1] %v1383
    %s1385 = sld [smem:[#allocation6 + $0x1f]]
    %s1386 = sld [smem:[#allocation10 + $0x1f]]
    %s1387 = scalar_lea.vmem [#allocation2], %s1385
    %v1388 = vld [vmem:[%s1387] sm:$0x1]
    %v1389 = vadd.f32 %v1388, %v871
    %v1390 = vmax.f32 %v1389, 0.0
    %s1391 = scalar_lea.vmem [#allocation3], %s1386
    %v1392 = vld [vmem:[%s1391] sm:$0x1]
    %v1393 = vadd.f32 %v1392, %v1390
    %1394 = vst [vmem:[%s1391] sm:$0x1] %v1393
    %v1395 = vld [vmem:[#allocation3] sm:$0x1]
    %1396 = vst [vmem:[#allocation5] sm:$0x1] %v1395
    %v1397 = vld [vmem:[%s881] sm:$0x1]
    %1398 = vst [vmem:[#allocation5 + $0x1] sm:$0x1] %v1397
    %v1399 = vld [vmem:[%s884] sm:$0x1]
    %1400 = vst [vmem:[#allocation5 + $0x2] sm:$0x1] %v1399
    %v1401 = vld [vmem:[%s887] sm:$0x1]
    %1402 = vst [vmem:[#allocation5 + $0x3] sm:$0x1] %v1401
    %v1403 = vld [vmem:[%s890] sm:$0x1]
    %1404 = vst [vmem:[#allocation5 + $0x4] sm:$0x1] %v1403
    %v1405 = vld [vmem:[%s893] sm:$0x1]
    %1406 = vst [vmem:[#allocation5 + $0x5] sm:$0x1] %v1405
    %v1407 = vld [vmem:[%s896] sm:$0x1]
    %1408 = vst [vmem:[#allocation5 + $0x6] sm:$0x1] %v1407
    %v1409 = vld [vmem:[%s899] sm:$0x1]
    %1410 = vst [vmem:[#allocation5 + $0x7] sm:$0x1] %v1409
    %v1411 = vld [vmem:[%s902] sm:$0x1]
    %1412 = vst [vmem:[#allocation5 + $0x8] sm:$0x1] %v1411
    %v1413 = vld [vmem:[%s905] sm:$0x1]
    %1414 = vst [vmem:[#allocation5 + $0x9] sm:$0x1] %v1413
    %v1415 = vld [vmem:[%s908] sm:$0x1]
    %1416 = vst [vmem:[#allocation5 + $0xa] sm:$0x1] %v1415
    %v1417 = vld [vmem:[%s911] sm:$0x1]
    %1418 = vst [vmem:[#allocation5 + $0xb] sm:$0x1] %v1417
    %v1419 = vld [vmem:[%s914] sm:$0x1]
    %1420 = vst [vmem:[#allocation5 + $0xc] sm:$0x1] %v1419
    %v1421 = vld [vmem:[%s917] sm:$0x1]
    %1422 = vst [vmem:[#allocation5 + $0xd] sm:$0x1] %v1421
    %v1423 = vld [vmem:[%s920] sm:$0x1]
    %1424 = vst [vmem:[#allocation5 + $0xe] sm:$0x1] %v1423
    %v1425 = vld [vmem:[%s923] sm:$0x1]
    %1426 = vst [vmem:[#allocation5 + $0xf] sm:$0x1] %v1425
    %v1427 = vld [vmem:[#allocation5] sm:$0xff]
    %v1428 = vld [vmem:[#allocation5 + $0x8] sm:$0xff]
    %s1429 = scalar_lea.vmem [#allocation13], 64
    %v1430 = vld [vmem:[%s1429] sm:$0xf]
    %v1431 = vld [vmem:[%s1429 + $0x4] sm:$0xf]
    %v1432 = vld [vmem:[%s1429 + $0x8] sm:$0xf]
    %v1433 = vld [vmem:[%s1429 + $0xc] sm:$0xf]
    %v1434 = vld [vmem:[%s1429 + $0x10] sm:$0xf]
    %v1435 = vld [vmem:[%s1429 + $0x14] sm:$0xf]
    %v1436 = vld [vmem:[%s1429 + $0x18] sm:$0xf]
    %v1437 = vld [vmem:[%s1429 + $0x1c] sm:$0xf]
    %v1438 = vld [vmem:[%s1429 + $0x20] sm:$0xf]
    %v1439 = vld [vmem:[%s1429 + $0x24] sm:$0xf]
    %v1440 = vld [vmem:[%s1429 + $0x28] sm:$0xf]
    %v1441 = vld [vmem:[%s1429 + $0x2c] sm:$0xf]
    %v1442 = vld [vmem:[%s1429 + $0x30] sm:$0xf]
    %v1443 = vld [vmem:[%s1429 + $0x34] sm:$0xf]
    %v1444 = vld [vmem:[%s1429 + $0x38] sm:$0xf]
    %v1445 = vld [vmem:[%s1429 + $0x3c] sm:$0xf]
    %s1446 = scalar_lea.vmem %s11, 1
    %v1447 = vld [vmem:[%s1446] sm:$0x1]
    %v1448 = vpack.c.bf16 %v1428, %v1427
    %v1450 = vlaneseq
    %v1451 = vshrl.u32 %v1450, 7
    %v1452 = vsub.s32 0, %v1451
    %v1453 = vrot.slane %v1447, %v1452
    %v1471 = vunpack.c.l.b16 %v1430
    %v1472 = vunpack.c.l.b16 %v1431
    %v1473 = vunpack.c.l.b16 %v1432
    %v1474 = vunpack.c.l.b16 %v1433
    %v1475 = vunpack.c.l.b16 %v1434
    %v1476 = vunpack.c.l.b16 %v1435
    %v1477 = vunpack.c.l.b16 %v1436
    %v1478 = vunpack.c.l.b16 %v1437
    %v1479 = vunpack.c.l.b16 %v1438
    %v1480 = vunpack.c.l.b16 %v1439
    %v1481 = vunpack.c.l.b16 %v1440
    %v1482 = vunpack.c.l.b16 %v1441
    %v1483 = vunpack.c.l.b16 %v1442
    %v1484 = vunpack.c.l.b16 %v1443
    %v1485 = vunpack.c.l.b16 %v1444
    %v1486 = vunpack.c.l.b16 %v1445
    %v1487 = vpack.c.b16 %v1472, %v1471
    %v1488 = vpack.c.b16 %v1474, %v1473
    %v1489 = vpack.c.b16 %v1476, %v1475
    %v1490 = vpack.c.b16 %v1478, %v1477
    %v1491 = vpack.c.b16 %v1480, %v1479
    %v1492 = vpack.c.b16 %v1482, %v1481
    %v1493 = vpack.c.b16 %v1484, %v1483
    %v1494 = vpack.c.b16 %v1486, %v1485
    %1503 = vmatprep.subr.bf16.mxu0 0
    %1504 = vmatpush1.bf16.msra.mxu0 %v1494
    %1505 = vmatprep.subr.bf16.mxu0 0
    %1506 = vmatpush1.bf16.msra.mxu0 %v1493
    %1507 = vmatprep.subr.bf16.mxu0 0
    %1508 = vmatpush1.bf16.msra.mxu0 %v1492
    %1509 = vmatprep.subr.bf16.mxu0 0
    %1510 = vmatpush1.bf16.msra.mxu0 %v1491
    %1511 = vmatprep.subr.bf16.mxu0 0
    %1512 = vmatpush1.bf16.msra.mxu0 %v1490
    %1513 = vmatprep.subr.bf16.mxu0 0
    %1514 = vmatpush1.bf16.msra.mxu0 %v1489
    %1515 = vmatprep.subr.bf16.mxu0 0
    %1516 = vmatpush1.bf16.msra.mxu0 %v1488
    %1517 = vmatprep.subr.bf16.mxu0 0
    %1518 = vmatpush1.bf16.msra.mxu0 %v1487
    %1519 = vmatprep.subr.bf16.mxu0 0
    %1520 = vmatpush2.bf16.msra.mxu0 0
    %1521 = vmatprep.subr.bf16.mxu0 0
    %1522 = vmatpush2.bf16.msra.mxu0 0
    %1523 = vmatprep.subr.bf16.mxu0 0
    %1524 = vmatpush2.bf16.msra.mxu0 0
    %1525 = vmatprep.subr.bf16.mxu0 0
    %1526 = vmatpush2.bf16.msra.mxu0 0
    %1527 = vmatprep.subr.bf16.mxu0 0
    %1528 = vmatpush2.bf16.msra.mxu0 0
    %1529 = vmatprep.subr.bf16.mxu0 0
    %1530 = vmatpush2.bf16.msra.mxu0 0
    %1531 = vmatprep.subr.bf16.mxu0 0
    %1532 = vmatpush2.bf16.msra.mxu0 0
    %1533 = vmatprep.subr.bf16.mxu0 0
    %1534 = vmatpush2.bf16.msra.mxu0 0
    %1535 = vmatprep.mubr.bf16.mxu0 0
    %1536 = vmatmul.mubr.bf16.gmra.mxu0 %v1448
    %v1537 = vpop.f32.mrf.mxu0
    %v1538 = vadd.f32 %v1453, %v1537
    %v1539 = vpop.f32.mrf.mxu0
    %v1540 = vpop.f32.mrf.mxu0
    %v1541 = vadd.f32 %v1453, %v1540
    %v1542 = vpop.f32.mrf.mxu0
    %1543 = vdwg.mxu0
    %v1544 = vmax.f32 %v1538, 0.0
    %v1545 = vmax.f32 %v1541, 0.0
    %1546 = vst [vmem:[#allocation4] sm:$0x1] 0.0
    %1547 = vst [vmem:[#allocation4 + $0x1] sm:$0x1] 0.0
    %s1548 = sld [smem:[#allocation12]]
    %s1549 = scalar_lea.vmem [#allocation4], %s1548
    %v1550 = vld [vmem:[%s1549] sm:$0x1]
    %v1551 = vadd.f32 %v1550, %v1544
    %1552 = vst [vmem:[%s1549] sm:$0x1] %v1551
    %s1553 = sld [smem:[#allocation12 + $0x1]]
    %s1554 = scalar_lea.vmem [#allocation4], %s1553
    %v1555 = vld [vmem:[%s1554] sm:$0x1]
    %v1558 = vunpack.c.l.s4 1966171168
    %v1559 = vunpack.c.0.s8 %v1558
    %v1560 = vlaneseq
    %v1561 = vshrl.u32 %v1560, 7
    %v1562 = vsub.s32 %v1559, %v1561
    %v1563 = vrot.slane %v1544, %v1562
    %v1564 = vcombine.high %v1563, %v1563
    %v1566 = vunpack.c.l.s4 1966171168
    %v1567 = vunpack.c.0.s8 %v1566
    %v1568 = vlaneseq
    %v1569 = vshrl.u32 %v1568, 7
    %v1570 = vsub.s32 %v1567, %v1569
    %v1571 = vrot.slane %v1563, %v1570
    %v1573 = vunpack.c.l.s4 1966171168
    %v1574 = vunpack.c.0.s8 %v1573
    %v1575 = vlaneseq
    %v1576 = vshrl.u32 %v1575, 7
    %v1577 = vsub.s32 %v1574, %v1576
    %v1578 = vrot.slane %v1564, %v1577
    %v1580 = vadd.f32 %v1555, %v1578
    %1581 = vst [vmem:[%s1554] sm:$0x1] %v1580
    %s1582 = sld [smem:[#allocation12 + $0x2]]
    %s1583 = scalar_lea.vmem [#allocation4], %s1582
    %v1584 = vld [vmem:[%s1583] sm:$0x1]
    %v1585 = vcombine.high %v1571, %v1571
    %v1587 = vadd.f32 %v1584, %v1585
    %1588 = vst [vmem:[%s1583] sm:$0x1] %v1587
    %s1589 = sld [smem:[#allocation12 + $0x3]]
    %s1590 = scalar_lea.vmem [#allocation4], %s1589
    %v1591 = vld [vmem:[%s1590] sm:$0x1]
    %v1592 = vcombine.high %v1578, %v1578
    %v1594 = vadd.f32 %v1591, %v1592
    %1595 = vst [vmem:[%s1590] sm:$0x1] %v1594
    %s1596 = sld [smem:[#allocation12 + $0x4]]
    %s1597 = scalar_lea.vmem [#allocation4], %s1596
    %v1598 = vld [vmem:[%s1597] sm:$0x1]
    %v1599 = vcombine.high %v1544, %v1544
    %v1601 = vunpack.c.l.s4 1966171168
    %v1602 = vunpack.c.0.s8 %v1601
    %v1603 = vlaneseq
    %v1604 = vshrl.u32 %v1603, 7
    %v1605 = vsub.s32 %v1602, %v1604
    %v1606 = vrot.slane %v1599, %v1605
    %v1608 = vunpack.c.l.s4 1966171168
    %v1609 = vunpack.c.0.s8 %v1608
    %v1610 = vlaneseq
    %v1611 = vshrl.u32 %v1610, 7
    %v1612 = vsub.s32 %v1609, %v1611
    %v1613 = vrot.slane %v1606, %v1612
    %v1615 = vadd.f32 %v1598, %v1613
    %1616 = vst [vmem:[%s1597] sm:$0x1] %v1615
    %s1617 = sld [smem:[#allocation12 + $0x5]]
    %s1618 = scalar_lea.vmem [#allocation4], %s1617
    %v1619 = vld [vmem:[%s1618] sm:$0x1]
    %v1620 = vcombine.high %v1606, %v1606
    %v1622 = vunpack.c.l.s4 1966171168
    %v1623 = vunpack.c.0.s8 %v1622
    %v1624 = vlaneseq
    %v1625 = vshrl.u32 %v1624, 7
    %v1626 = vsub.s32 %v1623, %v1625
    %v1627 = vrot.slane %v1620, %v1626
    %v1629 = vadd.f32 %v1619, %v1627
    %1630 = vst [vmem:[%s1618] sm:$0x1] %v1629
    %s1631 = sld [smem:[#allocation12 + $0x6]]
    %s1632 = scalar_lea.vmem [#allocation4], %s1631
    %v1633 = vld [vmem:[%s1632] sm:$0x1]
    %v1634 = vcombine.high %v1613, %v1613
    %v1636 = vadd.f32 %v1633, %v1634
    %1637 = vst [vmem:[%s1632] sm:$0x1] %v1636
    %s1638 = sld [smem:[#allocation12 + $0x7]]
    %s1639 = scalar_lea.vmem [#allocation4], %s1638
    %v1640 = vld [vmem:[%s1639] sm:$0x1]
    %v1641 = vcombine.high %v1627, %v1627
    %v1643 = vadd.f32 %v1640, %v1641
    %1644 = vst [vmem:[%s1639] sm:$0x1] %v1643
    %s1645 = sld [smem:[#allocation12 + $0x8]]
    %s1646 = scalar_lea.vmem [#allocation4], %s1645
    %v1647 = vld [vmem:[%s1646] sm:$0x1]
    %v1648 = vadd.f32 %v1647, %v1545
    %1649 = vst [vmem:[%s1646] sm:$0x1] %v1648
    %s1650 = sld [smem:[#allocation12 + $0x9]]
    %s1651 = scalar_lea.vmem [#allocation4], %s1650
    %v1652 = vld [vmem:[%s1651] sm:$0x1]
    %v1655 = vunpack.c.l.s4 1966171168
    %v1656 = vunpack.c.0.s8 %v1655
    %v1657 = vlaneseq
    %v1658 = vshrl.u32 %v1657, 7
    %v1659 = vsub.s32 %v1656, %v1658
    %v1660 = vrot.slane %v1545, %v1659
    %v1661 = vcombine.high %v1660, %v1660
    %v1663 = vunpack.c.l.s4 1966171168
    %v1664 = vunpack.c.0.s8 %v1663
    %v1665 = vlaneseq
    %v1666 = vshrl.u32 %v1665, 7
    %v1667 = vsub.s32 %v1664, %v1666
    %v1668 = vrot.slane %v1660, %v1667
    %v1670 = vunpack.c.l.s4 1966171168
    %v1671 = vunpack.c.0.s8 %v1670
    %v1672 = vlaneseq
    %v1673 = vshrl.u32 %v1672, 7
    %v1674 = vsub.s32 %v1671, %v1673
    %v1675 = vrot.slane %v1661, %v1674
    %v1677 = vadd.f32 %v1652, %v1675
    %1678 = vst [vmem:[%s1651] sm:$0x1] %v1677
    %s1679 = sld [smem:[#allocation12 + $0xa]]
    %s1680 = scalar_lea.vmem [#allocation4], %s1679
    %v1681 = vld [vmem:[%s1680] sm:$0x1]
    %v1682 = vcombine.high %v1668, %v1668
    %v1684 = vadd.f32 %v1681, %v1682
    %1685 = vst [vmem:[%s1680] sm:$0x1] %v1684
    %s1686 = sld [smem:[#allocation12 + $0xb]]
    %s1687 = scalar_lea.vmem [#allocation4], %s1686
    %v1688 = vld [vmem:[%s1687] sm:$0x1]
    %v1689 = vcombine.high %v1675, %v1675
    %v1691 = vadd.f32 %v1688, %v1689
    %1692 = vst [vmem:[%s1687] sm:$0x1] %v1691
    %s1693 = sld [smem:[#allocation12 + $0xc]]
    %s1694 = scalar_lea.vmem [#allocation4], %s1693
    %v1695 = vld [vmem:[%s1694] sm:$0x1]
    %v1696 = vcombine.high %v1545, %v1545
    %v1698 = vunpack.c.l.s4 1966171168
    %v1699 = vunpack.c.0.s8 %v1698
    %v1700 = vlaneseq
    %v1701 = vshrl.u32 %v1700, 7
    %v1702 = vsub.s32 %v1699, %v1701
    %v1703 = vrot.slane %v1696, %v1702
    %v1705 = vunpack.c.l.s4 1966171168
    %v1706 = vunpack.c.0.s8 %v1705
    %v1707 = vlaneseq
    %v1708 = vshrl.u32 %v1707, 7
    %v1709 = vsub.s32 %v1706, %v1708
    %v1710 = vrot.slane %v1703, %v1709
    %v1712 = vadd.f32 %v1695, %v1710
    %1713 = vst [vmem:[%s1694] sm:$0x1] %v1712
    %s1714 = sld [smem:[#allocation12 + $0xd]]
    %s1715 = scalar_lea.vmem [#allocation4], %s1714
    %v1716 = vld [vmem:[%s1715] sm:$0x1]
    %v1717 = vcombine.high %v1703, %v1703
    %v1719 = vunpack.c.l.s4 1966171168
    %v1720 = vunpack.c.0.s8 %v1719
    %v1721 = vlaneseq
    %v1722 = vshrl.u32 %v1721, 7
    %v1723 = vsub.s32 %v1720, %v1722
    %v1724 = vrot.slane %v1717, %v1723
    %v1726 = vadd.f32 %v1716, %v1724
    %1727 = vst [vmem:[%s1715] sm:$0x1] %v1726
    %s1728 = sld [smem:[#allocation12 + $0xe]]
    %s1729 = scalar_lea.vmem [#allocation4], %s1728
    %v1730 = vld [vmem:[%s1729] sm:$0x1]
    %v1731 = vcombine.high %v1710, %v1710
    %v1733 = vadd.f32 %v1730, %v1731
    %1734 = vst [vmem:[%s1729] sm:$0x1] %v1733
    %s1735 = sld [smem:[#allocation12 + $0xf]]
    %s1736 = scalar_lea.vmem [#allocation4], %s1735
    %v1737 = vld [vmem:[%s1736] sm:$0x1]
    %v1738 = vcombine.high %v1724, %v1724
    %v1740 = vadd.f32 %v1737, %v1738
    %1741 = vst [vmem:[%s1736] sm:$0x1] %v1740
    %v1742 = vld [vmem:[#allocation4] sm:$0x1]
    %1743 = vst [vmem:[#allocation5] sm:$0x1] %v1742
    %s1744 = scalar_lea.vmem [#allocation4], 1
    %v1745 = vld [vmem:[%s1744] sm:$0x1]
    %1746 = vst [vmem:[#allocation5 + $0x1] sm:$0x1] %v1745
    %v1747 = vld [vmem:[#allocation5] sm:$0x3]
    %v1748 = vld [vmem:[%s5] sm:$0x3]
    %1750 = vset.pattern.permute.xlu0 0
    %1751 = vperm.xlu0 %1750, %v1748
    %v1752 = vpop.permute.xlu0 %1751
    %v1754 = vmul.f32 %v1747, %v1752
    %v1755 = vld [vmem:[#allocation14] sm:$0xf]
    %v1756 = vld [vmem:[#allocation14 + $0x4] sm:$0xf]
    %v1757 = vld [vmem:[#allocation14 + $0x8] sm:$0xf]
    %v1758 = vld [vmem:[#allocation14 + $0xc] sm:$0xf]
    %v1759 = vld [vmem:[#allocation14 + $0x10] sm:$0xf]
    %v1760 = vld [vmem:[#allocation14 + $0x14] sm:$0xf]
    %v1761 = vld [vmem:[#allocation14 + $0x18] sm:$0xf]
    %v1762 = vld [vmem:[#allocation14 + $0x1c] sm:$0xf]
    %v1763 = vld [vmem:[#allocation14 + $0x20] sm:$0xf]
    %v1764 = vld [vmem:[#allocation14 + $0x24] sm:$0xf]
    %v1765 = vld [vmem:[#allocation14 + $0x28] sm:$0xf]
    %v1766 = vld [vmem:[#allocation14 + $0x2c] sm:$0xf]
    %v1767 = vld [vmem:[#allocation14 + $0x30] sm:$0xf]
    %v1768 = vld [vmem:[#allocation14 + $0x34] sm:$0xf]
    %v1769 = vld [vmem:[#allocation14 + $0x38] sm:$0xf]
    %v1770 = vld [vmem:[#allocation14 + $0x3c] sm:$0xf]
    %v1771 = vld [vmem:[%s13] sm:$0x1]
    %v1772 = vpack.c.bf16 %v1754, %v1754
    %v1774 = vlaneseq
    %v1775 = vshrl.u32 %v1774, 7
    %v1776 = vsub.s32 0, %v1775
    %v1777 = vrot.slane %v1771, %v1776
    %v1795 = vunpack.c.l.b16 %v1755
    %v1796 = vunpack.c.l.b16 %v1756
    %v1797 = vunpack.c.l.b16 %v1757
    %v1798 = vunpack.c.l.b16 %v1758
    %v1799 = vunpack.c.l.b16 %v1759
    %v1800 = vunpack.c.l.b16 %v1760
    %v1801 = vunpack.c.l.b16 %v1761
    %v1802 = vunpack.c.l.b16 %v1762
    %v1803 = vunpack.c.l.b16 %v1763
    %v1804 = vunpack.c.l.b16 %v1764
    %v1805 = vunpack.c.l.b16 %v1765
    %v1806 = vunpack.c.l.b16 %v1766
    %v1807 = vunpack.c.l.b16 %v1767
    %v1808 = vunpack.c.l.b16 %v1768
    %v1809 = vunpack.c.l.b16 %v1769
    %v1810 = vunpack.c.l.b16 %v1770
    %v1811 = vpack.c.b16 %v1796, %v1795
    %v1812 = vpack.c.b16 %v1798, %v1797
    %v1813 = vpack.c.b16 %v1800, %v1799
    %v1814 = vpack.c.b16 %v1802, %v1801
    %v1815 = vpack.c.b16 %v1804, %v1803
    %v1816 = vpack.c.b16 %v1806, %v1805
    %v1817 = vpack.c.b16 %v1808, %v1807
    %v1818 = vpack.c.b16 %v1810, %v1809
    %1827 = vmatprep.subr.bf16.mxu0 0
    %1828 = vmatpush1.bf16.msra.mxu0 %v1818
    %1829 = vmatprep.subr.bf16.mxu0 0
    %1830 = vmatpush1.bf16.msra.mxu0 %v1817
    %1831 = vmatprep.subr.bf16.mxu0 0
    %1832 = vmatpush1.bf16.msra.mxu0 %v1816
    %1833 = vmatprep.subr.bf16.mxu0 0
    %1834 = vmatpush1.bf16.msra.mxu0 %v1815
    %1835 = vmatprep.subr.bf16.mxu0 0
    %1836 = vmatpush1.bf16.msra.mxu0 %v1814
    %1837 = vmatprep.subr.bf16.mxu0 0
    %1838 = vmatpush1.bf16.msra.mxu0 %v1813
    %1839 = vmatprep.subr.bf16.mxu0 0
    %1840 = vmatpush1.bf16.msra.mxu0 %v1812
    %1841 = vmatprep.subr.bf16.mxu0 0
    %1842 = vmatpush1.bf16.msra.mxu0 %v1811
    %1843 = vmatprep.subr.bf16.mxu0 0
    %1844 = vmatpush2.bf16.msra.mxu0 0
    %1845 = vmatprep.subr.bf16.mxu0 0
    %1846 = vmatpush2.bf16.msra.mxu0 0
    %1847 = vmatprep.subr.bf16.mxu0 0
    %1848 = vmatpush2.bf16.msra.mxu0 0
    %1849 = vmatprep.subr.bf16.mxu0 0
    %1850 = vmatpush2.bf16.msra.mxu0 0
    %1851 = vmatprep.subr.bf16.mxu0 0
    %1852 = vmatpush2.bf16.msra.mxu0 0
    %1853 = vmatprep.subr.bf16.mxu0 0
    %1854 = vmatpush2.bf16.msra.mxu0 0
    %1855 = vmatprep.subr.bf16.mxu0 0
    %1856 = vmatpush2.bf16.msra.mxu0 0
    %1857 = vmatprep.subr.bf16.mxu0 0
    %1858 = vmatpush2.bf16.msra.mxu0 0
    %1859 = vmatprep.mubr.bf16.mxu0 0
    %1860 = vmatmul.mubr.bf16.gmra.mxu0 %v1772
    %v1861 = vpop.f32.mrf.mxu0
    %v1862 = vadd.f32 %v1777, %v1861
    %v1863 = vpop.f32.mrf.mxu0
    %v1864 = vpop.f32.mrf.mxu0
    %v1865 = vpop.f32.mrf.mxu0
    %1866 = vdwg.mxu0
    %v1867 = vmax.f32 %v1862, 0.0
    %v1868 = vld [vmem:[#allocation16] sm:$0xf]
    %v1869 = vld [vmem:[#allocation16 + $0x4] sm:$0xf]
    %v1870 = vld [vmem:[#allocation16 + $0x8] sm:$0xf]
    %v1871 = vld [vmem:[#allocation16 + $0xc] sm:$0xf]
    %v1872 = vld [vmem:[#allocation16 + $0x10] sm:$0xf]
    %v1873 = vld [vmem:[#allocation16 + $0x14] sm:$0xf]
    %v1874 = vld [vmem:[#allocation16 + $0x18] sm:$0xf]
    %v1875 = vld [vmem:[#allocation16 + $0x1c] sm:$0xf]
    %v1876 = vld [vmem:[#allocation16 + $0x20] sm:$0xf]
    %v1877 = vld [vmem:[#allocation16 + $0x24] sm:$0xf]
    %v1878 = vld [vmem:[#allocation16 + $0x28] sm:$0xf]
    %v1879 = vld [vmem:[#allocation16 + $0x2c] sm:$0xf]
    %v1880 = vld [vmem:[#allocation16 + $0x30] sm:$0xf]
    %v1881 = vld [vmem:[#allocation16 + $0x34] sm:$0xf]
    %v1882 = vld [vmem:[#allocation16 + $0x38] sm:$0xf]
    %v1883 = vld [vmem:[#allocation16 + $0x3c] sm:$0xf]
    %v1884 = vld [vmem:[%s15] sm:$0x1]
    %v1885 = vpack.c.bf16 %v1867, %v1867
    %v1887 = vlaneseq
    %v1888 = vshrl.u32 %v1887, 7
    %v1889 = vsub.s32 0, %v1888
    %v1890 = vrot.slane %v1884, %v1889
    %v1908 = vunpack.c.l.b16 %v1868
    %v1909 = vunpack.c.l.b16 %v1869
    %v1910 = vunpack.c.l.b16 %v1870
    %v1911 = vunpack.c.l.b16 %v1871
    %v1912 = vunpack.c.l.b16 %v1872
    %v1913 = vunpack.c.l.b16 %v1873
    %v1914 = vunpack.c.l.b16 %v1874
    %v1915 = vunpack.c.l.b16 %v1875
    %v1916 = vunpack.c.l.b16 %v1876
    %v1917 = vunpack.c.l.b16 %v1877
    %v1918 = vunpack.c.l.b16 %v1878
    %v1919 = vunpack.c.l.b16 %v1879
    %v1920 = vunpack.c.l.b16 %v1880
    %v1921 = vunpack.c.l.b16 %v1881
    %v1922 = vunpack.c.l.b16 %v1882
    %v1923 = vunpack.c.l.b16 %v1883
    %v1924 = vpack.c.b16 %v1909, %v1908
    %v1925 = vpack.c.b16 %v1911, %v1910
    %v1926 = vpack.c.b16 %v1913, %v1912
    %v1927 = vpack.c.b16 %v1915, %v1914
    %v1928 = vpack.c.b16 %v1917, %v1916
    %v1929 = vpack.c.b16 %v1919, %v1918
    %v1930 = vpack.c.b16 %v1921, %v1920
    %v1931 = vpack.c.b16 %v1923, %v1922
    %1940 = vmatprep.subr.bf16.mxu0 0
    %1941 = vmatpush1.bf16.msra.mxu0 %v1931
    %1942 = vmatprep.subr.bf16.mxu0 0
    %1943 = vmatpush1.bf16.msra.mxu0 %v1930
    %1944 = vmatprep.subr.bf16.mxu0 0
    %1945 = vmatpush1.bf16.msra.mxu0 %v1929
    %1946 = vmatprep.subr.bf16.mxu0 0
    %1947 = vmatpush1.bf16.msra.mxu0 %v1928
    %1948 = vmatprep.subr.bf16.mxu0 0
    %1949 = vmatpush1.bf16.msra.mxu0 %v1927
    %1950 = vmatprep.subr.bf16.mxu0 0
    %1951 = vmatpush1.bf16.msra.mxu0 %v1926
    %1952 = vmatprep.subr.bf16.mxu0 0
    %1953 = vmatpush1.bf16.msra.mxu0 %v1925
    %1954 = vmatprep.subr.bf16.mxu0 0
    %1955 = vmatpush1.bf16.msra.mxu0 %v1924
    %1956 = vmatprep.subr.bf16.mxu0 0
    %1957 = vmatpush2.bf16.msra.mxu0 0
    %1958 = vmatprep.subr.bf16.mxu0 0
    %1959 = vmatpush2.bf16.msra.mxu0 0
    %1960 = vmatprep.subr.bf16.mxu0 0
    %1961 = vmatpush2.bf16.msra.mxu0 0
    %1962 = vmatprep.subr.bf16.mxu0 0
    %1963 = vmatpush2.bf16.msra.mxu0 0
    %1964 = vmatprep.subr.bf16.mxu0 0
    %1965 = vmatpush2.bf16.msra.mxu0 0
    %1966 = vmatprep.subr.bf16.mxu0 0
    %1967 = vmatpush2.bf16.msra.mxu0 0
    %1968 = vmatprep.subr.bf16.mxu0 0
    %1969 = vmatpush2.bf16.msra.mxu0 0
    %1970 = vmatprep.subr.bf16.mxu0 0
    %1971 = vmatpush2.bf16.msra.mxu0 0
    %1972 = vmatprep.mubr.bf16.mxu0 0
    %1973 = vmatmul.mubr.bf16.gmra.mxu0 %v1885
    %v1974 = vpop.f32.mrf.mxu0
    %v1975 = vadd.f32 %v1890, %v1974
    %v1976 = vpop.f32.mrf.mxu0
    %v1977 = vpop.f32.mrf.mxu0
    %v1978 = vpop.f32.mrf.mxu0
    %1979 = vdwg.mxu0
    %1980 = vst [vmem:[#allocation17] sm:$0x3] %v1975
    // Predicated region
    $region90: #{tpu_custom_call.1} parent=1 // pred_check
      _
    $region91: #{tpu_custom_call.1} parent=1 // pred_check_branch
      %1982 = sbr.rel (0) target = $region93
    $region92: #{tpu_custom_call.1} parent=1 // pred_region
      %s1984 = ssub.s32 32, 32
      %1985 = vsyncadd [#allocation8], %s1984
      %s1987 = sshll.u32 [#allocation17], 4
      %s1988 = int_to_ptr.vmem [resolvable:$true] %s1987
      %1990 = dma.vmem_to_hbm [thread:$0]  %s1988, 32, %s16, [#allocation8]
    $region93: #{tpu_custom_call.1} parent=1 // pred_fallthru
      _
    // Predicated region
    $region94: #{tpu_custom_call.1} parent=1 // pred_check
      _
    $region95: #{tpu_custom_call.1} parent=1 // pred_check_branch
      %1992 = sbr.rel (0) target = $region97
    $region96: #{tpu_custom_call.1} parent=1 // pred_region
      %1993 = dma.done [#allocation8], 32
    $region97: #{tpu_custom_call.1} parent=1 // pred_fallthru
      _
    %1994 = vsyncpa [#allocation7], 1
    %1995 = vsyncpa [#allocation15], 1
    %1996 = vsyncpa [#allocation8], 1
    %1997 = vsyncpa [#allocation9], 1
    %1998 = vsyncpa [#allocation11], 1

</llo_original>
